<compile_context>
chip_gen: v7x
topology: tpu7x:2x2x1
jax: 0.10.0
libtpu: 0.0.40
codegen_flags: <defaults>
</compile_context>

<pallas_src>
import jax
import jax.numpy as jnp
from jax.experimental import pallas as pl
from jax.experimental.pallas import tpu as pltpu

HIDDEN = 16          # neck / head hidden channels
ANCHOR = 5           # anchors per location
CLS_C = 2 * ANCHOR   # 10 cls channels
LOC_C = 4 * ANCHOR   # 20 loc channels
OUT_PAD = 128        # lane-dense padded logits width (cls || loc || zeros)


# ----------------------------------------------------------------------------
# In-kernel building blocks (operate on values that never leave VMEM)
# ----------------------------------------------------------------------------
def _conv_valid(x, w_ref, b_ref, relu):
    """Valid, stride-1 conv on an in-VMEM value.

    x: (B, H, W, Cin) f32 value; w_ref: (KH, KW, Cin, Cout); b_ref: (1, Cout).
    Implemented as KH*KW MXU matmuls with f32 accumulation (tap-sum form).
    TODO(synk): a single im2col matmul (K = KH*KW*Cin) would fill the MXU
    contraction width better, but needs a minor-dim concatenate that does not
    lower robustly for Cin in {3, 8, 16}; with the whole net fused into one
    launch this kernel is not MXU-bound, so the tap-sum form is kept.
    """
    B, H, W, Cin = x.shape
    KH, KW, _, Cout = w_ref.shape
    Ho, Wo = H - KH + 1, W - KW + 1
    acc = jnp.zeros((B * Ho * Wo, Cout), jnp.float32)
    for i in range(KH):
        for j in range(KW):
            patch = x[:, i:i + Ho, j:j + Wo, :].reshape(B * Ho * Wo, Cin)
            acc = acc + jnp.dot(patch, w_ref[i, j],
                                preferred_element_type=jnp.float32)
    acc = acc + b_ref[...]
    if relu:
        acc = jnp.maximum(acc, 0.0)
    return acc.reshape(B, Ho, Wo, Cout)


def _backbone_neck(img, w1, b1, w2, b2, wn, bn):
    h = _conv_valid(img, w1, b1, relu=True)      # 3x3
    h = _conv_valid(h, w2, b2, relu=True)        # 3x3
    return _conv_valid(h, wn, bn, relu=False)    # 1x1 neck / adjust


# ----------------------------------------------------------------------------
# Fused kernels (one launch each)
# ----------------------------------------------------------------------------
def _temple_kernel(z_ref, w1, b1, w2, b2, wn, bn, zf_ref):
    zf_ref[...] = _backbone_neck(z_ref[...], w1, b1, w2, b2, wn, bn)


def _forward_kernel(zf_ref, x_ref, w1, b1, w2, b2, wn, bn,
                    wck, bck, wcs, bcs, wh1, bh1, wh2, bh2, out_ref):
    # Backbone + neck on the search image (activations stay in VMEM).
    xf = _backbone_neck(x_ref[...], w1, b1, w2, b2, wn, bn)    # (B, 12, 12, 16)
    zf = zf_ref[...]                                           # (B,  4,  4, 16)

    # cls and loc branches fused along the channel axis (Cout = 2*HIDDEN).
    k = _conv_valid(zf, wck, bck, relu=True)                   # (B,  2,  2, 32)
    s = _conv_valid(xf, wcs, bcs, relu=True)                   # (B, 10, 10, 32)

    # Depthwise cross-correlation: per-(batch, channel) correlation of the
    # search features with the template features (cls/loc halves independent).
    B, Hk, Wk, C = k.shape
    _, Hs, Ws, _ = s.shape
    Ho, Wo = Hs - Hk + 1, Ws - Wk + 1
    feat = jnp.zeros((B, Ho, Wo, C), jnp.float32)
    for i in range(Hk):
        for j in range(Wk):
            feat = feat + s[:, i:i + Ho, j:j + Wo, :] * k[:, i:i + 1, j:j + 1, :]

    # Head: two 1x1 convs as matmuls.  h1 is block-diagonal (cls ⊕ loc);
    # h2 is padded to a lane-dense 128-wide logits slab.
    m = feat.reshape(B * Ho * Wo, C)
    h = jnp.dot(m, wh1[...], preferred_element_type=jnp.float32) + bh1[...]
    h = jnp.maximum(h, 0.0)
    logits = jnp.dot(h, wh2[...], preferred_element_type=jnp.float32) + bh2[...]
    out_ref[...] = logits.astype(out_ref.dtype)                # (B*Ho*Wo, 128)


# ----------------------------------------------------------------------------
# Parameter initialization (synthetic, torch-like layout) + fusion prep
# ----------------------------------------------------------------------------
def init_params(key):
    def w(k, shape, scale=0.1):
        return scale * jax.random.normal(k, shape, jnp.float32)

    ks = list(jax.random.split(key, 16))
    p = {}
    # backbone (features): two 3x3 stride-1 valid convs + ReLU
    p["feat1_w"] = w(ks[0], (3, 3, 3, 8))
    p["feat1_b"] = jnp.zeros((1, 8), jnp.float32)
    p["feat2_w"] = w(ks[1], (3, 3, 8, HIDDEN))
    p["feat2_b"] = jnp.zeros((1, HIDDEN), jnp.float32)
    # neck (adjust layer): 1x1 conv
    p["neck_w"] = w(ks[2], (1, 1, HIDDEN, HIDDEN))
    p["neck_b"] = jnp.zeros((1, HIDDEN), jnp.float32)
    # head: DepthwiseRPN, separate cls / loc branches (torch-like structure)
    for idx, (name, out_c) in enumerate([("cls", CLS_C), ("loc", LOC_C)]):
        base = 3 + idx * 4
        p[f"{name}_ck_w"] = w(ks[base + 0], (3, 3, HIDDEN, HIDDEN))  # conv_kernel
        p[f"{name}_ck_b"] = jnp.zeros((1, HIDDEN), jnp.float32)
        p[f"{name}_cs_w"] = w(ks[base + 1], (3, 3, HIDDEN, HIDDEN))  # conv_search
        p[f"{name}_cs_b"] = jnp.zeros((1, HIDDEN), jnp.float32)
        p[f"{name}_h1_w"] = w(ks[base + 2], (1, 1, HIDDEN, HIDDEN))  # head conv 1
        p[f"{name}_h1_b"] = jnp.zeros((1, HIDDEN), jnp.float32)
        p[f"{name}_h2_w"] = w(ks[base + 3], (1, 1, HIDDEN, out_c))   # head conv 2
        p[f"{name}_h2_b"] = jnp.zeros((1, out_c), jnp.float32)
    return p


def fuse_params(p):
    """One-time (plain JAX) prep: concat cls/loc weights, block-diag head,
    pad logits weights to a lane-dense 128-wide output."""
    f = {
        "feat1_w": p["feat1_w"], "feat1_b": p["feat1_b"],
        "feat2_w": p["feat2_w"], "feat2_b": p["feat2_b"],
        "neck_w": p["neck_w"], "neck_b": p["neck_b"],
        # conv_kernel / conv_search of both branches concatenated along Cout
        "ck_w": jnp.concatenate([p["cls_ck_w"], p["loc_ck_w"]], axis=3),
        "ck_b": jnp.concatenate([p["cls_ck_b"], p["loc_ck_b"]], axis=1),
        "cs_w": jnp.concatenate([p["cls_cs_w"], p["loc_cs_w"]], axis=3),
        "cs_b": jnp.concatenate([p["cls_cs_b"], p["loc_cs_b"]], axis=1),
    }
    # head conv-1 (1x1) as a block-diagonal (2H, 2H) matmul weight
    h1 = jnp.zeros((2 * HIDDEN, 2 * HIDDEN), jnp.float32)
    h1 = h1.at[:HIDDEN, :HIDDEN].set(p["cls_h1_w"][0, 0])
    h1 = h1.at[HIDDEN:, HIDDEN:].set(p["loc_h1_w"][0, 0])
    f["h1_w"] = h1
    f["h1_b"] = jnp.concatenate([p["cls_h1_b"], p["loc_h1_b"]], axis=1)
    # head conv-2 (logits): cols [0,10) = cls, cols [10,30) = loc, rest zero
    h2 = jnp.zeros((2 * HIDDEN, OUT_PAD), jnp.float32)
    h2 = h2.at[:HIDDEN, :CLS_C].set(p["cls_h2_w"][0, 0])
    h2 = h2.at[HIDDEN:, CLS_C:CLS_C + LOC_C].set(p["loc_h2_w"][0, 0])
    f["h2_w"] = h2
    b2 = jnp.zeros((1, OUT_PAD), jnp.float32)
    b2 = b2.at[:, :CLS_C].set(p["cls_h2_b"])
    b2 = b2.at[:, CLS_C:CLS_C + LOC_C].set(p["loc_h2_b"])
    f["h2_b"] = b2
    return f


# ----------------------------------------------------------------------------
# Public wrappers (NCHW in / NCHW out, like PyTorch)
# ----------------------------------------------------------------------------
def _whole_array_vmem_specs(n):
    # Grid-less call: each operand is placed whole into VMEM (everything here
    # — weights + activations — totals well under 1 MiB).
    return [pl.BlockSpec(memory_space=pltpu.MemorySpace.VMEM) for _ in range(n)]


def temple(params, z_nchw):
    """SiamRPNPP.temple: template -> backbone features -> neck.  One launch."""
    z = jnp.transpose(z_nchw, (0, 2, 3, 1)).astype(jnp.float32)   # NCHW -> NHWC
    B, H, W, _ = z.shape
    Ho, Wo = H - 4, W - 4            # two valid 3x3 convs; 1x1 neck keeps size
    args = (z, params["feat1_w"], params["feat1_b"],
            params["feat2_w"], params["feat2_b"],
            params["neck_w"], params["neck_b"])
    return pl.pallas_call(
        _temple_kernel,
        out_shape=jax.ShapeDtypeStruct((B, Ho, Wo, HIDDEN), jnp.float32),
        in_specs=_whole_array_vmem_specs(len(args)),
        out_specs=pl.BlockSpec(memory_space=pltpu.MemorySpace.VMEM),
    )(*args)


def siamrpnpp_forward(params, zf_nhwc, x_nchw):
    """SiamRPNPP.forward(zf, x) -> (loc, cls), NCHW outputs like PyTorch."""
    # (the PyTorch `.cuda()` transfer on zf has no Pallas equivalent; no-op)
    x = jnp.transpose(x_nchw, (0, 2, 3, 1)).astype(jnp.float32)   # NCHW -> NHWC
    B, Hx, Wx, _ = x.shape
    Hz, Wz = zf_nhwc.shape[1], zf_nhwc.shape[2]
    # Correlation-map size: search path loses 4 (features) + 2 (conv_search);
    # template path loses 2 (conv_kernel) on top of the zf spatial size.
    Ho = (Hx - 6) - (Hz - 2) + 1
    Wo = (Wx - 6) - (Wz - 2) + 1

    args = (zf_nhwc, x,
            params["feat1_w"], params["feat1_b"],
            params["feat2_w"], params["feat2_b"],
            params["neck_w"], params["neck_b"],
            params["ck_w"], params["ck_b"],
            params["cs_w"], params["cs_b"],
            params["h1_w"], params["h1_b"],
            params["h2_w"], params["h2_b"])
    out = pl.pallas_call(
        _forward_kernel,
        out_shape=jax.ShapeDtypeStruct((B * Ho * Wo, OUT_PAD), jnp.float32),
        in_specs=_whole_array_vmem_specs(len(args)),
        out_specs=pl.BlockSpec(memory_space=pltpu.MemorySpace.VMEM),
    )(*args)

    out = out.reshape(B, Ho, Wo, OUT_PAD)
    cls = jnp.transpose(out[..., :CLS_C], (0, 3, 1, 2))            # NHWC->NCHW
    loc = jnp.transpose(out[..., CLS_C:CLS_C + LOC_C], (0, 3, 1, 2))
    return loc, cls


# ----------------------------------------------------------------------------
if __name__ == "__main__":
    key = jax.random.PRNGKey(0)
    pkey, zkey, xkey = jax.random.split(key, 3)

    params = fuse_params(init_params(pkey))

    # Template z (small crop) and search region x, NCHW like PyTorch.
    z = jax.random.normal(zkey, (2, 3, 8, 8), jnp.float32)
    x = jax.random.normal(xkey, (2, 3, 16, 16), jnp.float32)

    temple_fn = jax.jit(temple)
    forward_fn = jax.jit(siamrpnpp_forward)

    zf = temple_fn(params, z)                     # precomputed template feats
    loc, cls = forward_fn(params, zf, x)
    jax.block_until_ready((loc, cls))

    # x: 16 -> 14 -> 12 (features) -> 12 (neck) -> 10 (conv_search)
    # z:  8 ->  6 ->  4 (features) ->  4 (neck) ->  2 (conv_kernel)
    # xcorr: 10 - 2 + 1 = 9 ;  head 1x1 convs keep 9x9
    assert zf.shape == (2, 4, 4, HIDDEN), zf.shape
    assert loc.shape == (2, LOC_C, 9, 9), loc.shape
    assert cls.shape == (2, CLS_C, 9, 9), cls.shape
    assert jnp.all(jnp.isfinite(loc)) and jnp.all(jnp.isfinite(cls))

    print("KERNEL_OK")
</pallas_src>

<mosaic_0001>
module attributes {stable_mosaic.version = 11 : i64} {
  func.func @_temple_kernel(%arg0: memref<2x8x8x3xf32, #tpu.memory_space<vmem>>, %arg1: memref<3x3x3x8xf32, #tpu.memory_space<vmem>>, %arg2: memref<1x8xf32, #tpu.memory_space<vmem>>, %arg3: memref<3x3x8x16xf32, #tpu.memory_space<vmem>>, %arg4: memref<1x16xf32, #tpu.memory_space<vmem>>, %arg5: memref<1x1x16x16xf32, #tpu.memory_space<vmem>>, %arg6: memref<1x16xf32, #tpu.memory_space<vmem>>, %arg7: memref<2x4x4x16xf32, #tpu.memory_space<vmem>>) attributes {dimension_semantics = [], scalar_prefetch = 0 : i64, scratch_operands = 0 : i64, tpu.core_type = #tpu.core_type<tc>} {
    %c0 = arith.constant 0 : index
    %c0_0 = arith.constant 0 : index
    %c0_1 = arith.constant 0 : index
    %c0_2 = arith.constant 0 : index
    %0 = vector.load %arg0[%c0, %c0_0, %c0_1, %c0_2] : memref<2x8x8x3xf32, #tpu.memory_space<vmem>>, vector<2x8x8x3xf32>
    %cst = arith.constant 0.000000e+00 : f32
    %1 = vector.broadcast %cst : f32 to vector<72x8xf32>
    %2 = vector.extract_strided_slice %0 {offsets = [0, 0, 0, 0], sizes = [2, 6, 6, 3], strides = [1, 1, 1, 1]} : vector<2x8x8x3xf32> to vector<2x6x6x3xf32>
    %3 = vector.shape_cast %2 : vector<2x6x6x3xf32> to vector<72x3xf32>
    %c0_3 = arith.constant 0 : index
    %c0_4 = arith.constant 0 : index
    %c0_5 = arith.constant 0 : index
    %c0_6 = arith.constant 0 : index
    %4 = vector.load %arg1[%c0_3, %c0_4, %c0_5, %c0_6] : memref<3x3x3x8xf32, #tpu.memory_space<vmem>>, vector<1x1x3x8xf32>
    %5 = vector.shape_cast %4 : vector<1x1x3x8xf32> to vector<3x8xf32>
    %cst_7 = arith.constant dense<0.000000e+00> : vector<72x8xf32>
    %6 = tpu.matmul %3, %5, %cst_7 {dimension_numbers = #tpu.dot_dimension_numbers<[1], [0], [0], [1], [0, 0, 1, 1], [], []>} : vector<72x3xf32>, vector<3x8xf32>, vector<72x8xf32> -> vector<72x8xf32>
    %7 = arith.addf %1, %6 : vector<72x8xf32>
    %8 = vector.extract_strided_slice %0 {offsets = [0, 0, 1, 0], sizes = [2, 6, 6, 3], strides = [1, 1, 1, 1]} : vector<2x8x8x3xf32> to vector<2x6x6x3xf32>
    %9 = vector.shape_cast %8 : vector<2x6x6x3xf32> to vector<72x3xf32>
    %c0_8 = arith.constant 0 : index
    %c1 = arith.constant 1 : index
    %c0_9 = arith.constant 0 : index
    %c0_10 = arith.constant 0 : index
    %10 = vector.load %arg1[%c0_8, %c1, %c0_9, %c0_10] : memref<3x3x3x8xf32, #tpu.memory_space<vmem>>, vector<1x1x3x8xf32>
    %11 = vector.shape_cast %10 : vector<1x1x3x8xf32> to vector<3x8xf32>
    %cst_11 = arith.constant dense<0.000000e+00> : vector<72x8xf32>
    %12 = tpu.matmul %9, %11, %cst_11 {dimension_numbers = #tpu.dot_dimension_numbers<[1], [0], [0], [1], [0, 0, 1, 1], [], []>} : vector<72x3xf32>, vector<3x8xf32>, vector<72x8xf32> -> vector<72x8xf32>
    %13 = arith.addf %7, %12 : vector<72x8xf32>
    %14 = vector.extract_strided_slice %0 {offsets = [0, 0, 2, 0], sizes = [2, 6, 6, 3], strides = [1, 1, 1, 1]} : vector<2x8x8x3xf32> to vector<2x6x6x3xf32>
    %15 = vector.shape_cast %14 : vector<2x6x6x3xf32> to vector<72x3xf32>
    %c0_12 = arith.constant 0 : index
    %c2 = arith.constant 2 : index
    %c0_13 = arith.constant 0 : index
    %c0_14 = arith.constant 0 : index
    %16 = vector.load %arg1[%c0_12, %c2, %c0_13, %c0_14] : memref<3x3x3x8xf32, #tpu.memory_space<vmem>>, vector<1x1x3x8xf32>
    %17 = vector.shape_cast %16 : vector<1x1x3x8xf32> to vector<3x8xf32>
    %cst_15 = arith.constant dense<0.000000e+00> : vector<72x8xf32>
    %18 = tpu.matmul %15, %17, %cst_15 {dimension_numbers = #tpu.dot_dimension_numbers<[1], [0], [0], [1], [0, 0, 1, 1], [], []>} : vector<72x3xf32>, vector<3x8xf32>, vector<72x8xf32> -> vector<72x8xf32>
    %19 = arith.addf %13, %18 : vector<72x8xf32>
    %20 = vector.extract_strided_slice %0 {offsets = [0, 1, 0, 0], sizes = [2, 6, 6, 3], strides = [1, 1, 1, 1]} : vector<2x8x8x3xf32> to vector<2x6x6x3xf32>
    %21 = vector.shape_cast %20 : vector<2x6x6x3xf32> to vector<72x3xf32>
    %c1_16 = arith.constant 1 : index
    %c0_17 = arith.constant 0 : index
    %c0_18 = arith.constant 0 : index
    %c0_19 = arith.constant 0 : index
    %22 = vector.load %arg1[%c1_16, %c0_17, %c0_18, %c0_19] : memref<3x3x3x8xf32, #tpu.memory_space<vmem>>, vector<1x1x3x8xf32>
    %23 = vector.shape_cast %22 : vector<1x1x3x8xf32> to vector<3x8xf32>
    %cst_20 = arith.constant dense<0.000000e+00> : vector<72x8xf32>
    %24 = tpu.matmul %21, %23, %cst_20 {dimension_numbers = #tpu.dot_dimension_numbers<[1], [0], [0], [1], [0, 0, 1, 1], [], []>} : vector<72x3xf32>, vector<3x8xf32>, vector<72x8xf32> -> vector<72x8xf32>
    %25 = arith.addf %19, %24 : vector<72x8xf32>
    %26 = vector.extract_strided_slice %0 {offsets = [0, 1, 1, 0], sizes = [2, 6, 6, 3], strides = [1, 1, 1, 1]} : vector<2x8x8x3xf32> to vector<2x6x6x3xf32>
    %27 = vector.shape_cast %26 : vector<2x6x6x3xf32> to vector<72x3xf32>
    %c1_21 = arith.constant 1 : index
    %c1_22 = arith.constant 1 : index
    %c0_23 = arith.constant 0 : index
    %c0_24 = arith.constant 0 : index
    %28 = vector.load %arg1[%c1_21, %c1_22, %c0_23, %c0_24] : memref<3x3x3x8xf32, #tpu.memory_space<vmem>>, vector<1x1x3x8xf32>
    %29 = vector.shape_cast %28 : vector<1x1x3x8xf32> to vector<3x8xf32>
    %cst_25 = arith.constant dense<0.000000e+00> : vector<72x8xf32>
    %30 = tpu.matmul %27, %29, %cst_25 {dimension_numbers = #tpu.dot_dimension_numbers<[1], [0], [0], [1], [0, 0, 1, 1], [], []>} : vector<72x3xf32>, vector<3x8xf32>, vector<72x8xf32> -> vector<72x8xf32>
    %31 = arith.addf %25, %30 : vector<72x8xf32>
    %32 = vector.extract_strided_slice %0 {offsets = [0, 1, 2, 0], sizes = [2, 6, 6, 3], strides = [1, 1, 1, 1]} : vector<2x8x8x3xf32> to vector<2x6x6x3xf32>
    %33 = vector.shape_cast %32 : vector<2x6x6x3xf32> to vector<72x3xf32>
    %c1_26 = arith.constant 1 : index
    %c2_27 = arith.constant 2 : index
    %c0_28 = arith.constant 0 : index
    %c0_29 = arith.constant 0 : index
    %34 = vector.load %arg1[%c1_26, %c2_27, %c0_28, %c0_29] : memref<3x3x3x8xf32, #tpu.memory_space<vmem>>, vector<1x1x3x8xf32>
    %35 = vector.shape_cast %34 : vector<1x1x3x8xf32> to vector<3x8xf32>
    %cst_30 = arith.constant dense<0.000000e+00> : vector<72x8xf32>
    %36 = tpu.matmul %33, %35, %cst_30 {dimension_numbers = #tpu.dot_dimension_numbers<[1], [0], [0], [1], [0, 0, 1, 1], [], []>} : vector<72x3xf32>, vector<3x8xf32>, vector<72x8xf32> -> vector<72x8xf32>
    %37 = arith.addf %31, %36 : vector<72x8xf32>
    %38 = vector.extract_strided_slice %0 {offsets = [0, 2, 0, 0], sizes = [2, 6, 6, 3], strides = [1, 1, 1, 1]} : vector<2x8x8x3xf32> to vector<2x6x6x3xf32>
    %39 = vector.shape_cast %38 : vector<2x6x6x3xf32> to vector<72x3xf32>
    %c2_31 = arith.constant 2 : index
    %c0_32 = arith.constant 0 : index
    %c0_33 = arith.constant 0 : index
    %c0_34 = arith.constant 0 : index
    %40 = vector.load %arg1[%c2_31, %c0_32, %c0_33, %c0_34] : memref<3x3x3x8xf32, #tpu.memory_space<vmem>>, vector<1x1x3x8xf32>
    %41 = vector.shape_cast %40 : vector<1x1x3x8xf32> to vector<3x8xf32>
    %cst_35 = arith.constant dense<0.000000e+00> : vector<72x8xf32>
    %42 = tpu.matmul %39, %41, %cst_35 {dimension_numbers = #tpu.dot_dimension_numbers<[1], [0], [0], [1], [0, 0, 1, 1], [], []>} : vector<72x3xf32>, vector<3x8xf32>, vector<72x8xf32> -> vector<72x8xf32>
    %43 = arith.addf %37, %42 : vector<72x8xf32>
    %44 = vector.extract_strided_slice %0 {offsets = [0, 2, 1, 0], sizes = [2, 6, 6, 3], strides = [1, 1, 1, 1]} : vector<2x8x8x3xf32> to vector<2x6x6x3xf32>
    %45 = vector.shape_cast %44 : vector<2x6x6x3xf32> to vector<72x3xf32>
    %c2_36 = arith.constant 2 : index
    %c1_37 = arith.constant 1 : index
    %c0_38 = arith.constant 0 : index
    %c0_39 = arith.constant 0 : index
    %46 = vector.load %arg1[%c2_36, %c1_37, %c0_38, %c0_39] : memref<3x3x3x8xf32, #tpu.memory_space<vmem>>, vector<1x1x3x8xf32>
    %47 = vector.shape_cast %46 : vector<1x1x3x8xf32> to vector<3x8xf32>
    %cst_40 = arith.constant dense<0.000000e+00> : vector<72x8xf32>
    %48 = tpu.matmul %45, %47, %cst_40 {dimension_numbers = #tpu.dot_dimension_numbers<[1], [0], [0], [1], [0, 0, 1, 1], [], []>} : vector<72x3xf32>, vector<3x8xf32>, vector<72x8xf32> -> vector<72x8xf32>
    %49 = arith.addf %43, %48 : vector<72x8xf32>
    %50 = vector.extract_strided_slice %0 {offsets = [0, 2, 2, 0], sizes = [2, 6, 6, 3], strides = [1, 1, 1, 1]} : vector<2x8x8x3xf32> to vector<2x6x6x3xf32>
    %51 = vector.shape_cast %50 : vector<2x6x6x3xf32> to vector<72x3xf32>
    %c2_41 = arith.constant 2 : index
    %c2_42 = arith.constant 2 : index
    %c0_43 = arith.constant 0 : index
    %c0_44 = arith.constant 0 : index
    %52 = vector.load %arg1[%c2_41, %c2_42, %c0_43, %c0_44] : memref<3x3x3x8xf32, #tpu.memory_space<vmem>>, vector<1x1x3x8xf32>
    %53 = vector.shape_cast %52 : vector<1x1x3x8xf32> to vector<3x8xf32>
    %cst_45 = arith.constant dense<0.000000e+00> : vector<72x8xf32>
    %54 = tpu.matmul %51, %53, %cst_45 {dimension_numbers = #tpu.dot_dimension_numbers<[1], [0], [0], [1], [0, 0, 1, 1], [], []>} : vector<72x3xf32>, vector<3x8xf32>, vector<72x8xf32> -> vector<72x8xf32>
    %55 = arith.addf %49, %54 : vector<72x8xf32>
    %c0_46 = arith.constant 0 : index
    %c0_47 = arith.constant 0 : index
    %56 = vector.load %arg2[%c0_46, %c0_47] : memref<1x8xf32, #tpu.memory_space<vmem>>, vector<1x8xf32>
    %57 = vector.broadcast %56 : vector<1x8xf32> to vector<72x8xf32>
    %58 = arith.addf %55, %57 : vector<72x8xf32>
    %cst_48 = arith.constant 0.000000e+00 : f32
    %59 = vector.broadcast %cst_48 : f32 to vector<72x8xf32>
    %60 = arith.maximumf %58, %59 : vector<72x8xf32>
    %61 = vector.shape_cast %60 : vector<72x8xf32> to vector<2x6x6x8xf32>
    %cst_49 = arith.constant 0.000000e+00 : f32
    %62 = vector.broadcast %cst_49 : f32 to vector<32x16xf32>
    %63 = vector.extract_strided_slice %61 {offsets = [0, 0, 0, 0], sizes = [2, 4, 4, 8], strides = [1, 1, 1, 1]} : vector<2x6x6x8xf32> to vector<2x4x4x8xf32>
    %64 = vector.shape_cast %63 : vector<2x4x4x8xf32> to vector<32x8xf32>
    %c0_50 = arith.constant 0 : index
    %c0_51 = arith.constant 0 : index
    %c0_52 = arith.constant 0 : index
    %c0_53 = arith.constant 0 : index
    %65 = vector.load %arg3[%c0_50, %c0_51, %c0_52, %c0_53] : memref<3x3x8x16xf32, #tpu.memory_space<vmem>>, vector<1x1x8x16xf32>
    %66 = vector.shape_cast %65 : vector<1x1x8x16xf32> to vector<8x16xf32>
    %cst_54 = arith.constant dense<0.000000e+00> : vector<32x16xf32>
    %67 = tpu.matmul %64, %66, %cst_54 {dimension_numbers = #tpu.dot_dimension_numbers<[1], [0], [0], [1], [0, 0, 1, 1], [], []>} : vector<32x8xf32>, vector<8x16xf32>, vector<32x16xf32> -> vector<32x16xf32>
    %68 = arith.addf %62, %67 : vector<32x16xf32>
    %69 = vector.extract_strided_slice %61 {offsets = [0, 0, 1, 0], sizes = [2, 4, 4, 8], strides = [1, 1, 1, 1]} : vector<2x6x6x8xf32> to vector<2x4x4x8xf32>
    %70 = vector.shape_cast %69 : vector<2x4x4x8xf32> to vector<32x8xf32>
    %c0_55 = arith.constant 0 : index
    %c1_56 = arith.constant 1 : index
    %c0_57 = arith.constant 0 : index
    %c0_58 = arith.constant 0 : index
    %71 = vector.load %arg3[%c0_55, %c1_56, %c0_57, %c0_58] : memref<3x3x8x16xf32, #tpu.memory_space<vmem>>, vector<1x1x8x16xf32>
    %72 = vector.shape_cast %71 : vector<1x1x8x16xf32> to vector<8x16xf32>
    %cst_59 = arith.constant dense<0.000000e+00> : vector<32x16xf32>
    %73 = tpu.matmul %70, %72, %cst_59 {dimension_numbers = #tpu.dot_dimension_numbers<[1], [0], [0], [1], [0, 0, 1, 1], [], []>} : vector<32x8xf32>, vector<8x16xf32>, vector<32x16xf32> -> vector<32x16xf32>
    %74 = arith.addf %68, %73 : vector<32x16xf32>
    %75 = vector.extract_strided_slice %61 {offsets = [0, 0, 2, 0], sizes = [2, 4, 4, 8], strides = [1, 1, 1, 1]} : vector<2x6x6x8xf32> to vector<2x4x4x8xf32>
    %76 = vector.shape_cast %75 : vector<2x4x4x8xf32> to vector<32x8xf32>
    %c0_60 = arith.constant 0 : index
    %c2_61 = arith.constant 2 : index
    %c0_62 = arith.constant 0 : index
    %c0_63 = arith.constant 0 : index
    %77 = vector.load %arg3[%c0_60, %c2_61, %c0_62, %c0_63] : memref<3x3x8x16xf32, #tpu.memory_space<vmem>>, vector<1x1x8x16xf32>
    %78 = vector.shape_cast %77 : vector<1x1x8x16xf32> to vector<8x16xf32>
    %cst_64 = arith.constant dense<0.000000e+00> : vector<32x16xf32>
    %79 = tpu.matmul %76, %78, %cst_64 {dimension_numbers = #tpu.dot_dimension_numbers<[1], [0], [0], [1], [0, 0, 1, 1], [], []>} : vector<32x8xf32>, vector<8x16xf32>, vector<32x16xf32> -> vector<32x16xf32>
    %80 = arith.addf %74, %79 : vector<32x16xf32>
    %81 = vector.extract_strided_slice %61 {offsets = [0, 1, 0, 0], sizes = [2, 4, 4, 8], strides = [1, 1, 1, 1]} : vector<2x6x6x8xf32> to vector<2x4x4x8xf32>
    %82 = vector.shape_cast %81 : vector<2x4x4x8xf32> to vector<32x8xf32>
    %c1_65 = arith.constant 1 : index
    %c0_66 = arith.constant 0 : index
    %c0_67 = arith.constant 0 : index
    %c0_68 = arith.constant 0 : index
    %83 = vector.load %arg3[%c1_65, %c0_66, %c0_67, %c0_68] : memref<3x3x8x16xf32, #tpu.memory_space<vmem>>, vector<1x1x8x16xf32>
    %84 = vector.shape_cast %83 : vector<1x1x8x16xf32> to vector<8x16xf32>
    %cst_69 = arith.constant dense<0.000000e+00> : vector<32x16xf32>
    %85 = tpu.matmul %82, %84, %cst_69 {dimension_numbers = #tpu.dot_dimension_numbers<[1], [0], [0], [1], [0, 0, 1, 1], [], []>} : vector<32x8xf32>, vector<8x16xf32>, vector<32x16xf32> -> vector<32x16xf32>
    %86 = arith.addf %80, %85 : vector<32x16xf32>
    %87 = vector.extract_strided_slice %61 {offsets = [0, 1, 1, 0], sizes = [2, 4, 4, 8], strides = [1, 1, 1, 1]} : vector<2x6x6x8xf32> to vector<2x4x4x8xf32>
    %88 = vector.shape_cast %87 : vector<2x4x4x8xf32> to vector<32x8xf32>
    %c1_70 = arith.constant 1 : index
    %c1_71 = arith.constant 1 : index
    %c0_72 = arith.constant 0 : index
    %c0_73 = arith.constant 0 : index
    %89 = vector.load %arg3[%c1_70, %c1_71, %c0_72, %c0_73] : memref<3x3x8x16xf32, #tpu.memory_space<vmem>>, vector<1x1x8x16xf32>
    %90 = vector.shape_cast %89 : vector<1x1x8x16xf32> to vector<8x16xf32>
    %cst_74 = arith.constant dense<0.000000e+00> : vector<32x16xf32>
    %91 = tpu.matmul %88, %90, %cst_74 {dimension_numbers = #tpu.dot_dimension_numbers<[1], [0], [0], [1], [0, 0, 1, 1], [], []>} : vector<32x8xf32>, vector<8x16xf32>, vector<32x16xf32> -> vector<32x16xf32>
    %92 = arith.addf %86, %91 : vector<32x16xf32>
    %93 = vector.extract_strided_slice %61 {offsets = [0, 1, 2, 0], sizes = [2, 4, 4, 8], strides = [1, 1, 1, 1]} : vector<2x6x6x8xf32> to vector<2x4x4x8xf32>
    %94 = vector.shape_cast %93 : vector<2x4x4x8xf32> to vector<32x8xf32>
    %c1_75 = arith.constant 1 : index
    %c2_76 = arith.constant 2 : index
    %c0_77 = arith.constant 0 : index
    %c0_78 = arith.constant 0 : index
    %95 = vector.load %arg3[%c1_75, %c2_76, %c0_77, %c0_78] : memref<3x3x8x16xf32, #tpu.memory_space<vmem>>, vector<1x1x8x16xf32>
    %96 = vector.shape_cast %95 : vector<1x1x8x16xf32> to vector<8x16xf32>
    %cst_79 = arith.constant dense<0.000000e+00> : vector<32x16xf32>
    %97 = tpu.matmul %94, %96, %cst_79 {dimension_numbers = #tpu.dot_dimension_numbers<[1], [0], [0], [1], [0, 0, 1, 1], [], []>} : vector<32x8xf32>, vector<8x16xf32>, vector<32x16xf32> -> vector<32x16xf32>
    %98 = arith.addf %92, %97 : vector<32x16xf32>
    %99 = vector.extract_strided_slice %61 {offsets = [0, 2, 0, 0], sizes = [2, 4, 4, 8], strides = [1, 1, 1, 1]} : vector<2x6x6x8xf32> to vector<2x4x4x8xf32>
    %100 = vector.shape_cast %99 : vector<2x4x4x8xf32> to vector<32x8xf32>
    %c2_80 = arith.constant 2 : index
    %c0_81 = arith.constant 0 : index
    %c0_82 = arith.constant 0 : index
    %c0_83 = arith.constant 0 : index
    %101 = vector.load %arg3[%c2_80, %c0_81, %c0_82, %c0_83] : memref<3x3x8x16xf32, #tpu.memory_space<vmem>>, vector<1x1x8x16xf32>
    %102 = vector.shape_cast %101 : vector<1x1x8x16xf32> to vector<8x16xf32>
    %cst_84 = arith.constant dense<0.000000e+00> : vector<32x16xf32>
    %103 = tpu.matmul %100, %102, %cst_84 {dimension_numbers = #tpu.dot_dimension_numbers<[1], [0], [0], [1], [0, 0, 1, 1], [], []>} : vector<32x8xf32>, vector<8x16xf32>, vector<32x16xf32> -> vector<32x16xf32>
    %104 = arith.addf %98, %103 : vector<32x16xf32>
    %105 = vector.extract_strided_slice %61 {offsets = [0, 2, 1, 0], sizes = [2, 4, 4, 8], strides = [1, 1, 1, 1]} : vector<2x6x6x8xf32> to vector<2x4x4x8xf32>
    %106 = vector.shape_cast %105 : vector<2x4x4x8xf32> to vector<32x8xf32>
    %c2_85 = arith.constant 2 : index
    %c1_86 = arith.constant 1 : index
    %c0_87 = arith.constant 0 : index
    %c0_88 = arith.constant 0 : index
    %107 = vector.load %arg3[%c2_85, %c1_86, %c0_87, %c0_88] : memref<3x3x8x16xf32, #tpu.memory_space<vmem>>, vector<1x1x8x16xf32>
    %108 = vector.shape_cast %107 : vector<1x1x8x16xf32> to vector<8x16xf32>
    %cst_89 = arith.constant dense<0.000000e+00> : vector<32x16xf32>
    %109 = tpu.matmul %106, %108, %cst_89 {dimension_numbers = #tpu.dot_dimension_numbers<[1], [0], [0], [1], [0, 0, 1, 1], [], []>} : vector<32x8xf32>, vector<8x16xf32>, vector<32x16xf32> -> vector<32x16xf32>
    %110 = arith.addf %104, %109 : vector<32x16xf32>
    %111 = vector.extract_strided_slice %61 {offsets = [0, 2, 2, 0], sizes = [2, 4, 4, 8], strides = [1, 1, 1, 1]} : vector<2x6x6x8xf32> to vector<2x4x4x8xf32>
    %112 = vector.shape_cast %111 : vector<2x4x4x8xf32> to vector<32x8xf32>
    %c2_90 = arith.constant 2 : index
    %c2_91 = arith.constant 2 : index
    %c0_92 = arith.constant 0 : index
    %c0_93 = arith.constant 0 : index
    %113 = vector.load %arg3[%c2_90, %c2_91, %c0_92, %c0_93] : memref<3x3x8x16xf32, #tpu.memory_space<vmem>>, vector<1x1x8x16xf32>
    %114 = vector.shape_cast %113 : vector<1x1x8x16xf32> to vector<8x16xf32>
    %cst_94 = arith.constant dense<0.000000e+00> : vector<32x16xf32>
    %115 = tpu.matmul %112, %114, %cst_94 {dimension_numbers = #tpu.dot_dimension_numbers<[1], [0], [0], [1], [0, 0, 1, 1], [], []>} : vector<32x8xf32>, vector<8x16xf32>, vector<32x16xf32> -> vector<32x16xf32>
    %116 = arith.addf %110, %115 : vector<32x16xf32>
    %c0_95 = arith.constant 0 : index
    %c0_96 = arith.constant 0 : index
    %117 = vector.load %arg4[%c0_95, %c0_96] : memref<1x16xf32, #tpu.memory_space<vmem>>, vector<1x16xf32>
    %118 = vector.broadcast %117 : vector<1x16xf32> to vector<32x16xf32>
    %119 = arith.addf %116, %118 : vector<32x16xf32>
    %cst_97 = arith.constant 0.000000e+00 : f32
    %120 = vector.broadcast %cst_97 : f32 to vector<32x16xf32>
    %121 = arith.maximumf %119, %120 : vector<32x16xf32>
    %122 = vector.shape_cast %121 : vector<32x16xf32> to vector<2x4x4x16xf32>
    %cst_98 = arith.constant 0.000000e+00 : f32
    %123 = vector.broadcast %cst_98 : f32 to vector<32x16xf32>
    %124 = vector.shape_cast %122 : vector<2x4x4x16xf32> to vector<32x16xf32>
    %c0_99 = arith.constant 0 : index
    %c0_100 = arith.constant 0 : index
    %c0_101 = arith.constant 0 : index
    %c0_102 = arith.constant 0 : index
    %125 = vector.load %arg5[%c0_99, %c0_100, %c0_101, %c0_102] : memref<1x1x16x16xf32, #tpu.memory_space<vmem>>, vector<1x1x16x16xf32>
    %126 = vector.shape_cast %125 : vector<1x1x16x16xf32> to vector<16x16xf32>
    %cst_103 = arith.constant dense<0.000000e+00> : vector<32x16xf32>
    %127 = tpu.matmul %124, %126, %cst_103 {dimension_numbers = #tpu.dot_dimension_numbers<[1], [0], [0], [1], [0, 0, 1, 1], [], []>} : vector<32x16xf32>, vector<16x16xf32>, vector<32x16xf32> -> vector<32x16xf32>
    %128 = arith.addf %123, %127 : vector<32x16xf32>
    %c0_104 = arith.constant 0 : index
    %c0_105 = arith.constant 0 : index
    %129 = vector.load %arg6[%c0_104, %c0_105] : memref<1x16xf32, #tpu.memory_space<vmem>>, vector<1x16xf32>
    %130 = vector.broadcast %129 : vector<1x16xf32> to vector<32x16xf32>
    %131 = arith.addf %128, %130 : vector<32x16xf32>
    %132 = vector.shape_cast %131 : vector<32x16xf32> to vector<2x4x4x16xf32>
    %c0_106 = arith.constant 0 : index
    %c0_107 = arith.constant 0 : index
    %c0_108 = arith.constant 0 : index
    %c0_109 = arith.constant 0 : index
    %133 = vector.load %arg7[%c0_106, %c0_107, %c0_108, %c0_109] : memref<2x4x4x16xf32, #tpu.memory_space<vmem>>, vector<2x4x4x16xf32>
    tpu.vector_store %arg7[%c0_106, %c0_107, %c0_108, %c0_109], %132 {strides = array<i32>} : memref<2x4x4x16xf32, #tpu.memory_space<vmem>>, vector<2x4x4x16xf32>,
    return
  }
}

</mosaic_0001>

<llo_original>
// kernel: temple.1
$region0: #{temple.1}
  #allocation0 [shape = 'u32[]', space=smem, size = 0x4, offset = 0x4, fixed_abs, tag = 'smem constant byte address 0x4 - core index']
  #allocation1 [shape = 'u32[144,128]{1,0:T(1,128)}', space=vmem, size = 0x12000, scoped, tag = 'internal scratch']
  %s0 = inlined_call_operand.vmem [shape: f32[2,8,8,3], index: 0, kind: input, shape index: {}]
  %s1 = inlined_call_operand.vmem [shape: f32[3,3,3,8], index: 1, kind: input, shape index: {}]
  %s2 = inlined_call_operand.vmem [shape: f32[1,8], index: 2, kind: input, shape index: {}]
  %s3 = inlined_call_operand.vmem [shape: f32[3,3,8,16], index: 3, kind: input, shape index: {}]
  %s4 = inlined_call_operand.vmem [shape: f32[1,16], index: 4, kind: input, shape index: {}]
  %s5 = inlined_call_operand.vmem [shape: f32[1,1,16,16], index: 5, kind: input, shape index: {}]
  %s6 = inlined_call_operand.vmem [shape: f32[1,16], index: 6, kind: input, shape index: {}]
  %s7 = inlined_call_operand.hbm [shape: f32[2,4,4,16], index: 7, kind: output, shape index: {}]
  %s8 = sld [smem:[#allocation0]]
  $region38: #{temple.1} parent=0
    _
  %s10 = ssub.s32 1, %s8
  %s11 = scalar_select 0, %s10, %s8
  $region1: #{temple.1} parent=0
    #allocation2 [shape = 'u8[16384]{0}', space=vmem, size = 0x4000, scoped, tag = 'output window, operand 0, single buffered']
    #allocation3 [shape = 's32[1]{0}', space=sflag, size = 0x4, scoped, tag = 'scoped memory for temple.1']
    %12 = vsyncpa [#allocation3], 0
    // Predicated region
    $region2: #{temple.1} parent=1 // pred_check
      _
    $region3: #{temple.1} parent=1 // pred_check_branch
      %14 = sbr.rel (0) target = $region5
    $region4: #{temple.1} parent=1 // pred_region
      _
    $region5: #{temple.1} parent=1 // pred_fallthru
      _
    // Predicated region
    $region6: #{temple.1} parent=1 // pred_check
      _
    $region7: #{temple.1} parent=1 // pred_check_branch
      %16 = sbr.rel (0) target = $region9
    $region8: #{temple.1} parent=1 // pred_region
      _
    $region9: #{temple.1} parent=1 // pred_fallthru
      _
    // Predicated region
    $region10: #{temple.1} parent=1 // pred_check
      _
    $region11: #{temple.1} parent=1 // pred_check_branch
      %18 = sbr.rel (0) target = $region13
    $region12: #{temple.1} parent=1 // pred_region
      _
    $region13: #{temple.1} parent=1 // pred_fallthru
      _
    // Predicated region
    $region14: #{temple.1} parent=1 // pred_check
      _
    $region15: #{temple.1} parent=1 // pred_check_branch
      %20 = sbr.rel (0) target = $region17
    $region16: #{temple.1} parent=1 // pred_region
      _
    $region17: #{temple.1} parent=1 // pred_fallthru
      _
    // Predicated region
    $region18: #{temple.1} parent=1 // pred_check
      _
    $region19: #{temple.1} parent=1 // pred_check_branch
      %22 = sbr.rel (0) target = $region21
    $region20: #{temple.1} parent=1 // pred_region
      _
    $region21: #{temple.1} parent=1 // pred_fallthru
      _
    // Predicated region
    $region22: #{temple.1} parent=1 // pred_check
      _
    $region23: #{temple.1} parent=1 // pred_check_branch
      %24 = sbr.rel (0) target = $region25
    $region24: #{temple.1} parent=1 // pred_region
      _
    $region25: #{temple.1} parent=1 // pred_fallthru
      _
    // Predicated region
    $region26: #{temple.1} parent=1 // pred_check
      _
    $region27: #{temple.1} parent=1 // pred_check_branch
      %26 = sbr.rel (0) target = $region29
    $region28: #{temple.1} parent=1 // pred_region
      _
    $region29: #{temple.1} parent=1 // pred_fallthru
      _
    %v27 = vld [vmem:[%s0] sm:$0xff]
    %v28 = vld [vmem:[%s0 + $0x8] sm:$0xff]
    %v29 = vld [vmem:[%s0 + $0x10] sm:$0xff]
    %v30 = vld [vmem:[%s0 + $0x18] sm:$0xff]
    %v31 = vld [vmem:[%s0 + $0x20] sm:$0xff]
    %v32 = vld [vmem:[%s0 + $0x28] sm:$0xff]
    %v33 = vld [vmem:[%s0 + $0x30] sm:$0xff]
    %v34 = vld [vmem:[%s0 + $0x38] sm:$0xff]
    %v35 = vld [vmem:[%s0 + $0x40] sm:$0xff]
    %v36 = vld [vmem:[%s0 + $0x48] sm:$0xff]
    %v37 = vld [vmem:[%s0 + $0x50] sm:$0xff]
    %v38 = vld [vmem:[%s0 + $0x58] sm:$0xff]
    %v39 = vld [vmem:[%s0 + $0x60] sm:$0xff]
    %v40 = vld [vmem:[%s0 + $0x68] sm:$0xff]
    %v41 = vld [vmem:[%s0 + $0x70] sm:$0xff]
    %v42 = vld [vmem:[%s0 + $0x78] sm:$0xff]
    %v55 = vcombine.high %v27, %v27
    %v57 = vunpack.c.l.s4 1983009808
    %v58 = vunpack.c.0.s8 %v57
    %v59 = vlaneseq
    %v60 = vshrl.u32 %v59, 7
    %v61 = vsub.s32 %v58, %v60
    %v62 = vrot.slane %v27, %v61
    %v64 = vunpack.c.l.s4 1983009808
    %v65 = vunpack.c.0.s8 %v64
    %v66 = vlaneseq
    %v67 = vshrl.u32 %v66, 7
    %v68 = vsub.s32 %v65, %v67
    %v69 = vrot.slane %v55, %v68
    %v70 = vcombine.high %v62, %v62
    %v71 = vcombine.high %v28, %v28
    %v73 = vunpack.c.l.s4 1983009808
    %v74 = vunpack.c.0.s8 %v73
    %v75 = vlaneseq
    %v76 = vshrl.u32 %v75, 7
    %v77 = vsub.s32 %v74, %v76
    %v78 = vrot.slane %v28, %v77
    %v80 = vunpack.c.l.s4 1983009808
    %v81 = vunpack.c.0.s8 %v80
    %v82 = vlaneseq
    %v83 = vshrl.u32 %v82, 7
    %v84 = vsub.s32 %v81, %v83
    %v85 = vrot.slane %v71, %v84
    %v86 = vcombine.high %v78, %v78
    %v87 = vcombine.high %v29, %v29
    %v89 = vunpack.c.l.s4 1983009808
    %v90 = vunpack.c.0.s8 %v89
    %v91 = vlaneseq
    %v92 = vshrl.u32 %v91, 7
    %v93 = vsub.s32 %v90, %v92
    %v94 = vrot.slane %v29, %v93
    %v96 = vunpack.c.l.s4 1983009808
    %v97 = vunpack.c.0.s8 %v96
    %v98 = vlaneseq
    %v99 = vshrl.u32 %v98, 7
    %v100 = vsub.s32 %v97, %v99
    %v101 = vrot.slane %v87, %v100
    %v102 = vcombine.high %v94, %v94
    %v103 = vcombine.high %v30, %v30
    %v105 = vunpack.c.l.s4 1983009808
    %v106 = vunpack.c.0.s8 %v105
    %v107 = vlaneseq
    %v108 = vshrl.u32 %v107, 7
    %v109 = vsub.s32 %v106, %v108
    %v110 = vrot.slane %v30, %v109
    %v112 = vunpack.c.l.s4 1983009808
    %v113 = vunpack.c.0.s8 %v112
    %v114 = vlaneseq
    %v115 = vshrl.u32 %v114, 7
    %v116 = vsub.s32 %v113, %v115
    %v117 = vrot.slane %v103, %v116
    %v118 = vcombine.high %v110, %v110
    %v119 = vcombine.high %v31, %v31
    %v121 = vunpack.c.l.s4 1983009808
    %v122 = vunpack.c.0.s8 %v121
    %v123 = vlaneseq
    %v124 = vshrl.u32 %v123, 7
    %v125 = vsub.s32 %v122, %v124
    %v126 = vrot.slane %v31, %v125
    %v128 = vunpack.c.l.s4 1983009808
    %v129 = vunpack.c.0.s8 %v128
    %v130 = vlaneseq
    %v131 = vshrl.u32 %v130, 7
    %v132 = vsub.s32 %v129, %v131
    %v133 = vrot.slane %v119, %v132
    %v134 = vcombine.high %v126, %v126
    %v135 = vcombine.high %v32, %v32
    %v137 = vunpack.c.l.s4 1983009808
    %v138 = vunpack.c.0.s8 %v137
    %v139 = vlaneseq
    %v140 = vshrl.u32 %v139, 7
    %v141 = vsub.s32 %v138, %v140
    %v142 = vrot.slane %v32, %v141
    %v144 = vunpack.c.l.s4 1983009808
    %v145 = vunpack.c.0.s8 %v144
    %v146 = vlaneseq
    %v147 = vshrl.u32 %v146, 7
    %v148 = vsub.s32 %v145, %v147
    %v149 = vrot.slane %v135, %v148
    %v150 = vcombine.high %v142, %v142
    %v151 = vcombine.high %v35, %v35
    %v153 = vunpack.c.l.s4 1983009808
    %v154 = vunpack.c.0.s8 %v153
    %v155 = vlaneseq
    %v156 = vshrl.u32 %v155, 7
    %v157 = vsub.s32 %v154, %v156
    %v158 = vrot.slane %v35, %v157
    %v160 = vunpack.c.l.s4 1983009808
    %v161 = vunpack.c.0.s8 %v160
    %v162 = vlaneseq
    %v163 = vshrl.u32 %v162, 7
    %v164 = vsub.s32 %v161, %v163
    %v165 = vrot.slane %v151, %v164
    %v166 = vcombine.high %v158, %v158
    %v167 = vcombine.high %v36, %v36
    %v169 = vunpack.c.l.s4 1983009808
    %v170 = vunpack.c.0.s8 %v169
    %v171 = vlaneseq
    %v172 = vshrl.u32 %v171, 7
    %v173 = vsub.s32 %v170, %v172
    %v174 = vrot.slane %v36, %v173
    %v176 = vunpack.c.l.s4 1983009808
    %v177 = vunpack.c.0.s8 %v176
    %v178 = vlaneseq
    %v179 = vshrl.u32 %v178, 7
    %v180 = vsub.s32 %v177, %v179
    %v181 = vrot.slane %v167, %v180
    %v182 = vcombine.high %v174, %v174
    %v183 = vcombine.high %v37, %v37
    %v185 = vunpack.c.l.s4 1983009808
    %v186 = vunpack.c.0.s8 %v185
    %v187 = vlaneseq
    %v188 = vshrl.u32 %v187, 7
    %v189 = vsub.s32 %v186, %v188
    %v190 = vrot.slane %v37, %v189
    %v192 = vunpack.c.l.s4 1983009808
    %v193 = vunpack.c.0.s8 %v192
    %v194 = vlaneseq
    %v195 = vshrl.u32 %v194, 7
    %v196 = vsub.s32 %v193, %v195
    %v197 = vrot.slane %v183, %v196
    %v198 = vcombine.high %v190, %v190
    %v199 = vcombine.high %v38, %v38
    %v201 = vunpack.c.l.s4 1983009808
    %v202 = vunpack.c.0.s8 %v201
    %v203 = vlaneseq
    %v204 = vshrl.u32 %v203, 7
    %v205 = vsub.s32 %v202, %v204
    %v206 = vrot.slane %v38, %v205
    %v208 = vunpack.c.l.s4 1983009808
    %v209 = vunpack.c.0.s8 %v208
    %v210 = vlaneseq
    %v211 = vshrl.u32 %v210, 7
    %v212 = vsub.s32 %v209, %v211
    %v213 = vrot.slane %v199, %v212
    %v214 = vcombine.high %v206, %v206
    %v215 = vcombine.high %v39, %v39
    %v217 = vunpack.c.l.s4 1983009808
    %v218 = vunpack.c.0.s8 %v217
    %v219 = vlaneseq
    %v220 = vshrl.u32 %v219, 7
    %v221 = vsub.s32 %v218, %v220
    %v222 = vrot.slane %v39, %v221
    %v224 = vunpack.c.l.s4 1983009808
    %v225 = vunpack.c.0.s8 %v224
    %v226 = vlaneseq
    %v227 = vshrl.u32 %v226, 7
    %v228 = vsub.s32 %v225, %v227
    %v229 = vrot.slane %v215, %v228
    %v230 = vcombine.high %v222, %v222
    %v231 = vcombine.high %v40, %v40
    %v233 = vunpack.c.l.s4 1983009808
    %v234 = vunpack.c.0.s8 %v233
    %v235 = vlaneseq
    %v236 = vshrl.u32 %v235, 7
    %v237 = vsub.s32 %v234, %v236
    %v238 = vrot.slane %v40, %v237
    %v240 = vunpack.c.l.s4 1983009808
    %v241 = vunpack.c.0.s8 %v240
    %v242 = vlaneseq
    %v243 = vshrl.u32 %v242, 7
    %v244 = vsub.s32 %v241, %v243
    %v245 = vrot.slane %v231, %v244
    %v246 = vcombine.high %v238, %v238
    %v247 = vld [vmem:[%s1] sm:$0x7]
    %v248 = vcombine.high %v69, %v69
    %v249 = vcombine.high %v85, %v85
    %v250 = vcombine.high %v101, %v101
    %v251 = vcombine.high %v117, %v117
    %v252 = vcombine.high %v133, %v133
    %v253 = vcombine.high %v149, %v149
    %v254 = vcombine.high %v165, %v165
    %v255 = vcombine.high %v181, %v181
    %v256 = vcombine.high %v197, %v197
    %v257 = vcombine.high %v213, %v213
    %v258 = vcombine.high %v229, %v229
    %v259 = vcombine.high %v245, %v245
    %vm260 = vcmask 1040384
    %vm261 = vcmask 1042434
    %vm262 = vmor %vm260, %vm261
    %vm263 = vcmask 1044484
    %vm264 = vmor %vm262, %vm263
    %vm265 = vcmask 1046534
    %vm266 = vmor %vm264, %vm265
    %v267 = vrot.slane %v62, 7
    %v268 = vrot.slane %v267, 2
    %v269 = vrot.slane %v70, 7
    %v270 = vsel %vm266, %v268, %v269
    %v271 = vrot.slane %v269, 2
    %v272 = vrot.slane %v69, 7
    %v273 = vsel %vm266, %v271, %v272
    %v274 = vrot.slane %v272, 2
    %v275 = vrot.slane %v248, 7
    %v276 = vsel %vm266, %v274, %v275
    %v277 = vrot.slane %v78, 7
    %v278 = vrot.slane %v277, 2
    %v279 = vrot.slane %v86, 7
    %v280 = vsel %vm266, %v278, %v279
    %v281 = vrot.slane %v279, 2
    %v282 = vrot.slane %v85, 7
    %v283 = vsel %vm266, %v281, %v282
    %v284 = vrot.slane %v282, 2
    %v285 = vrot.slane %v249, 7
    %v286 = vsel %vm266, %v284, %v285
    %v287 = vrot.slane %v94, 7
    %v288 = vrot.slane %v287, 2
    %v289 = vrot.slane %v102, 7
    %v290 = vsel %vm266, %v288, %v289
    %v291 = vrot.slane %v289, 2
    %v292 = vrot.slane %v101, 7
    %v293 = vsel %vm266, %v291, %v292
    %v294 = vrot.slane %v292, 2
    %v295 = vrot.slane %v250, 7
    %v296 = vsel %vm266, %v294, %v295
    %v297 = vrot.slane %v110, 7
    %v298 = vrot.slane %v297, 2
    %v299 = vrot.slane %v118, 7
    %v300 = vsel %vm266, %v298, %v299
    %v301 = vrot.slane %v299, 2
    %v302 = vrot.slane %v117, 7
    %v303 = vsel %vm266, %v301, %v302
    %v304 = vrot.slane %v302, 2
    %v305 = vrot.slane %v251, 7
    %v306 = vsel %vm266, %v304, %v305
    %v307 = vrot.slane %v126, 7
    %v308 = vrot.slane %v307, 2
    %v309 = vrot.slane %v134, 7
    %v310 = vsel %vm266, %v308, %v309
    %v311 = vrot.slane %v309, 2
    %v312 = vrot.slane %v133, 7
    %v313 = vsel %vm266, %v311, %v312
    %v314 = vrot.slane %v312, 2
    %v315 = vrot.slane %v252, 7
    %v316 = vsel %vm266, %v314, %v315
    %v317 = vrot.slane %v142, 7
    %v318 = vrot.slane %v317, 2
    %v319 = vrot.slane %v150, 7
    %v320 = vsel %vm266, %v318, %v319
    %v321 = vrot.slane %v319, 2
    %v322 = vrot.slane %v149, 7
    %v323 = vsel %vm266, %v321, %v322
    %v324 = vrot.slane %v322, 2
    %v325 = vrot.slane %v253, 7
    %v326 = vsel %vm266, %v324, %v325
    %v327 = vrot.slane %v158, 7
    %v328 = vrot.slane %v327, 2
    %v329 = vrot.slane %v166, 7
    %v330 = vsel %vm266, %v328, %v329
    %v331 = vrot.slane %v329, 2
    %v332 = vrot.slane %v165, 7
    %v333 = vsel %vm266, %v331, %v332
    %v334 = vrot.slane %v332, 2
    %v335 = vrot.slane %v254, 7
    %v336 = vsel %vm266, %v334, %v335
    %v337 = vrot.slane %v174, 7
    %v338 = vrot.slane %v337, 2
    %v339 = vrot.slane %v182, 7
    %v340 = vsel %vm266, %v338, %v339
    %v341 = vrot.slane %v339, 2
    %v342 = vrot.slane %v181, 7
    %v343 = vsel %vm266, %v341, %v342
    %v344 = vrot.slane %v342, 2
    %v345 = vrot.slane %v255, 7
    %v346 = vsel %vm266, %v344, %v345
    %v347 = vrot.slane %v190, 7
    %v348 = vrot.slane %v347, 2
    %v349 = vrot.slane %v198, 7
    %v350 = vsel %vm266, %v348, %v349
    %v351 = vrot.slane %v349, 2
    %v352 = vrot.slane %v197, 7
    %v353 = vsel %vm266, %v351, %v352
    %v354 = vrot.slane %v352, 2
    %v355 = vrot.slane %v256, 7
    %v356 = vsel %vm266, %v354, %v355
    %v357 = vrot.slane %v206, 7
    %v358 = vrot.slane %v357, 2
    %v359 = vrot.slane %v214, 7
    %v360 = vsel %vm266, %v358, %v359
    %v361 = vrot.slane %v359, 2
    %v362 = vrot.slane %v213, 7
    %v363 = vsel %vm266, %v361, %v362
    %v364 = vrot.slane %v362, 2
    %v365 = vrot.slane %v257, 7
    %v366 = vsel %vm266, %v364, %v365
    %v367 = vrot.slane %v222, 7
    %v368 = vrot.slane %v367, 2
    %v369 = vrot.slane %v230, 7
    %v370 = vsel %vm266, %v368, %v369
    %v371 = vrot.slane %v369, 2
    %v372 = vrot.slane %v229, 7
    %v373 = vsel %vm266, %v371, %v372
    %v374 = vrot.slane %v372, 2
    %v375 = vrot.slane %v258, 7
    %v376 = vsel %vm266, %v374, %v375
    %v377 = vrot.slane %v238, 7
    %v378 = vrot.slane %v377, 2
    %v379 = vrot.slane %v246, 7
    %v380 = vsel %vm266, %v378, %v379
    %v381 = vrot.slane %v379, 2
    %v382 = vrot.slane %v245, 7
    %v383 = vsel %vm266, %v381, %v382
    %v384 = vrot.slane %v382, 2
    %v385 = vrot.slane %v259, 7
    %v386 = vsel %vm266, %v384, %v385
    %s387 = scalar_lea.vmem %s1, 4
    %v388 = vld [vmem:[%s387] sm:$0x7]
    %v389 = vcombine.low %v270, %v273
    %v390 = vcombine.low %v276, %v280
    %v392 = vunpack.c.l.s4 1983009808
    %v393 = vunpack.c.0.s8 %v392
    %v394 = vlaneseq
    %v395 = vshrl.u32 %v394, 7
    %v396 = vsub.s32 %v393, %v395
    %v397 = vrot.slane %v389, %v396
    %v399 = vunpack.c.l.s4 1983009808
    %v400 = vunpack.c.0.s8 %v399
    %v401 = vlaneseq
    %v402 = vshrl.u32 %v401, 7
    %v403 = vsub.s32 %v400, %v402
    %v404 = vrot.slane %v390, %v403
    %v405 = vcombine.low %v397, %v404
    %v406 = vcombine.low %v283, %v286
    %v407 = vcombine.low %v290, %v293
    %v409 = vunpack.c.l.s4 1983009808
    %v410 = vunpack.c.0.s8 %v409
    %v411 = vlaneseq
    %v412 = vshrl.u32 %v411, 7
    %v413 = vsub.s32 %v410, %v412
    %v414 = vrot.slane %v406, %v413
    %v416 = vunpack.c.l.s4 1983009808
    %v417 = vunpack.c.0.s8 %v416
    %v418 = vlaneseq
    %v419 = vshrl.u32 %v418, 7
    %v420 = vsub.s32 %v417, %v419
    %v421 = vrot.slane %v407, %v420
    %v422 = vcombine.low %v414, %v421
    %v423 = vcombine.low %v296, %v300
    %v424 = vcombine.low %v303, %v306
    %v426 = vunpack.c.l.s4 1983009808
    %v427 = vunpack.c.0.s8 %v426
    %v428 = vlaneseq
    %v429 = vshrl.u32 %v428, 7
    %v430 = vsub.s32 %v427, %v429
    %v431 = vrot.slane %v423, %v430
    %v433 = vunpack.c.l.s4 1983009808
    %v434 = vunpack.c.0.s8 %v433
    %v435 = vlaneseq
    %v436 = vshrl.u32 %v435, 7
    %v437 = vsub.s32 %v434, %v436
    %v438 = vrot.slane %v424, %v437
    %v439 = vcombine.low %v431, %v438
    %v440 = vcombine.low %v310, %v313
    %v441 = vcombine.low %v316, %v320
    %v443 = vunpack.c.l.s4 1983009808
    %v444 = vunpack.c.0.s8 %v443
    %v445 = vlaneseq
    %v446 = vshrl.u32 %v445, 7
    %v447 = vsub.s32 %v444, %v446
    %v448 = vrot.slane %v440, %v447
    %v450 = vunpack.c.l.s4 1983009808
    %v451 = vunpack.c.0.s8 %v450
    %v452 = vlaneseq
    %v453 = vshrl.u32 %v452, 7
    %v454 = vsub.s32 %v451, %v453
    %v455 = vrot.slane %v441, %v454
    %v456 = vcombine.low %v448, %v455
    %v457 = vcombine.low %v323, %v326
    %v458 = vcombine.low %v330, %v333
    %v460 = vunpack.c.l.s4 1983009808
    %v461 = vunpack.c.0.s8 %v460
    %v462 = vlaneseq
    %v463 = vshrl.u32 %v462, 7
    %v464 = vsub.s32 %v461, %v463
    %v465 = vrot.slane %v457, %v464
    %v467 = vunpack.c.l.s4 1983009808
    %v468 = vunpack.c.0.s8 %v467
    %v469 = vlaneseq
    %v470 = vshrl.u32 %v469, 7
    %v471 = vsub.s32 %v468, %v470
    %v472 = vrot.slane %v458, %v471
    %v473 = vcombine.low %v465, %v472
    %v474 = vcombine.low %v336, %v340
    %v475 = vcombine.low %v343, %v346
    %v477 = vunpack.c.l.s4 1983009808
    %v478 = vunpack.c.0.s8 %v477
    %v479 = vlaneseq
    %v480 = vshrl.u32 %v479, 7
    %v481 = vsub.s32 %v478, %v480
    %v482 = vrot.slane %v474, %v481
    %v484 = vunpack.c.l.s4 1983009808
    %v485 = vunpack.c.0.s8 %v484
    %v486 = vlaneseq
    %v487 = vshrl.u32 %v486, 7
    %v488 = vsub.s32 %v485, %v487
    %v489 = vrot.slane %v475, %v488
    %v490 = vcombine.low %v482, %v489
    %v491 = vcombine.low %v350, %v353
    %v492 = vcombine.low %v356, %v360
    %v494 = vunpack.c.l.s4 1983009808
    %v495 = vunpack.c.0.s8 %v494
    %v496 = vlaneseq
    %v497 = vshrl.u32 %v496, 7
    %v498 = vsub.s32 %v495, %v497
    %v499 = vrot.slane %v491, %v498
    %v501 = vunpack.c.l.s4 1983009808
    %v502 = vunpack.c.0.s8 %v501
    %v503 = vlaneseq
    %v504 = vshrl.u32 %v503, 7
    %v505 = vsub.s32 %v502, %v504
    %v506 = vrot.slane %v492, %v505
    %v507 = vcombine.low %v499, %v506
    %v508 = vcombine.low %v363, %v366
    %v509 = vcombine.low %v370, %v373
    %v511 = vunpack.c.l.s4 1983009808
    %v512 = vunpack.c.0.s8 %v511
    %v513 = vlaneseq
    %v514 = vshrl.u32 %v513, 7
    %v515 = vsub.s32 %v512, %v514
    %v516 = vrot.slane %v508, %v515
    %v518 = vunpack.c.l.s4 1983009808
    %v519 = vunpack.c.0.s8 %v518
    %v520 = vlaneseq
    %v521 = vshrl.u32 %v520, 7
    %v522 = vsub.s32 %v519, %v521
    %v523 = vrot.slane %v509, %v522
    %v524 = vcombine.low %v516, %v523
    %v525 = vcombine.low %v376, %v380
    %v526 = vcombine.low %v383, %v386
    %v528 = vunpack.c.l.s4 1983009808
    %v529 = vunpack.c.0.s8 %v528
    %v530 = vlaneseq
    %v531 = vshrl.u32 %v530, 7
    %v532 = vsub.s32 %v529, %v531
    %v533 = vrot.slane %v525, %v532
    %v535 = vunpack.c.l.s4 1983009808
    %v536 = vunpack.c.0.s8 %v535
    %v537 = vlaneseq
    %v538 = vshrl.u32 %v537, 7
    %v539 = vsub.s32 %v536, %v538
    %v540 = vrot.slane %v526, %v539
    %v541 = vcombine.low %v533, %v540
    %vm542 = vcmask 23552
    %v543 = vsel %vm542, %v405, 0
    %v545 = vsel %vm542, %v422, 0
    %v547 = vsel %vm542, %v439, 0
    %v549 = vsel %vm542, %v456, 0
    %v551 = vsel %vm542, %v473, 0
    %v553 = vsel %vm542, %v490, 0
    %v555 = vsel %vm542, %v507, 0
    %v557 = vsel %vm542, %v524, 0
    %v559 = vsel %vm542, %v541, 0
    %vm561 = vcmask 1042432
    %v563 = vsel %vm561, %v388, 0
    %565 = vmatprep.subr.mxu0 0.0
    %566 = vmatpush1.msra.mxu0 %v563
    %567 = vmatprep.subr.mxu0 0.0
    %568 = vmatpush1.msra.mxu0 0.0
    %569 = vmatprep.subr.mxu0 0.0
    %570 = vmatpush1.msra.mxu0 0.0
    %571 = vmatprep.subr.mxu0 0.0
    %572 = vmatpush1.msra.mxu0 0.0
    %573 = vmatprep.subr.mxu0 0.0
    %574 = vmatpush1.msra.mxu0 0.0
    %575 = vmatprep.subr.mxu0 0.0
    %576 = vmatpush1.msra.mxu0 0.0
    %577 = vmatprep.subr.mxu0 0.0
    %578 = vmatpush1.msra.mxu0 0.0
    %579 = vmatprep.subr.mxu0 0.0
    %580 = vmatpush1.msra.mxu0 0.0
    %581 = vmatprep.subr.mxu0 0.0
    %582 = vmatpush1.msra.mxu0 0.0
    %583 = vmatprep.subr.mxu0 0.0
    %584 = vmatpush1.msra.mxu0 0.0
    %585 = vmatprep.subr.mxu0 0.0
    %586 = vmatpush1.msra.mxu0 0.0
    %587 = vmatprep.subr.mxu0 0.0
    %588 = vmatpush1.msra.mxu0 0.0
    %589 = vmatprep.subr.mxu0 0.0
    %590 = vmatpush1.msra.mxu0 0.0
    %591 = vmatprep.subr.mxu0 0.0
    %592 = vmatpush1.msra.mxu0 0.0
    %593 = vmatprep.subr.mxu0 0.0
    %594 = vmatpush1.msra.mxu0 0.0
    %595 = vmatprep.subr.mxu0 0.0
    %596 = vmatpush1.msra.mxu0 0.0
    %597 = vmatprep.subr.mxu0 0.0
    %598 = vmatpush1.msra.mxu0 0.0
    %599 = vmatprep.subr.mxu0 0.0
    %600 = vmatpush1.msra.mxu0 0.0
    %601 = vmatprep.subr.mxu0 0.0
    %602 = vmatpush1.msra.mxu0 0.0
    %603 = vmatprep.subr.mxu0 0.0
    %604 = vmatpush1.msra.mxu0 0.0
    %605 = vmatprep.subr.mxu0 0.0
    %606 = vmatpush1.msra.mxu0 0.0
    %607 = vmatprep.subr.mxu0 0.0
    %608 = vmatpush1.msra.mxu0 0.0
    %609 = vmatprep.subr.mxu0 0.0
    %610 = vmatpush1.msra.mxu0 0.0
    %611 = vmatprep.subr.mxu0 0.0
    %612 = vmatpush1.msra.mxu0 0.0
    %613 = vmatprep.subr.mxu0 0.0
    %614 = vmatpush1.msra.mxu0 0.0
    %615 = vmatprep.subr.mxu0 0.0
    %616 = vmatpush1.msra.mxu0 0.0
    %617 = vmatprep.subr.mxu0 0.0
    %618 = vmatpush1.msra.mxu0 0.0
    %619 = vmatprep.subr.mxu0 0.0
    %620 = vmatpush1.msra.mxu0 0.0
    %621 = vmatprep.subr.mxu0 0.0
    %622 = vmatpush1.msra.mxu0 0.0
    %623 = vmatprep.subr.mxu0 0.0
    %624 = vmatpush1.msra.mxu0 0.0
    %625 = vmatprep.subr.mxu0 0.0
    %626 = vmatpush1.msra.mxu0 0.0
    %627 = vmatprep.subr.mxu0 0.0
    %628 = vmatpush1.msra.mxu0 0.0
    %629 = vmatprep.mubr.f32.mxu0 0.0
    %630 = vmatmul.mubr.f32.gmra.mrb[0].mxu0 %v543
    %v631 = vpop.f32.mrb[0].mxu0
    %v632 = vadd.f32 0.0, %v631
    %v633 = vpop.f32.mrb[0].mxu0
    %634 = vmatprep.mubr.f32.mxu0 0.0
    %635 = vmatmul.mubr.f32.gmra.mrb[0].mxu0 %v545
    %v636 = vpop.f32.mrb[0].mxu0
    %v637 = vadd.f32 0.0, %v636
    %v638 = vpop.f32.mrb[0].mxu0
    %639 = vmatprep.mubr.f32.mxu0 0.0
    %640 = vmatmul.mubr.f32.gmra.mrb[0].mxu0 %v547
    %v641 = vpop.f32.mrb[0].mxu0
    %v642 = vadd.f32 0.0, %v641
    %v643 = vpop.f32.mrb[0].mxu0
    %644 = vmatprep.mubr.f32.mxu0 0.0
    %645 = vmatmul.mubr.f32.gmra.mrb[0].mxu0 %v549
    %v646 = vpop.f32.mrb[0].mxu0
    %v647 = vadd.f32 0.0, %v646
    %v648 = vpop.f32.mrb[0].mxu0
    %649 = vmatprep.mubr.f32.mxu0 0.0
    %650 = vmatmul.mubr.f32.gmra.mrb[0].mxu0 %v551
    %v651 = vpop.f32.mrb[0].mxu0
    %v652 = vadd.f32 0.0, %v651
    %v653 = vpop.f32.mrb[0].mxu0
    %654 = vmatprep.mubr.f32.mxu0 0.0
    %655 = vmatmul.mubr.f32.gmra.mrb[0].mxu0 %v553
    %v656 = vpop.f32.mrb[0].mxu0
    %v657 = vadd.f32 0.0, %v656
    %v658 = vpop.f32.mrb[0].mxu0
    %659 = vmatprep.mubr.f32.mxu0 0.0
    %660 = vmatmul.mubr.f32.gmra.mrb[0].mxu0 %v555
    %v661 = vpop.f32.mrb[0].mxu0
    %v662 = vadd.f32 0.0, %v661
    %v663 = vpop.f32.mrb[0].mxu0
    %664 = vmatprep.mubr.f32.mxu0 0.0
    %665 = vmatmul.mubr.f32.gmra.mrb[0].mxu0 %v557
    %v666 = vpop.f32.mrb[0].mxu0
    %v667 = vadd.f32 0.0, %v666
    %v668 = vpop.f32.mrb[0].mxu0
    %669 = vmatprep.mubr.f32.mxu0 0.0
    %670 = vmatmul.mubr.f32.gmra.mrb[0].mxu0 %v559
    %v671 = vpop.f32.mrb[0].mxu0
    %v672 = vadd.f32 0.0, %v671
    %v673 = vpop.f32.mrb[0].mxu0
    %674 = vdwg.mxu0
    %v675 = vcombine.low %v62, %v70
    %v676 = vcombine.low %v69, %v78
    %v678 = vunpack.c.l.s4 1983009808
    %v679 = vunpack.c.0.s8 %v678
    %v680 = vlaneseq
    %v681 = vshrl.u32 %v680, 7
    %v682 = vsub.s32 %v679, %v681
    %v683 = vrot.slane %v675, %v682
    %v685 = vunpack.c.l.s4 1983009808
    %v686 = vunpack.c.0.s8 %v685
    %v687 = vlaneseq
    %v688 = vshrl.u32 %v687, 7
    %v689 = vsub.s32 %v686, %v688
    %v690 = vrot.slane %v676, %v689
    %v691 = vcombine.low %v683, %v690
    %v692 = vcombine.low %v86, %v85
    %v693 = vcombine.low %v94, %v102
    %v695 = vunpack.c.l.s4 1983009808
    %v696 = vunpack.c.0.s8 %v695
    %v697 = vlaneseq
    %v698 = vshrl.u32 %v697, 7
    %v699 = vsub.s32 %v696, %v698
    %v700 = vrot.slane %v692, %v699
    %v702 = vunpack.c.l.s4 1983009808
    %v703 = vunpack.c.0.s8 %v702
    %v704 = vlaneseq
    %v705 = vshrl.u32 %v704, 7
    %v706 = vsub.s32 %v703, %v705
    %v707 = vrot.slane %v693, %v706
    %v708 = vcombine.low %v700, %v707
    %v709 = vcombine.low %v101, %v110
    %v710 = vcombine.low %v118, %v117
    %v712 = vunpack.c.l.s4 1983009808
    %v713 = vunpack.c.0.s8 %v712
    %v714 = vlaneseq
    %v715 = vshrl.u32 %v714, 7
    %v716 = vsub.s32 %v713, %v715
    %v717 = vrot.slane %v709, %v716
    %v719 = vunpack.c.l.s4 1983009808
    %v720 = vunpack.c.0.s8 %v719
    %v721 = vlaneseq
    %v722 = vshrl.u32 %v721, 7
    %v723 = vsub.s32 %v720, %v722
    %v724 = vrot.slane %v710, %v723
    %v725 = vcombine.low %v717, %v724
    %v726 = vcombine.low %v126, %v134
    %v727 = vcombine.low %v133, %v142
    %v729 = vunpack.c.l.s4 1983009808
    %v730 = vunpack.c.0.s8 %v729
    %v731 = vlaneseq
    %v732 = vshrl.u32 %v731, 7
    %v733 = vsub.s32 %v730, %v732
    %v734 = vrot.slane %v726, %v733
    %v736 = vunpack.c.l.s4 1983009808
    %v737 = vunpack.c.0.s8 %v736
    %v738 = vlaneseq
    %v739 = vshrl.u32 %v738, 7
    %v740 = vsub.s32 %v737, %v739
    %v741 = vrot.slane %v727, %v740
    %v742 = vcombine.low %v734, %v741
    %v743 = vcombine.low %v150, %v149
    %v744 = vcombine.low %v158, %v166
    %v746 = vunpack.c.l.s4 1983009808
    %v747 = vunpack.c.0.s8 %v746
    %v748 = vlaneseq
    %v749 = vshrl.u32 %v748, 7
    %v750 = vsub.s32 %v747, %v749
    %v751 = vrot.slane %v743, %v750
    %v753 = vunpack.c.l.s4 1983009808
    %v754 = vunpack.c.0.s8 %v753
    %v755 = vlaneseq
    %v756 = vshrl.u32 %v755, 7
    %v757 = vsub.s32 %v754, %v756
    %v758 = vrot.slane %v744, %v757
    %v759 = vcombine.low %v751, %v758
    %v760 = vcombine.low %v165, %v174
    %v761 = vcombine.low %v182, %v181
    %v763 = vunpack.c.l.s4 1983009808
    %v764 = vunpack.c.0.s8 %v763
    %v765 = vlaneseq
    %v766 = vshrl.u32 %v765, 7
    %v767 = vsub.s32 %v764, %v766
    %v768 = vrot.slane %v760, %v767
    %v770 = vunpack.c.l.s4 1983009808
    %v771 = vunpack.c.0.s8 %v770
    %v772 = vlaneseq
    %v773 = vshrl.u32 %v772, 7
    %v774 = vsub.s32 %v771, %v773
    %v775 = vrot.slane %v761, %v774
    %v776 = vcombine.low %v768, %v775
    %v777 = vcombine.low %v190, %v198
    %v778 = vcombine.low %v197, %v206
    %v780 = vunpack.c.l.s4 1983009808
    %v781 = vunpack.c.0.s8 %v780
    %v782 = vlaneseq
    %v783 = vshrl.u32 %v782, 7
    %v784 = vsub.s32 %v781, %v783
    %v785 = vrot.slane %v777, %v784
    %v787 = vunpack.c.l.s4 1983009808
    %v788 = vunpack.c.0.s8 %v787
    %v789 = vlaneseq
    %v790 = vshrl.u32 %v789, 7
    %v791 = vsub.s32 %v788, %v790
    %v792 = vrot.slane %v778, %v791
    %v793 = vcombine.low %v785, %v792
    %v794 = vcombine.low %v214, %v213
    %v795 = vcombine.low %v222, %v230
    %v797 = vunpack.c.l.s4 1983009808
    %v798 = vunpack.c.0.s8 %v797
    %v799 = vlaneseq
    %v800 = vshrl.u32 %v799, 7
    %v801 = vsub.s32 %v798, %v800
    %v802 = vrot.slane %v794, %v801
    %v804 = vunpack.c.l.s4 1983009808
    %v805 = vunpack.c.0.s8 %v804
    %v806 = vlaneseq
    %v807 = vshrl.u32 %v806, 7
    %v808 = vsub.s32 %v805, %v807
    %v809 = vrot.slane %v795, %v808
    %v810 = vcombine.low %v802, %v809
    %v811 = vcombine.low %v229, %v238
    %v812 = vcombine.low %v246, %v245
    %v814 = vunpack.c.l.s4 1983009808
    %v815 = vunpack.c.0.s8 %v814
    %v816 = vlaneseq
    %v817 = vshrl.u32 %v816, 7
    %v818 = vsub.s32 %v815, %v817
    %v819 = vrot.slane %v811, %v818
    %v821 = vunpack.c.l.s4 1983009808
    %v822 = vunpack.c.0.s8 %v821
    %v823 = vlaneseq
    %v824 = vshrl.u32 %v823, 7
    %v825 = vsub.s32 %v822, %v824
    %v826 = vrot.slane %v812, %v825
    %v827 = vcombine.low %v819, %v826
    %v828 = vsel %vm542, %v691, 0
    %v830 = vsel %vm542, %v708, 0
    %v832 = vsel %vm542, %v725, 0
    %v834 = vsel %vm542, %v742, 0
    %v836 = vsel %vm542, %v759, 0
    %v838 = vsel %vm542, %v776, 0
    %v840 = vsel %vm542, %v793, 0
    %v842 = vsel %vm542, %v810, 0
    %v844 = vsel %vm542, %v827, 0
    %v847 = vsel %vm561, %v247, 0
    %849 = vmatprep.subr.mxu0 0.0
    %850 = vmatpush1.msra.mxu0 %v847
    %851 = vmatprep.subr.mxu0 0.0
    %852 = vmatpush1.msra.mxu0 0.0
    %853 = vmatprep.subr.mxu0 0.0
    %854 = vmatpush1.msra.mxu0 0.0
    %855 = vmatprep.subr.mxu0 0.0
    %856 = vmatpush1.msra.mxu0 0.0
    %857 = vmatprep.subr.mxu0 0.0
    %858 = vmatpush1.msra.mxu0 0.0
    %859 = vmatprep.subr.mxu0 0.0
    %860 = vmatpush1.msra.mxu0 0.0
    %861 = vmatprep.subr.mxu0 0.0
    %862 = vmatpush1.msra.mxu0 0.0
    %863 = vmatprep.subr.mxu0 0.0
    %864 = vmatpush1.msra.mxu0 0.0
    %865 = vmatprep.subr.mxu0 0.0
    %866 = vmatpush1.msra.mxu0 0.0
    %867 = vmatprep.subr.mxu0 0.0
    %868 = vmatpush1.msra.mxu0 0.0
    %869 = vmatprep.subr.mxu0 0.0
    %870 = vmatpush1.msra.mxu0 0.0
    %871 = vmatprep.subr.mxu0 0.0
    %872 = vmatpush1.msra.mxu0 0.0
    %873 = vmatprep.subr.mxu0 0.0
    %874 = vmatpush1.msra.mxu0 0.0
    %875 = vmatprep.subr.mxu0 0.0
    %876 = vmatpush1.msra.mxu0 0.0
    %877 = vmatprep.subr.mxu0 0.0
    %878 = vmatpush1.msra.mxu0 0.0
    %879 = vmatprep.subr.mxu0 0.0
    %880 = vmatpush1.msra.mxu0 0.0
    %881 = vmatprep.subr.mxu0 0.0
    %882 = vmatpush1.msra.mxu0 0.0
    %883 = vmatprep.subr.mxu0 0.0
    %884 = vmatpush1.msra.mxu0 0.0
    %885 = vmatprep.subr.mxu0 0.0
    %886 = vmatpush1.msra.mxu0 0.0
    %887 = vmatprep.subr.mxu0 0.0
    %888 = vmatpush1.msra.mxu0 0.0
    %889 = vmatprep.subr.mxu0 0.0
    %890 = vmatpush1.msra.mxu0 0.0
    %891 = vmatprep.subr.mxu0 0.0
    %892 = vmatpush1.msra.mxu0 0.0
    %893 = vmatprep.subr.mxu0 0.0
    %894 = vmatpush1.msra.mxu0 0.0
    %895 = vmatprep.subr.mxu0 0.0
    %896 = vmatpush1.msra.mxu0 0.0
    %897 = vmatprep.subr.mxu0 0.0
    %898 = vmatpush1.msra.mxu0 0.0
    %899 = vmatprep.subr.mxu0 0.0
    %900 = vmatpush1.msra.mxu0 0.0
    %901 = vmatprep.subr.mxu0 0.0
    %902 = vmatpush1.msra.mxu0 0.0
    %903 = vmatprep.subr.mxu0 0.0
    %904 = vmatpush1.msra.mxu0 0.0
    %905 = vmatprep.subr.mxu0 0.0
    %906 = vmatpush1.msra.mxu0 0.0
    %907 = vmatprep.subr.mxu0 0.0
    %908 = vmatpush1.msra.mxu0 0.0
    %909 = vmatprep.subr.mxu0 0.0
    %910 = vmatpush1.msra.mxu0 0.0
    %911 = vmatprep.subr.mxu0 0.0
    %912 = vmatpush1.msra.mxu0 0.0
    %913 = vmatprep.mubr.f32.mxu0 0.0
    %914 = vmatmul.mubr.f32.gmra.mrb[0].mxu0 %v828
    %v915 = vpop.f32.mrb[0].mxu0
    %v916 = vadd.f32 %v632, %v915
    %v917 = vpop.f32.mrb[0].mxu0
    %918 = vmatprep.mubr.f32.mxu0 0.0
    %919 = vmatmul.mubr.f32.gmra.mrb[0].mxu0 %v830
    %v920 = vpop.f32.mrb[0].mxu0
    %v921 = vadd.f32 %v637, %v920
    %v922 = vpop.f32.mrb[0].mxu0
    %923 = vmatprep.mubr.f32.mxu0 0.0
    %924 = vmatmul.mubr.f32.gmra.mrb[0].mxu0 %v832
    %v925 = vpop.f32.mrb[0].mxu0
    %v926 = vadd.f32 %v642, %v925
    %v927 = vpop.f32.mrb[0].mxu0
    %928 = vmatprep.mubr.f32.mxu0 0.0
    %929 = vmatmul.mubr.f32.gmra.mrb[0].mxu0 %v834
    %v930 = vpop.f32.mrb[0].mxu0
    %v931 = vadd.f32 %v647, %v930
    %v932 = vpop.f32.mrb[0].mxu0
    %933 = vmatprep.mubr.f32.mxu0 0.0
    %934 = vmatmul.mubr.f32.gmra.mrb[0].mxu0 %v836
    %v935 = vpop.f32.mrb[0].mxu0
    %v936 = vadd.f32 %v652, %v935
    %v937 = vpop.f32.mrb[0].mxu0
    %938 = vmatprep.mubr.f32.mxu0 0.0
    %939 = vmatmul.mubr.f32.gmra.mrb[0].mxu0 %v838
    %v940 = vpop.f32.mrb[0].mxu0
    %v941 = vadd.f32 %v657, %v940
    %v942 = vpop.f32.mrb[0].mxu0
    %943 = vmatprep.mubr.f32.mxu0 0.0
    %944 = vmatmul.mubr.f32.gmra.mrb[0].mxu0 %v840
    %v945 = vpop.f32.mrb[0].mxu0
    %v946 = vadd.f32 %v662, %v945
    %v947 = vpop.f32.mrb[0].mxu0
    %948 = vmatprep.mubr.f32.mxu0 0.0
    %949 = vmatmul.mubr.f32.gmra.mrb[0].mxu0 %v842
    %v950 = vpop.f32.mrb[0].mxu0
    %v951 = vadd.f32 %v667, %v950
    %v952 = vpop.f32.mrb[0].mxu0
    %953 = vmatprep.mubr.f32.mxu0 0.0
    %954 = vmatmul.mubr.f32.gmra.mrb[0].mxu0 %v844
    %v955 = vpop.f32.mrb[0].mxu0
    %v956 = vadd.f32 %v672, %v955
    %v957 = vpop.f32.mrb[0].mxu0
    %958 = vdwg.mxu0
    %s959 = scalar_lea.vmem %s1, 8
    %v960 = vld [vmem:[%s959] sm:$0x7]
    %v961 = vcombine.low %v70, %v69
    %v962 = vcombine.low %v248, %v86
    %v964 = vunpack.c.l.s4 1983009808
    %v965 = vunpack.c.0.s8 %v964
    %v966 = vlaneseq
    %v967 = vshrl.u32 %v966, 7
    %v968 = vsub.s32 %v965, %v967
    %v969 = vrot.slane %v961, %v968
    %v971 = vunpack.c.l.s4 1983009808
    %v972 = vunpack.c.0.s8 %v971
    %v973 = vlaneseq
    %v974 = vshrl.u32 %v973, 7
    %v975 = vsub.s32 %v972, %v974
    %v976 = vrot.slane %v962, %v975
    %v977 = vcombine.low %v969, %v976
    %v978 = vcombine.low %v85, %v249
    %v979 = vcombine.low %v102, %v101
    %v981 = vunpack.c.l.s4 1983009808
    %v982 = vunpack.c.0.s8 %v981
    %v983 = vlaneseq
    %v984 = vshrl.u32 %v983, 7
    %v985 = vsub.s32 %v982, %v984
    %v986 = vrot.slane %v978, %v985
    %v988 = vunpack.c.l.s4 1983009808
    %v989 = vunpack.c.0.s8 %v988
    %v990 = vlaneseq
    %v991 = vshrl.u32 %v990, 7
    %v992 = vsub.s32 %v989, %v991
    %v993 = vrot.slane %v979, %v992
    %v994 = vcombine.low %v986, %v993
    %v995 = vcombine.low %v250, %v118
    %v996 = vcombine.low %v117, %v251
    %v998 = vunpack.c.l.s4 1983009808
    %v999 = vunpack.c.0.s8 %v998
    %v1000 = vlaneseq
    %v1001 = vshrl.u32 %v1000, 7
    %v1002 = vsub.s32 %v999, %v1001
    %v1003 = vrot.slane %v995, %v1002
    %v1005 = vunpack.c.l.s4 1983009808
    %v1006 = vunpack.c.0.s8 %v1005
    %v1007 = vlaneseq
    %v1008 = vshrl.u32 %v1007, 7
    %v1009 = vsub.s32 %v1006, %v1008
    %v1010 = vrot.slane %v996, %v1009
    %v1011 = vcombine.low %v1003, %v1010
    %v1012 = vcombine.low %v134, %v133
    %v1013 = vcombine.low %v252, %v150
    %v1015 = vunpack.c.l.s4 1983009808
    %v1016 = vunpack.c.0.s8 %v1015
    %v1017 = vlaneseq
    %v1018 = vshrl.u32 %v1017, 7
    %v1019 = vsub.s32 %v1016, %v1018
    %v1020 = vrot.slane %v1012, %v1019
    %v1022 = vunpack.c.l.s4 1983009808
    %v1023 = vunpack.c.0.s8 %v1022
    %v1024 = vlaneseq
    %v1025 = vshrl.u32 %v1024, 7
    %v1026 = vsub.s32 %v1023, %v1025
    %v1027 = vrot.slane %v1013, %v1026
    %v1028 = vcombine.low %v1020, %v1027
    %v1029 = vcombine.low %v149, %v253
    %v1030 = vcombine.low %v166, %v165
    %v1032 = vunpack.c.l.s4 1983009808
    %v1033 = vunpack.c.0.s8 %v1032
    %v1034 = vlaneseq
    %v1035 = vshrl.u32 %v1034, 7
    %v1036 = vsub.s32 %v1033, %v1035
    %v1037 = vrot.slane %v1029, %v1036
    %v1039 = vunpack.c.l.s4 1983009808
    %v1040 = vunpack.c.0.s8 %v1039
    %v1041 = vlaneseq
    %v1042 = vshrl.u32 %v1041, 7
    %v1043 = vsub.s32 %v1040, %v1042
    %v1044 = vrot.slane %v1030, %v1043
    %v1045 = vcombine.low %v1037, %v1044
    %v1046 = vcombine.low %v254, %v182
    %v1047 = vcombine.low %v181, %v255
    %v1049 = vunpack.c.l.s4 1983009808
    %v1050 = vunpack.c.0.s8 %v1049
    %v1051 = vlaneseq
    %v1052 = vshrl.u32 %v1051, 7
    %v1053 = vsub.s32 %v1050, %v1052
    %v1054 = vrot.slane %v1046, %v1053
    %v1056 = vunpack.c.l.s4 1983009808
    %v1057 = vunpack.c.0.s8 %v1056
    %v1058 = vlaneseq
    %v1059 = vshrl.u32 %v1058, 7
    %v1060 = vsub.s32 %v1057, %v1059
    %v1061 = vrot.slane %v1047, %v1060
    %v1062 = vcombine.low %v1054, %v1061
    %v1063 = vcombine.low %v198, %v197
    %v1064 = vcombine.low %v256, %v214
    %v1066 = vunpack.c.l.s4 1983009808
    %v1067 = vunpack.c.0.s8 %v1066
    %v1068 = vlaneseq
    %v1069 = vshrl.u32 %v1068, 7
    %v1070 = vsub.s32 %v1067, %v1069
    %v1071 = vrot.slane %v1063, %v1070
    %v1073 = vunpack.c.l.s4 1983009808
    %v1074 = vunpack.c.0.s8 %v1073
    %v1075 = vlaneseq
    %v1076 = vshrl.u32 %v1075, 7
    %v1077 = vsub.s32 %v1074, %v1076
    %v1078 = vrot.slane %v1064, %v1077
    %v1079 = vcombine.low %v1071, %v1078
    %v1080 = vcombine.low %v213, %v257
    %v1081 = vcombine.low %v230, %v229
    %v1083 = vunpack.c.l.s4 1983009808
    %v1084 = vunpack.c.0.s8 %v1083
    %v1085 = vlaneseq
    %v1086 = vshrl.u32 %v1085, 7
    %v1087 = vsub.s32 %v1084, %v1086
    %v1088 = vrot.slane %v1080, %v1087
    %v1090 = vunpack.c.l.s4 1983009808
    %v1091 = vunpack.c.0.s8 %v1090
    %v1092 = vlaneseq
    %v1093 = vshrl.u32 %v1092, 7
    %v1094 = vsub.s32 %v1091, %v1093
    %v1095 = vrot.slane %v1081, %v1094
    %v1096 = vcombine.low %v1088, %v1095
    %v1097 = vcombine.low %v258, %v246
    %v1098 = vcombine.low %v245, %v259
    %v1100 = vunpack.c.l.s4 1983009808
    %v1101 = vunpack.c.0.s8 %v1100
    %v1102 = vlaneseq
    %v1103 = vshrl.u32 %v1102, 7
    %v1104 = vsub.s32 %v1101, %v1103
    %v1105 = vrot.slane %v1097, %v1104
    %v1107 = vunpack.c.l.s4 1983009808
    %v1108 = vunpack.c.0.s8 %v1107
    %v1109 = vlaneseq
    %v1110 = vshrl.u32 %v1109, 7
    %v1111 = vsub.s32 %v1108, %v1110
    %v1112 = vrot.slane %v1098, %v1111
    %v1113 = vcombine.low %v1105, %v1112
    %v1114 = vsel %vm542, %v977, 0
    %v1116 = vsel %vm542, %v994, 0
    %v1118 = vsel %vm542, %v1011, 0
    %v1120 = vsel %vm542, %v1028, 0
    %v1122 = vsel %vm542, %v1045, 0
    %v1124 = vsel %vm542, %v1062, 0
    %v1126 = vsel %vm542, %v1079, 0
    %v1128 = vsel %vm542, %v1096, 0
    %v1130 = vsel %vm542, %v1113, 0
    %v1133 = vsel %vm561, %v960, 0
    %1135 = vmatprep.subr.mxu0 0.0
    %1136 = vmatpush1.msra.mxu0 %v1133
    %1137 = vmatprep.subr.mxu0 0.0
    %1138 = vmatpush1.msra.mxu0 0.0
    %1139 = vmatprep.subr.mxu0 0.0
    %1140 = vmatpush1.msra.mxu0 0.0
    %1141 = vmatprep.subr.mxu0 0.0
    %1142 = vmatpush1.msra.mxu0 0.0
    %1143 = vmatprep.subr.mxu0 0.0
    %1144 = vmatpush1.msra.mxu0 0.0
    %1145 = vmatprep.subr.mxu0 0.0
    %1146 = vmatpush1.msra.mxu0 0.0
    %1147 = vmatprep.subr.mxu0 0.0
    %1148 = vmatpush1.msra.mxu0 0.0
    %1149 = vmatprep.subr.mxu0 0.0
    %1150 = vmatpush1.msra.mxu0 0.0
    %1151 = vmatprep.subr.mxu0 0.0
    %1152 = vmatpush1.msra.mxu0 0.0
    %1153 = vmatprep.subr.mxu0 0.0
    %1154 = vmatpush1.msra.mxu0 0.0
    %1155 = vmatprep.subr.mxu0 0.0
    %1156 = vmatpush1.msra.mxu0 0.0
    %1157 = vmatprep.subr.mxu0 0.0
    %1158 = vmatpush1.msra.mxu0 0.0
    %1159 = vmatprep.subr.mxu0 0.0
    %1160 = vmatpush1.msra.mxu0 0.0
    %1161 = vmatprep.subr.mxu0 0.0
    %1162 = vmatpush1.msra.mxu0 0.0
    %1163 = vmatprep.subr.mxu0 0.0
    %1164 = vmatpush1.msra.mxu0 0.0
    %1165 = vmatprep.subr.mxu0 0.0
    %1166 = vmatpush1.msra.mxu0 0.0
    %1167 = vmatprep.subr.mxu0 0.0
    %1168 = vmatpush1.msra.mxu0 0.0
    %1169 = vmatprep.subr.mxu0 0.0
    %1170 = vmatpush1.msra.mxu0 0.0
    %1171 = vmatprep.subr.mxu0 0.0
    %1172 = vmatpush1.msra.mxu0 0.0
    %1173 = vmatprep.subr.mxu0 0.0
    %1174 = vmatpush1.msra.mxu0 0.0
    %1175 = vmatprep.subr.mxu0 0.0
    %1176 = vmatpush1.msra.mxu0 0.0
    %1177 = vmatprep.subr.mxu0 0.0
    %1178 = vmatpush1.msra.mxu0 0.0
    %1179 = vmatprep.subr.mxu0 0.0
    %1180 = vmatpush1.msra.mxu0 0.0
    %1181 = vmatprep.subr.mxu0 0.0
    %1182 = vmatpush1.msra.mxu0 0.0
    %1183 = vmatprep.subr.mxu0 0.0
    %1184 = vmatpush1.msra.mxu0 0.0
    %1185 = vmatprep.subr.mxu0 0.0
    %1186 = vmatpush1.msra.mxu0 0.0
    %1187 = vmatprep.subr.mxu0 0.0
    %1188 = vmatpush1.msra.mxu0 0.0
    %1189 = vmatprep.subr.mxu0 0.0
    %1190 = vmatpush1.msra.mxu0 0.0
    %1191 = vmatprep.subr.mxu0 0.0
    %1192 = vmatpush1.msra.mxu0 0.0
    %1193 = vmatprep.subr.mxu0 0.0
    %1194 = vmatpush1.msra.mxu0 0.0
    %1195 = vmatprep.subr.mxu0 0.0
    %1196 = vmatpush1.msra.mxu0 0.0
    %1197 = vmatprep.subr.mxu0 0.0
    %1198 = vmatpush1.msra.mxu0 0.0
    %1199 = vmatprep.mubr.f32.mxu0 0.0
    %1200 = vmatmul.mubr.f32.gmra.mrb[0].mxu0 %v1114
    %v1201 = vpop.f32.mrb[0].mxu0
    %v1202 = vadd.f32 0.0, %v1201
    %v1203 = vpop.f32.mrb[0].mxu0
    %1204 = vmatprep.mubr.f32.mxu0 0.0
    %1205 = vmatmul.mubr.f32.gmra.mrb[0].mxu0 %v1116
    %v1206 = vpop.f32.mrb[0].mxu0
    %v1207 = vadd.f32 0.0, %v1206
    %v1208 = vpop.f32.mrb[0].mxu0
    %1209 = vmatprep.mubr.f32.mxu0 0.0
    %1210 = vmatmul.mubr.f32.gmra.mrb[0].mxu0 %v1118
    %v1211 = vpop.f32.mrb[0].mxu0
    %v1212 = vadd.f32 0.0, %v1211
    %v1213 = vpop.f32.mrb[0].mxu0
    %1214 = vmatprep.mubr.f32.mxu0 0.0
    %1215 = vmatmul.mubr.f32.gmra.mrb[0].mxu0 %v1120
    %v1216 = vpop.f32.mrb[0].mxu0
    %v1217 = vadd.f32 0.0, %v1216
    %v1218 = vpop.f32.mrb[0].mxu0
    %1219 = vmatprep.mubr.f32.mxu0 0.0
    %1220 = vmatmul.mubr.f32.gmra.mrb[0].mxu0 %v1122
    %v1221 = vpop.f32.mrb[0].mxu0
    %v1222 = vadd.f32 0.0, %v1221
    %v1223 = vpop.f32.mrb[0].mxu0
    %1224 = vmatprep.mubr.f32.mxu0 0.0
    %1225 = vmatmul.mubr.f32.gmra.mrb[0].mxu0 %v1124
    %v1226 = vpop.f32.mrb[0].mxu0
    %v1227 = vadd.f32 0.0, %v1226
    %v1228 = vpop.f32.mrb[0].mxu0
    %1229 = vmatprep.mubr.f32.mxu0 0.0
    %1230 = vmatmul.mubr.f32.gmra.mrb[0].mxu0 %v1126
    %v1231 = vpop.f32.mrb[0].mxu0
    %v1232 = vadd.f32 0.0, %v1231
    %v1233 = vpop.f32.mrb[0].mxu0
    %1234 = vmatprep.mubr.f32.mxu0 0.0
    %1235 = vmatmul.mubr.f32.gmra.mrb[0].mxu0 %v1128
    %v1236 = vpop.f32.mrb[0].mxu0
    %v1237 = vadd.f32 0.0, %v1236
    %v1238 = vpop.f32.mrb[0].mxu0
    %1239 = vmatprep.mubr.f32.mxu0 0.0
    %1240 = vmatmul.mubr.f32.gmra.mrb[0].mxu0 %v1130
    %v1241 = vpop.f32.mrb[0].mxu0
    %v1242 = vadd.f32 0.0, %v1241
    %v1243 = vpop.f32.mrb[0].mxu0
    %1244 = vdwg.mxu0
    %v1245 = vadd.f32 %v916, %v1202
    %v1246 = vadd.f32 %v921, %v1207
    %v1247 = vadd.f32 %v926, %v1212
    %v1248 = vadd.f32 %v931, %v1217
    %v1249 = vadd.f32 %v936, %v1222
    %v1250 = vadd.f32 %v941, %v1227
    %v1251 = vadd.f32 %v946, %v1232
    %v1252 = vadd.f32 %v951, %v1237
    %v1253 = vadd.f32 %v956, %v1242
    %v1256 = vcombine.high %v33, %v33
    %v1258 = vunpack.c.l.s4 1983009808
    %v1259 = vunpack.c.0.s8 %v1258
    %v1260 = vlaneseq
    %v1261 = vshrl.u32 %v1260, 7
    %v1262 = vsub.s32 %v1259, %v1261
    %v1263 = vrot.slane %v33, %v1262
    %v1265 = vunpack.c.l.s4 1983009808
    %v1266 = vunpack.c.0.s8 %v1265
    %v1267 = vlaneseq
    %v1268 = vshrl.u32 %v1267, 7
    %v1269 = vsub.s32 %v1266, %v1268
    %v1270 = vrot.slane %v1256, %v1269
    %v1271 = vcombine.high %v1263, %v1263
    %v1272 = vcombine.high %v41, %v41
    %v1274 = vunpack.c.l.s4 1983009808
    %v1275 = vunpack.c.0.s8 %v1274
    %v1276 = vlaneseq
    %v1277 = vshrl.u32 %v1276, 7
    %v1278 = vsub.s32 %v1275, %v1277
    %v1279 = vrot.slane %v41, %v1278
    %v1281 = vunpack.c.l.s4 1983009808
    %v1282 = vunpack.c.0.s8 %v1281
    %v1283 = vlaneseq
    %v1284 = vshrl.u32 %v1283, 7
    %v1285 = vsub.s32 %v1282, %v1284
    %v1286 = vrot.slane %v1272, %v1285
    %v1287 = vcombine.high %v1279, %v1279
    %s1288 = scalar_lea.vmem %s1, 12
    %v1289 = vld [vmem:[%s1288] sm:$0x7]
    %v1290 = vcombine.low %v78, %v86
    %v1291 = vcombine.low %v85, %v94
    %v1293 = vunpack.c.l.s4 1983009808
    %v1294 = vunpack.c.0.s8 %v1293
    %v1295 = vlaneseq
    %v1296 = vshrl.u32 %v1295, 7
    %v1297 = vsub.s32 %v1294, %v1296
    %v1298 = vrot.slane %v1290, %v1297
    %v1300 = vunpack.c.l.s4 1983009808
    %v1301 = vunpack.c.0.s8 %v1300
    %v1302 = vlaneseq
    %v1303 = vshrl.u32 %v1302, 7
    %v1304 = vsub.s32 %v1301, %v1303
    %v1305 = vrot.slane %v1291, %v1304
    %v1306 = vcombine.low %v1298, %v1305
    %v1307 = vcombine.low %v110, %v118
    %v1309 = vunpack.c.l.s4 1983009808
    %v1310 = vunpack.c.0.s8 %v1309
    %v1311 = vlaneseq
    %v1312 = vshrl.u32 %v1311, 7
    %v1313 = vsub.s32 %v1310, %v1312
    %v1314 = vrot.slane %v1307, %v1313
    %v1315 = vcombine.low %v993, %v1314
    %v1316 = vcombine.low %v117, %v126
    %v1318 = vunpack.c.l.s4 1983009808
    %v1319 = vunpack.c.0.s8 %v1318
    %v1320 = vlaneseq
    %v1321 = vshrl.u32 %v1320, 7
    %v1322 = vsub.s32 %v1319, %v1321
    %v1323 = vrot.slane %v1316, %v1322
    %v1324 = vcombine.low %v1323, %v1020
    %v1325 = vcombine.low %v142, %v150
    %v1326 = vcombine.low %v149, %v1263
    %v1328 = vunpack.c.l.s4 1983009808
    %v1329 = vunpack.c.0.s8 %v1328
    %v1330 = vlaneseq
    %v1331 = vshrl.u32 %v1330, 7
    %v1332 = vsub.s32 %v1329, %v1331
    %v1333 = vrot.slane %v1325, %v1332
    %v1335 = vunpack.c.l.s4 1983009808
    %v1336 = vunpack.c.0.s8 %v1335
    %v1337 = vlaneseq
    %v1338 = vshrl.u32 %v1337, 7
    %v1339 = vsub.s32 %v1336, %v1338
    %v1340 = vrot.slane %v1326, %v1339
    %v1341 = vcombine.low %v1333, %v1340
    %v1342 = vcombine.low %v1271, %v1270
    %v1343 = vcombine.low %v174, %v182
    %v1345 = vunpack.c.l.s4 1983009808
    %v1346 = vunpack.c.0.s8 %v1345
    %v1347 = vlaneseq
    %v1348 = vshrl.u32 %v1347, 7
    %v1349 = vsub.s32 %v1346, %v1348
    %v1350 = vrot.slane %v1342, %v1349
    %v1352 = vunpack.c.l.s4 1983009808
    %v1353 = vunpack.c.0.s8 %v1352
    %v1354 = vlaneseq
    %v1355 = vshrl.u32 %v1354, 7
    %v1356 = vsub.s32 %v1353, %v1355
    %v1357 = vrot.slane %v1343, %v1356
    %v1358 = vcombine.low %v1350, %v1357
    %v1359 = vcombine.low %v181, %v190
    %v1361 = vunpack.c.l.s4 1983009808
    %v1362 = vunpack.c.0.s8 %v1361
    %v1363 = vlaneseq
    %v1364 = vshrl.u32 %v1363, 7
    %v1365 = vsub.s32 %v1362, %v1364
    %v1366 = vrot.slane %v1359, %v1365
    %v1367 = vcombine.low %v1366, %v1071
    %v1368 = vcombine.low %v206, %v214
    %v1369 = vcombine.low %v213, %v222
    %v1371 = vunpack.c.l.s4 1983009808
    %v1372 = vunpack.c.0.s8 %v1371
    %v1373 = vlaneseq
    %v1374 = vshrl.u32 %v1373, 7
    %v1375 = vsub.s32 %v1372, %v1374
    %v1376 = vrot.slane %v1368, %v1375
    %v1378 = vunpack.c.l.s4 1983009808
    %v1379 = vunpack.c.0.s8 %v1378
    %v1380 = vlaneseq
    %v1381 = vshrl.u32 %v1380, 7
    %v1382 = vsub.s32 %v1379, %v1381
    %v1383 = vrot.slane %v1369, %v1382
    %v1384 = vcombine.low %v1376, %v1383
    %v1385 = vcombine.low %v238, %v246
    %v1387 = vunpack.c.l.s4 1983009808
    %v1388 = vunpack.c.0.s8 %v1387
    %v1389 = vlaneseq
    %v1390 = vshrl.u32 %v1389, 7
    %v1391 = vsub.s32 %v1388, %v1390
    %v1392 = vrot.slane %v1385, %v1391
    %v1393 = vcombine.low %v1095, %v1392
    %v1394 = vcombine.low %v245, %v1279
    %v1395 = vcombine.low %v1287, %v1286
    %v1397 = vunpack.c.l.s4 1983009808
    %v1398 = vunpack.c.0.s8 %v1397
    %v1399 = vlaneseq
    %v1400 = vshrl.u32 %v1399, 7
    %v1401 = vsub.s32 %v1398, %v1400
    %v1402 = vrot.slane %v1394, %v1401
    %v1404 = vunpack.c.l.s4 1983009808
    %v1405 = vunpack.c.0.s8 %v1404
    %v1406 = vlaneseq
    %v1407 = vshrl.u32 %v1406, 7
    %v1408 = vsub.s32 %v1405, %v1407
    %v1409 = vrot.slane %v1395, %v1408
    %v1410 = vcombine.low %v1402, %v1409
    %v1411 = vsel %vm542, %v1306, 0
    %v1413 = vsel %vm542, %v1315, 0
    %v1415 = vsel %vm542, %v1324, 0
    %v1417 = vsel %vm542, %v1341, 0
    %v1419 = vsel %vm542, %v1358, 0
    %v1421 = vsel %vm542, %v1367, 0
    %v1423 = vsel %vm542, %v1384, 0
    %v1425 = vsel %vm542, %v1393, 0
    %v1427 = vsel %vm542, %v1410, 0
    %v1430 = vsel %vm561, %v1289, 0
    %1432 = vmatprep.subr.mxu0 0.0
    %1433 = vmatpush1.msra.mxu0 %v1430
    %1434 = vmatprep.subr.mxu0 0.0
    %1435 = vmatpush1.msra.mxu0 0.0
    %1436 = vmatprep.subr.mxu0 0.0
    %1437 = vmatpush1.msra.mxu0 0.0
    %1438 = vmatprep.subr.mxu0 0.0
    %1439 = vmatpush1.msra.mxu0 0.0
    %1440 = vmatprep.subr.mxu0 0.0
    %1441 = vmatpush1.msra.mxu0 0.0
    %1442 = vmatprep.subr.mxu0 0.0
    %1443 = vmatpush1.msra.mxu0 0.0
    %1444 = vmatprep.subr.mxu0 0.0
    %1445 = vmatpush1.msra.mxu0 0.0
    %1446 = vmatprep.subr.mxu0 0.0
    %1447 = vmatpush1.msra.mxu0 0.0
    %1448 = vmatprep.subr.mxu0 0.0
    %1449 = vmatpush1.msra.mxu0 0.0
    %1450 = vmatprep.subr.mxu0 0.0
    %1451 = vmatpush1.msra.mxu0 0.0
    %1452 = vmatprep.subr.mxu0 0.0
    %1453 = vmatpush1.msra.mxu0 0.0
    %1454 = vmatprep.subr.mxu0 0.0
    %1455 = vmatpush1.msra.mxu0 0.0
    %1456 = vmatprep.subr.mxu0 0.0
    %1457 = vmatpush1.msra.mxu0 0.0
    %1458 = vmatprep.subr.mxu0 0.0
    %1459 = vmatpush1.msra.mxu0 0.0
    %1460 = vmatprep.subr.mxu0 0.0
    %1461 = vmatpush1.msra.mxu0 0.0
    %1462 = vmatprep.subr.mxu0 0.0
    %1463 = vmatpush1.msra.mxu0 0.0
    %1464 = vmatprep.subr.mxu0 0.0
    %1465 = vmatpush1.msra.mxu0 0.0
    %1466 = vmatprep.subr.mxu0 0.0
    %1467 = vmatpush1.msra.mxu0 0.0
    %1468 = vmatprep.subr.mxu0 0.0
    %1469 = vmatpush1.msra.mxu0 0.0
    %1470 = vmatprep.subr.mxu0 0.0
    %1471 = vmatpush1.msra.mxu0 0.0
    %1472 = vmatprep.subr.mxu0 0.0
    %1473 = vmatpush1.msra.mxu0 0.0
    %1474 = vmatprep.subr.mxu0 0.0
    %1475 = vmatpush1.msra.mxu0 0.0
    %1476 = vmatprep.subr.mxu0 0.0
    %1477 = vmatpush1.msra.mxu0 0.0
    %1478 = vmatprep.subr.mxu0 0.0
    %1479 = vmatpush1.msra.mxu0 0.0
    %1480 = vmatprep.subr.mxu0 0.0
    %1481 = vmatpush1.msra.mxu0 0.0
    %1482 = vmatprep.subr.mxu0 0.0
    %1483 = vmatpush1.msra.mxu0 0.0
    %1484 = vmatprep.subr.mxu0 0.0
    %1485 = vmatpush1.msra.mxu0 0.0
    %1486 = vmatprep.subr.mxu0 0.0
    %1487 = vmatpush1.msra.mxu0 0.0
    %1488 = vmatprep.subr.mxu0 0.0
    %1489 = vmatpush1.msra.mxu0 0.0
    %1490 = vmatprep.subr.mxu0 0.0
    %1491 = vmatpush1.msra.mxu0 0.0
    %1492 = vmatprep.subr.mxu0 0.0
    %1493 = vmatpush1.msra.mxu0 0.0
    %1494 = vmatprep.subr.mxu0 0.0
    %1495 = vmatpush1.msra.mxu0 0.0
    %1496 = vmatprep.mubr.f32.mxu0 0.0
    %1497 = vmatmul.mubr.f32.gmra.mrb[0].mxu0 %v1411
    %v1498 = vpop.f32.mrb[0].mxu0
    %v1499 = vadd.f32 0.0, %v1498
    %v1500 = vpop.f32.mrb[0].mxu0
    %1501 = vmatprep.mubr.f32.mxu0 0.0
    %1502 = vmatmul.mubr.f32.gmra.mrb[0].mxu0 %v1413
    %v1503 = vpop.f32.mrb[0].mxu0
    %v1504 = vadd.f32 0.0, %v1503
    %v1505 = vpop.f32.mrb[0].mxu0
    %1506 = vmatprep.mubr.f32.mxu0 0.0
    %1507 = vmatmul.mubr.f32.gmra.mrb[0].mxu0 %v1415
    %v1508 = vpop.f32.mrb[0].mxu0
    %v1509 = vadd.f32 0.0, %v1508
    %v1510 = vpop.f32.mrb[0].mxu0
    %1511 = vmatprep.mubr.f32.mxu0 0.0
    %1512 = vmatmul.mubr.f32.gmra.mrb[0].mxu0 %v1417
    %v1513 = vpop.f32.mrb[0].mxu0
    %v1514 = vadd.f32 0.0, %v1513
    %v1515 = vpop.f32.mrb[0].mxu0
    %1516 = vmatprep.mubr.f32.mxu0 0.0
    %1517 = vmatmul.mubr.f32.gmra.mrb[0].mxu0 %v1419
    %v1518 = vpop.f32.mrb[0].mxu0
    %v1519 = vadd.f32 0.0, %v1518
    %v1520 = vpop.f32.mrb[0].mxu0
    %1521 = vmatprep.mubr.f32.mxu0 0.0
    %1522 = vmatmul.mubr.f32.gmra.mrb[0].mxu0 %v1421
    %v1523 = vpop.f32.mrb[0].mxu0
    %v1524 = vadd.f32 0.0, %v1523
    %v1525 = vpop.f32.mrb[0].mxu0
    %1526 = vmatprep.mubr.f32.mxu0 0.0
    %1527 = vmatmul.mubr.f32.gmra.mrb[0].mxu0 %v1423
    %v1528 = vpop.f32.mrb[0].mxu0
    %v1529 = vadd.f32 0.0, %v1528
    %v1530 = vpop.f32.mrb[0].mxu0
    %1531 = vmatprep.mubr.f32.mxu0 0.0
    %1532 = vmatmul.mubr.f32.gmra.mrb[0].mxu0 %v1425
    %v1533 = vpop.f32.mrb[0].mxu0
    %v1534 = vadd.f32 0.0, %v1533
    %v1535 = vpop.f32.mrb[0].mxu0
    %1536 = vmatprep.mubr.f32.mxu0 0.0
    %1537 = vmatmul.mubr.f32.gmra.mrb[0].mxu0 %v1427
    %v1538 = vpop.f32.mrb[0].mxu0
    %v1539 = vadd.f32 0.0, %v1538
    %v1540 = vpop.f32.mrb[0].mxu0
    %1541 = vdwg.mxu0
    %v1542 = vadd.f32 %v1245, %v1499
    %v1543 = vadd.f32 %v1246, %v1504
    %v1544 = vadd.f32 %v1247, %v1509
    %v1545 = vadd.f32 %v1248, %v1514
    %v1546 = vadd.f32 %v1249, %v1519
    %v1547 = vadd.f32 %v1250, %v1524
    %v1548 = vadd.f32 %v1251, %v1529
    %v1549 = vadd.f32 %v1252, %v1534
    %v1550 = vadd.f32 %v1253, %v1539
    %v1551 = vcombine.high %v1270, %v1270
    %v1552 = vcombine.high %v1286, %v1286
    %v1553 = vrot.slane %v1263, 7
    %v1554 = vrot.slane %v1553, 2
    %v1555 = vrot.slane %v1271, 7
    %v1556 = vsel %vm266, %v1554, %v1555
    %v1557 = vrot.slane %v1555, 2
    %v1558 = vrot.slane %v1270, 7
    %v1559 = vsel %vm266, %v1557, %v1558
    %v1560 = vrot.slane %v1558, 2
    %v1561 = vrot.slane %v1551, 7
    %v1562 = vsel %vm266, %v1560, %v1561
    %v1563 = vrot.slane %v1279, 7
    %v1564 = vrot.slane %v1563, 2
    %v1565 = vrot.slane %v1287, 7
    %v1566 = vsel %vm266, %v1564, %v1565
    %v1567 = vrot.slane %v1565, 2
    %v1568 = vrot.slane %v1286, 7
    %v1569 = vsel %vm266, %v1567, %v1568
    %v1570 = vrot.slane %v1568, 2
    %v1571 = vrot.slane %v1552, 7
    %v1572 = vsel %vm266, %v1570, %v1571
    %s1573 = scalar_lea.vmem %s1, 16
    %v1574 = vld [vmem:[%s1573] sm:$0x7]
    %v1575 = vcombine.low %v280, %v283
    %v1576 = vcombine.low %v286, %v290
    %v1578 = vunpack.c.l.s4 1983009808
    %v1579 = vunpack.c.0.s8 %v1578
    %v1580 = vlaneseq
    %v1581 = vshrl.u32 %v1580, 7
    %v1582 = vsub.s32 %v1579, %v1581
    %v1583 = vrot.slane %v1575, %v1582
    %v1585 = vunpack.c.l.s4 1983009808
    %v1586 = vunpack.c.0.s8 %v1585
    %v1587 = vlaneseq
    %v1588 = vshrl.u32 %v1587, 7
    %v1589 = vsub.s32 %v1586, %v1588
    %v1590 = vrot.slane %v1576, %v1589
    %v1591 = vcombine.low %v1583, %v1590
    %v1592 = vcombine.low %v293, %v296
    %v1593 = vcombine.low %v300, %v303
    %v1595 = vunpack.c.l.s4 1983009808
    %v1596 = vunpack.c.0.s8 %v1595
    %v1597 = vlaneseq
    %v1598 = vshrl.u32 %v1597, 7
    %v1599 = vsub.s32 %v1596, %v1598
    %v1600 = vrot.slane %v1592, %v1599
    %v1602 = vunpack.c.l.s4 1983009808
    %v1603 = vunpack.c.0.s8 %v1602
    %v1604 = vlaneseq
    %v1605 = vshrl.u32 %v1604, 7
    %v1606 = vsub.s32 %v1603, %v1605
    %v1607 = vrot.slane %v1593, %v1606
    %v1608 = vcombine.low %v1600, %v1607
    %v1609 = vcombine.low %v306, %v310
    %v1610 = vcombine.low %v313, %v316
    %v1612 = vunpack.c.l.s4 1983009808
    %v1613 = vunpack.c.0.s8 %v1612
    %v1614 = vlaneseq
    %v1615 = vshrl.u32 %v1614, 7
    %v1616 = vsub.s32 %v1613, %v1615
    %v1617 = vrot.slane %v1609, %v1616
    %v1619 = vunpack.c.l.s4 1983009808
    %v1620 = vunpack.c.0.s8 %v1619
    %v1621 = vlaneseq
    %v1622 = vshrl.u32 %v1621, 7
    %v1623 = vsub.s32 %v1620, %v1622
    %v1624 = vrot.slane %v1610, %v1623
    %v1625 = vcombine.low %v1617, %v1624
    %v1626 = vcombine.low %v320, %v323
    %v1627 = vcombine.low %v326, %v1556
    %v1629 = vunpack.c.l.s4 1983009808
    %v1630 = vunpack.c.0.s8 %v1629
    %v1631 = vlaneseq
    %v1632 = vshrl.u32 %v1631, 7
    %v1633 = vsub.s32 %v1630, %v1632
    %v1634 = vrot.slane %v1626, %v1633
    %v1636 = vunpack.c.l.s4 1983009808
    %v1637 = vunpack.c.0.s8 %v1636
    %v1638 = vlaneseq
    %v1639 = vshrl.u32 %v1638, 7
    %v1640 = vsub.s32 %v1637, %v1639
    %v1641 = vrot.slane %v1627, %v1640
    %v1642 = vcombine.low %v1634, %v1641
    %v1643 = vcombine.low %v1559, %v1562
    %v1644 = vcombine.low %v340, %v343
    %v1646 = vunpack.c.l.s4 1983009808
    %v1647 = vunpack.c.0.s8 %v1646
    %v1648 = vlaneseq
    %v1649 = vshrl.u32 %v1648, 7
    %v1650 = vsub.s32 %v1647, %v1649
    %v1651 = vrot.slane %v1643, %v1650
    %v1653 = vunpack.c.l.s4 1983009808
    %v1654 = vunpack.c.0.s8 %v1653
    %v1655 = vlaneseq
    %v1656 = vshrl.u32 %v1655, 7
    %v1657 = vsub.s32 %v1654, %v1656
    %v1658 = vrot.slane %v1644, %v1657
    %v1659 = vcombine.low %v1651, %v1658
    %v1660 = vcombine.low %v346, %v350
    %v1661 = vcombine.low %v353, %v356
    %v1663 = vunpack.c.l.s4 1983009808
    %v1664 = vunpack.c.0.s8 %v1663
    %v1665 = vlaneseq
    %v1666 = vshrl.u32 %v1665, 7
    %v1667 = vsub.s32 %v1664, %v1666
    %v1668 = vrot.slane %v1660, %v1667
    %v1670 = vunpack.c.l.s4 1983009808
    %v1671 = vunpack.c.0.s8 %v1670
    %v1672 = vlaneseq
    %v1673 = vshrl.u32 %v1672, 7
    %v1674 = vsub.s32 %v1671, %v1673
    %v1675 = vrot.slane %v1661, %v1674
    %v1676 = vcombine.low %v1668, %v1675
    %v1677 = vcombine.low %v360, %v363
    %v1678 = vcombine.low %v366, %v370
    %v1680 = vunpack.c.l.s4 1983009808
    %v1681 = vunpack.c.0.s8 %v1680
    %v1682 = vlaneseq
    %v1683 = vshrl.u32 %v1682, 7
    %v1684 = vsub.s32 %v1681, %v1683
    %v1685 = vrot.slane %v1677, %v1684
    %v1687 = vunpack.c.l.s4 1983009808
    %v1688 = vunpack.c.0.s8 %v1687
    %v1689 = vlaneseq
    %v1690 = vshrl.u32 %v1689, 7
    %v1691 = vsub.s32 %v1688, %v1690
    %v1692 = vrot.slane %v1678, %v1691
    %v1693 = vcombine.low %v1685, %v1692
    %v1694 = vcombine.low %v373, %v376
    %v1695 = vcombine.low %v380, %v383
    %v1697 = vunpack.c.l.s4 1983009808
    %v1698 = vunpack.c.0.s8 %v1697
    %v1699 = vlaneseq
    %v1700 = vshrl.u32 %v1699, 7
    %v1701 = vsub.s32 %v1698, %v1700
    %v1702 = vrot.slane %v1694, %v1701
    %v1704 = vunpack.c.l.s4 1983009808
    %v1705 = vunpack.c.0.s8 %v1704
    %v1706 = vlaneseq
    %v1707 = vshrl.u32 %v1706, 7
    %v1708 = vsub.s32 %v1705, %v1707
    %v1709 = vrot.slane %v1695, %v1708
    %v1710 = vcombine.low %v1702, %v1709
    %v1711 = vcombine.low %v386, %v1566
    %v1712 = vcombine.low %v1569, %v1572
    %v1714 = vunpack.c.l.s4 1983009808
    %v1715 = vunpack.c.0.s8 %v1714
    %v1716 = vlaneseq
    %v1717 = vshrl.u32 %v1716, 7
    %v1718 = vsub.s32 %v1715, %v1717
    %v1719 = vrot.slane %v1711, %v1718
    %v1721 = vunpack.c.l.s4 1983009808
    %v1722 = vunpack.c.0.s8 %v1721
    %v1723 = vlaneseq
    %v1724 = vshrl.u32 %v1723, 7
    %v1725 = vsub.s32 %v1722, %v1724
    %v1726 = vrot.slane %v1712, %v1725
    %v1727 = vcombine.low %v1719, %v1726
    %v1728 = vsel %vm542, %v1591, 0
    %v1730 = vsel %vm542, %v1608, 0
    %v1732 = vsel %vm542, %v1625, 0
    %v1734 = vsel %vm542, %v1642, 0
    %v1736 = vsel %vm542, %v1659, 0
    %v1738 = vsel %vm542, %v1676, 0
    %v1740 = vsel %vm542, %v1693, 0
    %v1742 = vsel %vm542, %v1710, 0
    %v1744 = vsel %vm542, %v1727, 0
    %v1747 = vsel %vm561, %v1574, 0
    %1749 = vmatprep.subr.mxu0 0.0
    %1750 = vmatpush1.msra.mxu0 %v1747
    %1751 = vmatprep.subr.mxu0 0.0
    %1752 = vmatpush1.msra.mxu0 0.0
    %1753 = vmatprep.subr.mxu0 0.0
    %1754 = vmatpush1.msra.mxu0 0.0
    %1755 = vmatprep.subr.mxu0 0.0
    %1756 = vmatpush1.msra.mxu0 0.0
    %1757 = vmatprep.subr.mxu0 0.0
    %1758 = vmatpush1.msra.mxu0 0.0
    %1759 = vmatprep.subr.mxu0 0.0
    %1760 = vmatpush1.msra.mxu0 0.0
    %1761 = vmatprep.subr.mxu0 0.0
    %1762 = vmatpush1.msra.mxu0 0.0
    %1763 = vmatprep.subr.mxu0 0.0
    %1764 = vmatpush1.msra.mxu0 0.0
    %1765 = vmatprep.subr.mxu0 0.0
    %1766 = vmatpush1.msra.mxu0 0.0
    %1767 = vmatprep.subr.mxu0 0.0
    %1768 = vmatpush1.msra.mxu0 0.0
    %1769 = vmatprep.subr.mxu0 0.0
    %1770 = vmatpush1.msra.mxu0 0.0
    %1771 = vmatprep.subr.mxu0 0.0
    %1772 = vmatpush1.msra.mxu0 0.0
    %1773 = vmatprep.subr.mxu0 0.0
    %1774 = vmatpush1.msra.mxu0 0.0
    %1775 = vmatprep.subr.mxu0 0.0
    %1776 = vmatpush1.msra.mxu0 0.0
    %1777 = vmatprep.subr.mxu0 0.0
    %1778 = vmatpush1.msra.mxu0 0.0
    %1779 = vmatprep.subr.mxu0 0.0
    %1780 = vmatpush1.msra.mxu0 0.0
    %1781 = vmatprep.subr.mxu0 0.0
    %1782 = vmatpush1.msra.mxu0 0.0
    %1783 = vmatprep.subr.mxu0 0.0
    %1784 = vmatpush1.msra.mxu0 0.0
    %1785 = vmatprep.subr.mxu0 0.0
    %1786 = vmatpush1.msra.mxu0 0.0
    %1787 = vmatprep.subr.mxu0 0.0
    %1788 = vmatpush1.msra.mxu0 0.0
    %1789 = vmatprep.subr.mxu0 0.0
    %1790 = vmatpush1.msra.mxu0 0.0
    %1791 = vmatprep.subr.mxu0 0.0
    %1792 = vmatpush1.msra.mxu0 0.0
    %1793 = vmatprep.subr.mxu0 0.0
    %1794 = vmatpush1.msra.mxu0 0.0
    %1795 = vmatprep.subr.mxu0 0.0
    %1796 = vmatpush1.msra.mxu0 0.0
    %1797 = vmatprep.subr.mxu0 0.0
    %1798 = vmatpush1.msra.mxu0 0.0
    %1799 = vmatprep.subr.mxu0 0.0
    %1800 = vmatpush1.msra.mxu0 0.0
    %1801 = vmatprep.subr.mxu0 0.0
    %1802 = vmatpush1.msra.mxu0 0.0
    %1803 = vmatprep.subr.mxu0 0.0
    %1804 = vmatpush1.msra.mxu0 0.0
    %1805 = vmatprep.subr.mxu0 0.0
    %1806 = vmatpush1.msra.mxu0 0.0
    %1807 = vmatprep.subr.mxu0 0.0
    %1808 = vmatpush1.msra.mxu0 0.0
    %1809 = vmatprep.subr.mxu0 0.0
    %1810 = vmatpush1.msra.mxu0 0.0
    %1811 = vmatprep.subr.mxu0 0.0
    %1812 = vmatpush1.msra.mxu0 0.0
    %1813 = vmatprep.mubr.f32.mxu0 0.0
    %1814 = vmatmul.mubr.f32.gmra.mrb[0].mxu0 %v1728
    %v1815 = vpop.f32.mrb[0].mxu0
    %v1816 = vadd.f32 0.0, %v1815
    %v1817 = vpop.f32.mrb[0].mxu0
    %1818 = vmatprep.mubr.f32.mxu0 0.0
    %1819 = vmatmul.mubr.f32.gmra.mrb[0].mxu0 %v1730
    %v1820 = vpop.f32.mrb[0].mxu0
    %v1821 = vadd.f32 0.0, %v1820
    %v1822 = vpop.f32.mrb[0].mxu0
    %1823 = vmatprep.mubr.f32.mxu0 0.0
    %1824 = vmatmul.mubr.f32.gmra.mrb[0].mxu0 %v1732
    %v1825 = vpop.f32.mrb[0].mxu0
    %v1826 = vadd.f32 0.0, %v1825
    %v1827 = vpop.f32.mrb[0].mxu0
    %1828 = vmatprep.mubr.f32.mxu0 0.0
    %1829 = vmatmul.mubr.f32.gmra.mrb[0].mxu0 %v1734
    %v1830 = vpop.f32.mrb[0].mxu0
    %v1831 = vadd.f32 0.0, %v1830
    %v1832 = vpop.f32.mrb[0].mxu0
    %1833 = vmatprep.mubr.f32.mxu0 0.0
    %1834 = vmatmul.mubr.f32.gmra.mrb[0].mxu0 %v1736
    %v1835 = vpop.f32.mrb[0].mxu0
    %v1836 = vadd.f32 0.0, %v1835
    %v1837 = vpop.f32.mrb[0].mxu0
    %1838 = vmatprep.mubr.f32.mxu0 0.0
    %1839 = vmatmul.mubr.f32.gmra.mrb[0].mxu0 %v1738
    %v1840 = vpop.f32.mrb[0].mxu0
    %v1841 = vadd.f32 0.0, %v1840
    %v1842 = vpop.f32.mrb[0].mxu0
    %1843 = vmatprep.mubr.f32.mxu0 0.0
    %1844 = vmatmul.mubr.f32.gmra.mrb[0].mxu0 %v1740
    %v1845 = vpop.f32.mrb[0].mxu0
    %v1846 = vadd.f32 0.0, %v1845
    %v1847 = vpop.f32.mrb[0].mxu0
    %1848 = vmatprep.mubr.f32.mxu0 0.0
    %1849 = vmatmul.mubr.f32.gmra.mrb[0].mxu0 %v1742
    %v1850 = vpop.f32.mrb[0].mxu0
    %v1851 = vadd.f32 0.0, %v1850
    %v1852 = vpop.f32.mrb[0].mxu0
    %1853 = vmatprep.mubr.f32.mxu0 0.0
    %1854 = vmatmul.mubr.f32.gmra.mrb[0].mxu0 %v1744
    %v1855 = vpop.f32.mrb[0].mxu0
    %v1856 = vadd.f32 0.0, %v1855
    %v1857 = vpop.f32.mrb[0].mxu0
    %1858 = vdwg.mxu0
    %v1859 = vadd.f32 %v1542, %v1816
    %v1860 = vadd.f32 %v1543, %v1821
    %v1861 = vadd.f32 %v1544, %v1826
    %v1862 = vadd.f32 %v1545, %v1831
    %v1863 = vadd.f32 %v1546, %v1836
    %v1864 = vadd.f32 %v1547, %v1841
    %v1865 = vadd.f32 %v1548, %v1846
    %v1866 = vadd.f32 %v1549, %v1851
    %v1867 = vadd.f32 %v1550, %v1856
    %s1868 = scalar_lea.vmem %s1, 20
    %v1869 = vld [vmem:[%s1868] sm:$0x7]
    %v1870 = vcombine.low %v249, %v102
    %v1872 = vunpack.c.l.s4 1983009808
    %v1873 = vunpack.c.0.s8 %v1872
    %v1874 = vlaneseq
    %v1875 = vshrl.u32 %v1874, 7
    %v1876 = vsub.s32 %v1873, %v1875
    %v1877 = vrot.slane %v1870, %v1876
    %v1878 = vcombine.low %v700, %v1877
    %v1879 = vcombine.low %v101, %v250
    %v1881 = vunpack.c.l.s4 1983009808
    %v1882 = vunpack.c.0.s8 %v1881
    %v1883 = vlaneseq
    %v1884 = vshrl.u32 %v1883, 7
    %v1885 = vsub.s32 %v1882, %v1884
    %v1886 = vrot.slane %v1879, %v1885
    %v1887 = vcombine.low %v1886, %v724
    %v1888 = vcombine.low %v251, %v134
    %v1889 = vcombine.low %v133, %v252
    %v1891 = vunpack.c.l.s4 1983009808
    %v1892 = vunpack.c.0.s8 %v1891
    %v1893 = vlaneseq
    %v1894 = vshrl.u32 %v1893, 7
    %v1895 = vsub.s32 %v1892, %v1894
    %v1896 = vrot.slane %v1888, %v1895
    %v1898 = vunpack.c.l.s4 1983009808
    %v1899 = vunpack.c.0.s8 %v1898
    %v1900 = vlaneseq
    %v1901 = vshrl.u32 %v1900, 7
    %v1902 = vsub.s32 %v1899, %v1901
    %v1903 = vrot.slane %v1889, %v1902
    %v1904 = vcombine.low %v1896, %v1903
    %v1905 = vcombine.low %v253, %v1271
    %v1907 = vunpack.c.l.s4 1983009808
    %v1908 = vunpack.c.0.s8 %v1907
    %v1909 = vlaneseq
    %v1910 = vshrl.u32 %v1909, 7
    %v1911 = vsub.s32 %v1908, %v1910
    %v1912 = vrot.slane %v1905, %v1911
    %v1913 = vcombine.low %v751, %v1912
    %v1914 = vcombine.low %v1270, %v1551
    %v1916 = vunpack.c.l.s4 1983009808
    %v1917 = vunpack.c.0.s8 %v1916
    %v1918 = vlaneseq
    %v1919 = vshrl.u32 %v1918, 7
    %v1920 = vsub.s32 %v1917, %v1919
    %v1921 = vrot.slane %v1914, %v1920
    %v1922 = vcombine.low %v1921, %v775
    %v1923 = vcombine.low %v255, %v198
    %v1924 = vcombine.low %v197, %v256
    %v1926 = vunpack.c.l.s4 1983009808
    %v1927 = vunpack.c.0.s8 %v1926
    %v1928 = vlaneseq
    %v1929 = vshrl.u32 %v1928, 7
    %v1930 = vsub.s32 %v1927, %v1929
    %v1931 = vrot.slane %v1923, %v1930
    %v1933 = vunpack.c.l.s4 1983009808
    %v1934 = vunpack.c.0.s8 %v1933
    %v1935 = vlaneseq
    %v1936 = vshrl.u32 %v1935, 7
    %v1937 = vsub.s32 %v1934, %v1936
    %v1938 = vrot.slane %v1924, %v1937
    %v1939 = vcombine.low %v1931, %v1938
    %v1940 = vcombine.low %v257, %v230
    %v1942 = vunpack.c.l.s4 1983009808
    %v1943 = vunpack.c.0.s8 %v1942
    %v1944 = vlaneseq
    %v1945 = vshrl.u32 %v1944, 7
    %v1946 = vsub.s32 %v1943, %v1945
    %v1947 = vrot.slane %v1940, %v1946
    %v1948 = vcombine.low %v802, %v1947
    %v1949 = vcombine.low %v229, %v258
    %v1951 = vunpack.c.l.s4 1983009808
    %v1952 = vunpack.c.0.s8 %v1951
    %v1953 = vlaneseq
    %v1954 = vshrl.u32 %v1953, 7
    %v1955 = vsub.s32 %v1952, %v1954
    %v1956 = vrot.slane %v1949, %v1955
    %v1957 = vcombine.low %v1956, %v826
    %v1958 = vcombine.low %v259, %v1287
    %v1959 = vcombine.low %v1286, %v1552
    %v1961 = vunpack.c.l.s4 1983009808
    %v1962 = vunpack.c.0.s8 %v1961
    %v1963 = vlaneseq
    %v1964 = vshrl.u32 %v1963, 7
    %v1965 = vsub.s32 %v1962, %v1964
    %v1966 = vrot.slane %v1958, %v1965
    %v1968 = vunpack.c.l.s4 1983009808
    %v1969 = vunpack.c.0.s8 %v1968
    %v1970 = vlaneseq
    %v1971 = vshrl.u32 %v1970, 7
    %v1972 = vsub.s32 %v1969, %v1971
    %v1973 = vrot.slane %v1959, %v1972
    %v1974 = vcombine.low %v1966, %v1973
    %v1975 = vsel %vm542, %v1878, 0
    %v1977 = vsel %vm542, %v1887, 0
    %v1979 = vsel %vm542, %v1904, 0
    %v1981 = vsel %vm542, %v1913, 0
    %v1983 = vsel %vm542, %v1922, 0
    %v1985 = vsel %vm542, %v1939, 0
    %v1987 = vsel %vm542, %v1948, 0
    %v1989 = vsel %vm542, %v1957, 0
    %v1991 = vsel %vm542, %v1974, 0
    %v1994 = vsel %vm561, %v1869, 0
    %1996 = vmatprep.subr.mxu0 0.0
    %1997 = vmatpush1.msra.mxu0 %v1994
    %1998 = vmatprep.subr.mxu0 0.0
    %1999 = vmatpush1.msra.mxu0 0.0
    %2000 = vmatprep.subr.mxu0 0.0
    %2001 = vmatpush1.msra.mxu0 0.0
    %2002 = vmatprep.subr.mxu0 0.0
    %2003 = vmatpush1.msra.mxu0 0.0
    %2004 = vmatprep.subr.mxu0 0.0
    %2005 = vmatpush1.msra.mxu0 0.0
    %2006 = vmatprep.subr.mxu0 0.0
    %2007 = vmatpush1.msra.mxu0 0.0
    %2008 = vmatprep.subr.mxu0 0.0
    %2009 = vmatpush1.msra.mxu0 0.0
    %2010 = vmatprep.subr.mxu0 0.0
    %2011 = vmatpush1.msra.mxu0 0.0
    %2012 = vmatprep.subr.mxu0 0.0
    %2013 = vmatpush1.msra.mxu0 0.0
    %2014 = vmatprep.subr.mxu0 0.0
    %2015 = vmatpush1.msra.mxu0 0.0
    %2016 = vmatprep.subr.mxu0 0.0
    %2017 = vmatpush1.msra.mxu0 0.0
    %2018 = vmatprep.subr.mxu0 0.0
    %2019 = vmatpush1.msra.mxu0 0.0
    %2020 = vmatprep.subr.mxu0 0.0
    %2021 = vmatpush1.msra.mxu0 0.0
    %2022 = vmatprep.subr.mxu0 0.0
    %2023 = vmatpush1.msra.mxu0 0.0
    %2024 = vmatprep.subr.mxu0 0.0
    %2025 = vmatpush1.msra.mxu0 0.0
    %2026 = vmatprep.subr.mxu0 0.0
    %2027 = vmatpush1.msra.mxu0 0.0
    %2028 = vmatprep.subr.mxu0 0.0
    %2029 = vmatpush1.msra.mxu0 0.0
    %2030 = vmatprep.subr.mxu0 0.0
    %2031 = vmatpush1.msra.mxu0 0.0
    %2032 = vmatprep.subr.mxu0 0.0
    %2033 = vmatpush1.msra.mxu0 0.0
    %2034 = vmatprep.subr.mxu0 0.0
    %2035 = vmatpush1.msra.mxu0 0.0
    %2036 = vmatprep.subr.mxu0 0.0
    %2037 = vmatpush1.msra.mxu0 0.0
    %2038 = vmatprep.subr.mxu0 0.0
    %2039 = vmatpush1.msra.mxu0 0.0
    %2040 = vmatprep.subr.mxu0 0.0
    %2041 = vmatpush1.msra.mxu0 0.0
    %2042 = vmatprep.subr.mxu0 0.0
    %2043 = vmatpush1.msra.mxu0 0.0
    %2044 = vmatprep.subr.mxu0 0.0
    %2045 = vmatpush1.msra.mxu0 0.0
    %2046 = vmatprep.subr.mxu0 0.0
    %2047 = vmatpush1.msra.mxu0 0.0
    %2048 = vmatprep.subr.mxu0 0.0
    %2049 = vmatpush1.msra.mxu0 0.0
    %2050 = vmatprep.subr.mxu0 0.0
    %2051 = vmatpush1.msra.mxu0 0.0
    %2052 = vmatprep.subr.mxu0 0.0
    %2053 = vmatpush1.msra.mxu0 0.0
    %2054 = vmatprep.subr.mxu0 0.0
    %2055 = vmatpush1.msra.mxu0 0.0
    %2056 = vmatprep.subr.mxu0 0.0
    %2057 = vmatpush1.msra.mxu0 0.0
    %2058 = vmatprep.subr.mxu0 0.0
    %2059 = vmatpush1.msra.mxu0 0.0
    %2060 = vmatprep.mubr.f32.mxu0 0.0
    %2061 = vmatmul.mubr.f32.gmra.mrb[0].mxu0 %v1975
    %v2062 = vpop.f32.mrb[0].mxu0
    %v2063 = vadd.f32 0.0, %v2062
    %v2064 = vpop.f32.mrb[0].mxu0
    %2065 = vmatprep.mubr.f32.mxu0 0.0
    %2066 = vmatmul.mubr.f32.gmra.mrb[0].mxu0 %v1977
    %v2067 = vpop.f32.mrb[0].mxu0
    %v2068 = vadd.f32 0.0, %v2067
    %v2069 = vpop.f32.mrb[0].mxu0
    %2070 = vmatprep.mubr.f32.mxu0 0.0
    %2071 = vmatmul.mubr.f32.gmra.mrb[0].mxu0 %v1979
    %v2072 = vpop.f32.mrb[0].mxu0
    %v2073 = vadd.f32 0.0, %v2072
    %v2074 = vpop.f32.mrb[0].mxu0
    %2075 = vmatprep.mubr.f32.mxu0 0.0
    %2076 = vmatmul.mubr.f32.gmra.mrb[0].mxu0 %v1981
    %v2077 = vpop.f32.mrb[0].mxu0
    %v2078 = vadd.f32 0.0, %v2077
    %v2079 = vpop.f32.mrb[0].mxu0
    %2080 = vmatprep.mubr.f32.mxu0 0.0
    %2081 = vmatmul.mubr.f32.gmra.mrb[0].mxu0 %v1983
    %v2082 = vpop.f32.mrb[0].mxu0
    %v2083 = vadd.f32 0.0, %v2082
    %v2084 = vpop.f32.mrb[0].mxu0
    %2085 = vmatprep.mubr.f32.mxu0 0.0
    %2086 = vmatmul.mubr.f32.gmra.mrb[0].mxu0 %v1985
    %v2087 = vpop.f32.mrb[0].mxu0
    %v2088 = vadd.f32 0.0, %v2087
    %v2089 = vpop.f32.mrb[0].mxu0
    %2090 = vmatprep.mubr.f32.mxu0 0.0
    %2091 = vmatmul.mubr.f32.gmra.mrb[0].mxu0 %v1987
    %v2092 = vpop.f32.mrb[0].mxu0
    %v2093 = vadd.f32 0.0, %v2092
    %v2094 = vpop.f32.mrb[0].mxu0
    %2095 = vmatprep.mubr.f32.mxu0 0.0
    %2096 = vmatmul.mubr.f32.gmra.mrb[0].mxu0 %v1989
    %v2097 = vpop.f32.mrb[0].mxu0
    %v2098 = vadd.f32 0.0, %v2097
    %v2099 = vpop.f32.mrb[0].mxu0
    %2100 = vmatprep.mubr.f32.mxu0 0.0
    %2101 = vmatmul.mubr.f32.gmra.mrb[0].mxu0 %v1991
    %v2102 = vpop.f32.mrb[0].mxu0
    %v2103 = vadd.f32 0.0, %v2102
    %v2104 = vpop.f32.mrb[0].mxu0
    %2105 = vdwg.mxu0
    %v2106 = vadd.f32 %v1859, %v2063
    %v2107 = vadd.f32 %v1860, %v2068
    %v2108 = vadd.f32 %v1861, %v2073
    %v2109 = vadd.f32 %v1862, %v2078
    %v2110 = vadd.f32 %v1863, %v2083
    %v2111 = vadd.f32 %v1864, %v2088
    %v2112 = vadd.f32 %v1865, %v2093
    %v2113 = vadd.f32 %v1866, %v2098
    %v2114 = vadd.f32 %v1867, %v2103
    %v2117 = vcombine.high %v34, %v34
    %v2119 = vunpack.c.l.s4 1983009808
    %v2120 = vunpack.c.0.s8 %v2119
    %v2121 = vlaneseq
    %v2122 = vshrl.u32 %v2121, 7
    %v2123 = vsub.s32 %v2120, %v2122
    %v2124 = vrot.slane %v34, %v2123
    %v2126 = vunpack.c.l.s4 1983009808
    %v2127 = vunpack.c.0.s8 %v2126
    %v2128 = vlaneseq
    %v2129 = vshrl.u32 %v2128, 7
    %v2130 = vsub.s32 %v2127, %v2129
    %v2131 = vrot.slane %v2117, %v2130
    %v2132 = vcombine.high %v2124, %v2124
    %v2133 = vcombine.high %v42, %v42
    %v2135 = vunpack.c.l.s4 1983009808
    %v2136 = vunpack.c.0.s8 %v2135
    %v2137 = vlaneseq
    %v2138 = vshrl.u32 %v2137, 7
    %v2139 = vsub.s32 %v2136, %v2138
    %v2140 = vrot.slane %v42, %v2139
    %v2142 = vunpack.c.l.s4 1983009808
    %v2143 = vunpack.c.0.s8 %v2142
    %v2144 = vlaneseq
    %v2145 = vshrl.u32 %v2144, 7
    %v2146 = vsub.s32 %v2143, %v2145
    %v2147 = vrot.slane %v2133, %v2146
    %v2148 = vcombine.high %v2140, %v2140
    %s2149 = scalar_lea.vmem %s1, 24
    %v2150 = vld [vmem:[%s2149] sm:$0x7]
    %v2151 = vcombine.low %v707, %v717
    %v2152 = vcombine.low %v724, %v734
    %v2153 = vcombine.low %v741, %v751
    %v2154 = vcombine.low %v1263, %v1271
    %v2155 = vcombine.low %v1270, %v2124
    %v2157 = vunpack.c.l.s4 1983009808
    %v2158 = vunpack.c.0.s8 %v2157
    %v2159 = vlaneseq
    %v2160 = vshrl.u32 %v2159, 7
    %v2161 = vsub.s32 %v2158, %v2160
    %v2162 = vrot.slane %v2154, %v2161
    %v2164 = vunpack.c.l.s4 1983009808
    %v2165 = vunpack.c.0.s8 %v2164
    %v2166 = vlaneseq
    %v2167 = vshrl.u32 %v2166, 7
    %v2168 = vsub.s32 %v2165, %v2167
    %v2169 = vrot.slane %v2155, %v2168
    %v2170 = vcombine.low %v2162, %v2169
    %v2171 = vcombine.low %v2132, %v2131
    %v2173 = vunpack.c.l.s4 1983009808
    %v2174 = vunpack.c.0.s8 %v2173
    %v2175 = vlaneseq
    %v2176 = vshrl.u32 %v2175, 7
    %v2177 = vsub.s32 %v2174, %v2176
    %v2178 = vrot.slane %v2171, %v2177
    %v2179 = vcombine.low %v2178, %v785
    %v2180 = vcombine.low %v792, %v802
    %v2181 = vcombine.low %v809, %v819
    %v2182 = vcombine.low %v1279, %v1287
    %v2184 = vunpack.c.l.s4 1983009808
    %v2185 = vunpack.c.0.s8 %v2184
    %v2186 = vlaneseq
    %v2187 = vshrl.u32 %v2186, 7
    %v2188 = vsub.s32 %v2185, %v2187
    %v2189 = vrot.slane %v2182, %v2188
    %v2190 = vcombine.low %v826, %v2189
    %v2191 = vcombine.low %v1286, %v2140
    %v2192 = vcombine.low %v2148, %v2147
    %v2194 = vunpack.c.l.s4 1983009808
    %v2195 = vunpack.c.0.s8 %v2194
    %v2196 = vlaneseq
    %v2197 = vshrl.u32 %v2196, 7
    %v2198 = vsub.s32 %v2195, %v2197
    %v2199 = vrot.slane %v2191, %v2198
    %v2201 = vunpack.c.l.s4 1983009808
    %v2202 = vunpack.c.0.s8 %v2201
    %v2203 = vlaneseq
    %v2204 = vshrl.u32 %v2203, 7
    %v2205 = vsub.s32 %v2202, %v2204
    %v2206 = vrot.slane %v2192, %v2205
    %v2207 = vcombine.low %v2199, %v2206
    %v2208 = vsel %vm542, %v2151, 0
    %v2210 = vsel %vm542, %v2152, 0
    %v2212 = vsel %vm542, %v2153, 0
    %v2214 = vsel %vm542, %v2170, 0
    %v2216 = vsel %vm542, %v2179, 0
    %v2218 = vsel %vm542, %v2180, 0
    %v2220 = vsel %vm542, %v2181, 0
    %v2222 = vsel %vm542, %v2190, 0
    %v2224 = vsel %vm542, %v2207, 0
    %v2227 = vsel %vm561, %v2150, 0
    %2229 = vmatprep.subr.mxu0 0.0
    %2230 = vmatpush1.msra.mxu0 %v2227
    %2231 = vmatprep.subr.mxu0 0.0
    %2232 = vmatpush1.msra.mxu0 0.0
    %2233 = vmatprep.subr.mxu0 0.0
    %2234 = vmatpush1.msra.mxu0 0.0
    %2235 = vmatprep.subr.mxu0 0.0
    %2236 = vmatpush1.msra.mxu0 0.0
    %2237 = vmatprep.subr.mxu0 0.0
    %2238 = vmatpush1.msra.mxu0 0.0
    %2239 = vmatprep.subr.mxu0 0.0
    %2240 = vmatpush1.msra.mxu0 0.0
    %2241 = vmatprep.subr.mxu0 0.0
    %2242 = vmatpush1.msra.mxu0 0.0
    %2243 = vmatprep.subr.mxu0 0.0
    %2244 = vmatpush1.msra.mxu0 0.0
    %2245 = vmatprep.subr.mxu0 0.0
    %2246 = vmatpush1.msra.mxu0 0.0
    %2247 = vmatprep.subr.mxu0 0.0
    %2248 = vmatpush1.msra.mxu0 0.0
    %2249 = vmatprep.subr.mxu0 0.0
    %2250 = vmatpush1.msra.mxu0 0.0
    %2251 = vmatprep.subr.mxu0 0.0
    %2252 = vmatpush1.msra.mxu0 0.0
    %2253 = vmatprep.subr.mxu0 0.0
    %2254 = vmatpush1.msra.mxu0 0.0
    %2255 = vmatprep.subr.mxu0 0.0
    %2256 = vmatpush1.msra.mxu0 0.0
    %2257 = vmatprep.subr.mxu0 0.0
    %2258 = vmatpush1.msra.mxu0 0.0
    %2259 = vmatprep.subr.mxu0 0.0
    %2260 = vmatpush1.msra.mxu0 0.0
    %2261 = vmatprep.subr.mxu0 0.0
    %2262 = vmatpush1.msra.mxu0 0.0
    %2263 = vmatprep.subr.mxu0 0.0
    %2264 = vmatpush1.msra.mxu0 0.0
    %2265 = vmatprep.subr.mxu0 0.0
    %2266 = vmatpush1.msra.mxu0 0.0
    %2267 = vmatprep.subr.mxu0 0.0
    %2268 = vmatpush1.msra.mxu0 0.0
    %2269 = vmatprep.subr.mxu0 0.0
    %2270 = vmatpush1.msra.mxu0 0.0
    %2271 = vmatprep.subr.mxu0 0.0
    %2272 = vmatpush1.msra.mxu0 0.0
    %2273 = vmatprep.subr.mxu0 0.0
    %2274 = vmatpush1.msra.mxu0 0.0
    %2275 = vmatprep.subr.mxu0 0.0
    %2276 = vmatpush1.msra.mxu0 0.0
    %2277 = vmatprep.subr.mxu0 0.0
    %2278 = vmatpush1.msra.mxu0 0.0
    %2279 = vmatprep.subr.mxu0 0.0
    %2280 = vmatpush1.msra.mxu0 0.0
    %2281 = vmatprep.subr.mxu0 0.0
    %2282 = vmatpush1.msra.mxu0 0.0
    %2283 = vmatprep.subr.mxu0 0.0
    %2284 = vmatpush1.msra.mxu0 0.0
    %2285 = vmatprep.subr.mxu0 0.0
    %2286 = vmatpush1.msra.mxu0 0.0
    %2287 = vmatprep.subr.mxu0 0.0
    %2288 = vmatpush1.msra.mxu0 0.0
    %2289 = vmatprep.subr.mxu0 0.0
    %2290 = vmatpush1.msra.mxu0 0.0
    %2291 = vmatprep.subr.mxu0 0.0
    %2292 = vmatpush1.msra.mxu0 0.0
    %2293 = vmatprep.mubr.f32.mxu0 0.0
    %2294 = vmatmul.mubr.f32.gmra.mrb[0].mxu0 %v2208
    %v2295 = vpop.f32.mrb[0].mxu0
    %v2296 = vadd.f32 0.0, %v2295
    %v2297 = vpop.f32.mrb[0].mxu0
    %2298 = vmatprep.mubr.f32.mxu0 0.0
    %2299 = vmatmul.mubr.f32.gmra.mrb[0].mxu0 %v2210
    %v2300 = vpop.f32.mrb[0].mxu0
    %v2301 = vadd.f32 0.0, %v2300
    %v2302 = vpop.f32.mrb[0].mxu0
    %2303 = vmatprep.mubr.f32.mxu0 0.0
    %2304 = vmatmul.mubr.f32.gmra.mrb[0].mxu0 %v2212
    %v2305 = vpop.f32.mrb[0].mxu0
    %v2306 = vadd.f32 0.0, %v2305
    %v2307 = vpop.f32.mrb[0].mxu0
    %2308 = vmatprep.mubr.f32.mxu0 0.0
    %2309 = vmatmul.mubr.f32.gmra.mrb[0].mxu0 %v2214
    %v2310 = vpop.f32.mrb[0].mxu0
    %v2311 = vadd.f32 0.0, %v2310
    %v2312 = vpop.f32.mrb[0].mxu0
    %2313 = vmatprep.mubr.f32.mxu0 0.0
    %2314 = vmatmul.mubr.f32.gmra.mrb[0].mxu0 %v2216
    %v2315 = vpop.f32.mrb[0].mxu0
    %v2316 = vadd.f32 0.0, %v2315
    %v2317 = vpop.f32.mrb[0].mxu0
    %2318 = vmatprep.mubr.f32.mxu0 0.0
    %2319 = vmatmul.mubr.f32.gmra.mrb[0].mxu0 %v2218
    %v2320 = vpop.f32.mrb[0].mxu0
    %v2321 = vadd.f32 0.0, %v2320
    %v2322 = vpop.f32.mrb[0].mxu0
    %2323 = vmatprep.mubr.f32.mxu0 0.0
    %2324 = vmatmul.mubr.f32.gmra.mrb[0].mxu0 %v2220
    %v2325 = vpop.f32.mrb[0].mxu0
    %v2326 = vadd.f32 0.0, %v2325
    %v2327 = vpop.f32.mrb[0].mxu0
    %2328 = vmatprep.mubr.f32.mxu0 0.0
    %2329 = vmatmul.mubr.f32.gmra.mrb[0].mxu0 %v2222
    %v2330 = vpop.f32.mrb[0].mxu0
    %v2331 = vadd.f32 0.0, %v2330
    %v2332 = vpop.f32.mrb[0].mxu0
    %2333 = vmatprep.mubr.f32.mxu0 0.0
    %2334 = vmatmul.mubr.f32.gmra.mrb[0].mxu0 %v2224
    %v2335 = vpop.f32.mrb[0].mxu0
    %v2336 = vadd.f32 0.0, %v2335
    %v2337 = vpop.f32.mrb[0].mxu0
    %2338 = vdwg.mxu0
    %v2339 = vadd.f32 %v2106, %v2296
    %v2340 = vadd.f32 %v2107, %v2301
    %v2341 = vadd.f32 %v2108, %v2306
    %v2342 = vadd.f32 %v2109, %v2311
    %v2343 = vadd.f32 %v2110, %v2316
    %v2344 = vadd.f32 %v2111, %v2321
    %v2345 = vadd.f32 %v2112, %v2326
    %v2346 = vadd.f32 %v2113, %v2331
    %v2347 = vadd.f32 %v2114, %v2336
    %v2348 = vcombine.high %v2131, %v2131
    %v2349 = vcombine.high %v2147, %v2147
    %v2350 = vrot.slane %v2124, 7
    %v2351 = vrot.slane %v2350, 2
    %v2352 = vrot.slane %v2132, 7
    %v2353 = vsel %vm266, %v2351, %v2352
    %v2354 = vrot.slane %v2352, 2
    %v2355 = vrot.slane %v2131, 7
    %v2356 = vsel %vm266, %v2354, %v2355
    %v2357 = vrot.slane %v2355, 2
    %v2358 = vrot.slane %v2348, 7
    %v2359 = vsel %vm266, %v2357, %v2358
    %v2360 = vrot.slane %v2140, 7
    %v2361 = vrot.slane %v2360, 2
    %v2362 = vrot.slane %v2148, 7
    %v2363 = vsel %vm266, %v2361, %v2362
    %v2364 = vrot.slane %v2362, 2
    %v2365 = vrot.slane %v2147, 7
    %v2366 = vsel %vm266, %v2364, %v2365
    %v2367 = vrot.slane %v2365, 2
    %v2368 = vrot.slane %v2349, 7
    %v2369 = vsel %vm266, %v2367, %v2368
    %s2370 = scalar_lea.vmem %s1, 28
    %v2371 = vld [vmem:[%s2370] sm:$0x7]
    %v2372 = vcombine.low %v421, %v431
    %v2373 = vcombine.low %v438, %v448
    %v2374 = vcombine.low %v455, %v465
    %v2375 = vcombine.low %v1556, %v1559
    %v2376 = vcombine.low %v1562, %v2353
    %v2378 = vunpack.c.l.s4 1983009808
    %v2379 = vunpack.c.0.s8 %v2378
    %v2380 = vlaneseq
    %v2381 = vshrl.u32 %v2380, 7
    %v2382 = vsub.s32 %v2379, %v2381
    %v2383 = vrot.slane %v2375, %v2382
    %v2385 = vunpack.c.l.s4 1983009808
    %v2386 = vunpack.c.0.s8 %v2385
    %v2387 = vlaneseq
    %v2388 = vshrl.u32 %v2387, 7
    %v2389 = vsub.s32 %v2386, %v2388
    %v2390 = vrot.slane %v2376, %v2389
    %v2391 = vcombine.low %v2383, %v2390
    %v2392 = vcombine.low %v2356, %v2359
    %v2394 = vunpack.c.l.s4 1983009808
    %v2395 = vunpack.c.0.s8 %v2394
    %v2396 = vlaneseq
    %v2397 = vshrl.u32 %v2396, 7
    %v2398 = vsub.s32 %v2395, %v2397
    %v2399 = vrot.slane %v2392, %v2398
    %v2400 = vcombine.low %v2399, %v499
    %v2401 = vcombine.low %v506, %v516
    %v2402 = vcombine.low %v523, %v533
    %v2403 = vcombine.low %v1566, %v1569
    %v2405 = vunpack.c.l.s4 1983009808
    %v2406 = vunpack.c.0.s8 %v2405
    %v2407 = vlaneseq
    %v2408 = vshrl.u32 %v2407, 7
    %v2409 = vsub.s32 %v2406, %v2408
    %v2410 = vrot.slane %v2403, %v2409
    %v2411 = vcombine.low %v540, %v2410
    %v2412 = vcombine.low %v1572, %v2363
    %v2413 = vcombine.low %v2366, %v2369
    %v2415 = vunpack.c.l.s4 1983009808
    %v2416 = vunpack.c.0.s8 %v2415
    %v2417 = vlaneseq
    %v2418 = vshrl.u32 %v2417, 7
    %v2419 = vsub.s32 %v2416, %v2418
    %v2420 = vrot.slane %v2412, %v2419
    %v2422 = vunpack.c.l.s4 1983009808
    %v2423 = vunpack.c.0.s8 %v2422
    %v2424 = vlaneseq
    %v2425 = vshrl.u32 %v2424, 7
    %v2426 = vsub.s32 %v2423, %v2425
    %v2427 = vrot.slane %v2413, %v2426
    %v2428 = vcombine.low %v2420, %v2427
    %v2429 = vsel %vm542, %v2372, 0
    %v2431 = vsel %vm542, %v2373, 0
    %v2433 = vsel %vm542, %v2374, 0
    %v2435 = vsel %vm542, %v2391, 0
    %v2437 = vsel %vm542, %v2400, 0
    %v2439 = vsel %vm542, %v2401, 0
    %v2441 = vsel %vm542, %v2402, 0
    %v2443 = vsel %vm542, %v2411, 0
    %v2445 = vsel %vm542, %v2428, 0
    %v2448 = vsel %vm561, %v2371, 0
    %2450 = vmatprep.subr.mxu0 0.0
    %2451 = vmatpush1.msra.mxu0 %v2448
    %2452 = vmatprep.subr.mxu0 0.0
    %2453 = vmatpush1.msra.mxu0 0.0
    %2454 = vmatprep.subr.mxu0 0.0
    %2455 = vmatpush1.msra.mxu0 0.0
    %2456 = vmatprep.subr.mxu0 0.0
    %2457 = vmatpush1.msra.mxu0 0.0
    %2458 = vmatprep.subr.mxu0 0.0
    %2459 = vmatpush1.msra.mxu0 0.0
    %2460 = vmatprep.subr.mxu0 0.0
    %2461 = vmatpush1.msra.mxu0 0.0
    %2462 = vmatprep.subr.mxu0 0.0
    %2463 = vmatpush1.msra.mxu0 0.0
    %2464 = vmatprep.subr.mxu0 0.0
    %2465 = vmatpush1.msra.mxu0 0.0
    %2466 = vmatprep.subr.mxu0 0.0
    %2467 = vmatpush1.msra.mxu0 0.0
    %2468 = vmatprep.subr.mxu0 0.0
    %2469 = vmatpush1.msra.mxu0 0.0
    %2470 = vmatprep.subr.mxu0 0.0
    %2471 = vmatpush1.msra.mxu0 0.0
    %2472 = vmatprep.subr.mxu0 0.0
    %2473 = vmatpush1.msra.mxu0 0.0
    %2474 = vmatprep.subr.mxu0 0.0
    %2475 = vmatpush1.msra.mxu0 0.0
    %2476 = vmatprep.subr.mxu0 0.0
    %2477 = vmatpush1.msra.mxu0 0.0
    %2478 = vmatprep.subr.mxu0 0.0
    %2479 = vmatpush1.msra.mxu0 0.0
    %2480 = vmatprep.subr.mxu0 0.0
    %2481 = vmatpush1.msra.mxu0 0.0
    %2482 = vmatprep.subr.mxu0 0.0
    %2483 = vmatpush1.msra.mxu0 0.0
    %2484 = vmatprep.subr.mxu0 0.0
    %2485 = vmatpush1.msra.mxu0 0.0
    %2486 = vmatprep.subr.mxu0 0.0
    %2487 = vmatpush1.msra.mxu0 0.0
    %2488 = vmatprep.subr.mxu0 0.0
    %2489 = vmatpush1.msra.mxu0 0.0
    %2490 = vmatprep.subr.mxu0 0.0
    %2491 = vmatpush1.msra.mxu0 0.0
    %2492 = vmatprep.subr.mxu0 0.0
    %2493 = vmatpush1.msra.mxu0 0.0
    %2494 = vmatprep.subr.mxu0 0.0
    %2495 = vmatpush1.msra.mxu0 0.0
    %2496 = vmatprep.subr.mxu0 0.0
    %2497 = vmatpush1.msra.mxu0 0.0
    %2498 = vmatprep.subr.mxu0 0.0
    %2499 = vmatpush1.msra.mxu0 0.0
    %2500 = vmatprep.subr.mxu0 0.0
    %2501 = vmatpush1.msra.mxu0 0.0
    %2502 = vmatprep.subr.mxu0 0.0
    %2503 = vmatpush1.msra.mxu0 0.0
    %2504 = vmatprep.subr.mxu0 0.0
    %2505 = vmatpush1.msra.mxu0 0.0
    %2506 = vmatprep.subr.mxu0 0.0
    %2507 = vmatpush1.msra.mxu0 0.0
    %2508 = vmatprep.subr.mxu0 0.0
    %2509 = vmatpush1.msra.mxu0 0.0
    %2510 = vmatprep.subr.mxu0 0.0
    %2511 = vmatpush1.msra.mxu0 0.0
    %2512 = vmatprep.subr.mxu0 0.0
    %2513 = vmatpush1.msra.mxu0 0.0
    %2514 = vmatprep.mubr.f32.mxu0 0.0
    %2515 = vmatmul.mubr.f32.gmra.mrb[0].mxu0 %v2429
    %v2516 = vpop.f32.mrb[0].mxu0
    %v2517 = vadd.f32 0.0, %v2516
    %v2518 = vpop.f32.mrb[0].mxu0
    %2519 = vmatprep.mubr.f32.mxu0 0.0
    %2520 = vmatmul.mubr.f32.gmra.mrb[0].mxu0 %v2431
    %v2521 = vpop.f32.mrb[0].mxu0
    %v2522 = vadd.f32 0.0, %v2521
    %v2523 = vpop.f32.mrb[0].mxu0
    %2524 = vmatprep.mubr.f32.mxu0 0.0
    %2525 = vmatmul.mubr.f32.gmra.mrb[0].mxu0 %v2433
    %v2526 = vpop.f32.mrb[0].mxu0
    %v2527 = vadd.f32 0.0, %v2526
    %v2528 = vpop.f32.mrb[0].mxu0
    %2529 = vmatprep.mubr.f32.mxu0 0.0
    %2530 = vmatmul.mubr.f32.gmra.mrb[0].mxu0 %v2435
    %v2531 = vpop.f32.mrb[0].mxu0
    %v2532 = vadd.f32 0.0, %v2531
    %v2533 = vpop.f32.mrb[0].mxu0
    %2534 = vmatprep.mubr.f32.mxu0 0.0
    %2535 = vmatmul.mubr.f32.gmra.mrb[0].mxu0 %v2437
    %v2536 = vpop.f32.mrb[0].mxu0
    %v2537 = vadd.f32 0.0, %v2536
    %v2538 = vpop.f32.mrb[0].mxu0
    %2539 = vmatprep.mubr.f32.mxu0 0.0
    %2540 = vmatmul.mubr.f32.gmra.mrb[0].mxu0 %v2439
    %v2541 = vpop.f32.mrb[0].mxu0
    %v2542 = vadd.f32 0.0, %v2541
    %v2543 = vpop.f32.mrb[0].mxu0
    %2544 = vmatprep.mubr.f32.mxu0 0.0
    %2545 = vmatmul.mubr.f32.gmra.mrb[0].mxu0 %v2441
    %v2546 = vpop.f32.mrb[0].mxu0
    %v2547 = vadd.f32 0.0, %v2546
    %v2548 = vpop.f32.mrb[0].mxu0
    %2549 = vmatprep.mubr.f32.mxu0 0.0
    %2550 = vmatmul.mubr.f32.gmra.mrb[0].mxu0 %v2443
    %v2551 = vpop.f32.mrb[0].mxu0
    %v2552 = vadd.f32 0.0, %v2551
    %v2553 = vpop.f32.mrb[0].mxu0
    %2554 = vmatprep.mubr.f32.mxu0 0.0
    %2555 = vmatmul.mubr.f32.gmra.mrb[0].mxu0 %v2445
    %v2556 = vpop.f32.mrb[0].mxu0
    %v2557 = vadd.f32 0.0, %v2556
    %v2558 = vpop.f32.mrb[0].mxu0
    %2559 = vdwg.mxu0
    %v2560 = vadd.f32 %v2339, %v2517
    %v2561 = vadd.f32 %v2340, %v2522
    %v2562 = vadd.f32 %v2341, %v2527
    %v2563 = vadd.f32 %v2342, %v2532
    %v2564 = vadd.f32 %v2343, %v2537
    %v2565 = vadd.f32 %v2344, %v2542
    %v2566 = vadd.f32 %v2345, %v2547
    %v2567 = vadd.f32 %v2346, %v2552
    %v2568 = vadd.f32 %v2347, %v2557
    %s2569 = scalar_lea.vmem %s1, 32
    %v2570 = vld [vmem:[%s2569] sm:$0x7]
    %v2571 = vcombine.low %v993, %v1003
    %v2572 = vcombine.low %v1010, %v1020
    %v2573 = vcombine.low %v1027, %v1037
    %v2574 = vcombine.low %v1551, %v2132
    %v2576 = vunpack.c.l.s4 1983009808
    %v2577 = vunpack.c.0.s8 %v2576
    %v2578 = vlaneseq
    %v2579 = vshrl.u32 %v2578, 7
    %v2580 = vsub.s32 %v2577, %v2579
    %v2581 = vrot.slane %v2574, %v2580
    %v2582 = vcombine.low %v1350, %v2581
    %v2583 = vcombine.low %v2131, %v2348
    %v2585 = vunpack.c.l.s4 1983009808
    %v2586 = vunpack.c.0.s8 %v2585
    %v2587 = vlaneseq
    %v2588 = vshrl.u32 %v2587, 7
    %v2589 = vsub.s32 %v2586, %v2588
    %v2590 = vrot.slane %v2583, %v2589
    %v2591 = vcombine.low %v2590, %v1071
    %v2592 = vcombine.low %v1078, %v1088
    %v2593 = vcombine.low %v1095, %v1105
    %v2594 = vcombine.low %v1112, %v1409
    %v2595 = vcombine.low %v1552, %v2148
    %v2596 = vcombine.low %v2147, %v2349
    %v2598 = vunpack.c.l.s4 1983009808
    %v2599 = vunpack.c.0.s8 %v2598
    %v2600 = vlaneseq
    %v2601 = vshrl.u32 %v2600, 7
    %v2602 = vsub.s32 %v2599, %v2601
    %v2603 = vrot.slane %v2595, %v2602
    %v2605 = vunpack.c.l.s4 1983009808
    %v2606 = vunpack.c.0.s8 %v2605
    %v2607 = vlaneseq
    %v2608 = vshrl.u32 %v2607, 7
    %v2609 = vsub.s32 %v2606, %v2608
    %v2610 = vrot.slane %v2596, %v2609
    %v2611 = vcombine.low %v2603, %v2610
    %v2612 = vsel %vm542, %v2571, 0
    %v2614 = vsel %vm542, %v2572, 0
    %v2616 = vsel %vm542, %v2573, 0
    %v2618 = vsel %vm542, %v2582, 0
    %v2620 = vsel %vm542, %v2591, 0
    %v2622 = vsel %vm542, %v2592, 0
    %v2624 = vsel %vm542, %v2593, 0
    %v2626 = vsel %vm542, %v2594, 0
    %v2628 = vsel %vm542, %v2611, 0
    %v2631 = vsel %vm561, %v2570, 0
    %2633 = vmatprep.subr.mxu0 0.0
    %2634 = vmatpush1.msra.mxu0 %v2631
    %2635 = vmatprep.subr.mxu0 0.0
    %2636 = vmatpush1.msra.mxu0 0.0
    %2637 = vmatprep.subr.mxu0 0.0
    %2638 = vmatpush1.msra.mxu0 0.0
    %2639 = vmatprep.subr.mxu0 0.0
    %2640 = vmatpush1.msra.mxu0 0.0
    %2641 = vmatprep.subr.mxu0 0.0
    %2642 = vmatpush1.msra.mxu0 0.0
    %2643 = vmatprep.subr.mxu0 0.0
    %2644 = vmatpush1.msra.mxu0 0.0
    %2645 = vmatprep.subr.mxu0 0.0
    %2646 = vmatpush1.msra.mxu0 0.0
    %2647 = vmatprep.subr.mxu0 0.0
    %2648 = vmatpush1.msra.mxu0 0.0
    %2649 = vmatprep.subr.mxu0 0.0
    %2650 = vmatpush1.msra.mxu0 0.0
    %2651 = vmatprep.subr.mxu0 0.0
    %2652 = vmatpush1.msra.mxu0 0.0
    %2653 = vmatprep.subr.mxu0 0.0
    %2654 = vmatpush1.msra.mxu0 0.0
    %2655 = vmatprep.subr.mxu0 0.0
    %2656 = vmatpush1.msra.mxu0 0.0
    %2657 = vmatprep.subr.mxu0 0.0
    %2658 = vmatpush1.msra.mxu0 0.0
    %2659 = vmatprep.subr.mxu0 0.0
    %2660 = vmatpush1.msra.mxu0 0.0
    %2661 = vmatprep.subr.mxu0 0.0
    %2662 = vmatpush1.msra.mxu0 0.0
    %2663 = vmatprep.subr.mxu0 0.0
    %2664 = vmatpush1.msra.mxu0 0.0
    %2665 = vmatprep.subr.mxu0 0.0
    %2666 = vmatpush1.msra.mxu0 0.0
    %2667 = vmatprep.subr.mxu0 0.0
    %2668 = vmatpush1.msra.mxu0 0.0
    %2669 = vmatprep.subr.mxu0 0.0
    %2670 = vmatpush1.msra.mxu0 0.0
    %2671 = vmatprep.subr.mxu0 0.0
    %2672 = vmatpush1.msra.mxu0 0.0
    %2673 = vmatprep.subr.mxu0 0.0
    %2674 = vmatpush1.msra.mxu0 0.0
    %2675 = vmatprep.subr.mxu0 0.0
    %2676 = vmatpush1.msra.mxu0 0.0
    %2677 = vmatprep.subr.mxu0 0.0
    %2678 = vmatpush1.msra.mxu0 0.0
    %2679 = vmatprep.subr.mxu0 0.0
    %2680 = vmatpush1.msra.mxu0 0.0
    %2681 = vmatprep.subr.mxu0 0.0
    %2682 = vmatpush1.msra.mxu0 0.0
    %2683 = vmatprep.subr.mxu0 0.0
    %2684 = vmatpush1.msra.mxu0 0.0
    %2685 = vmatprep.subr.mxu0 0.0
    %2686 = vmatpush1.msra.mxu0 0.0
    %2687 = vmatprep.subr.mxu0 0.0
    %2688 = vmatpush1.msra.mxu0 0.0
    %2689 = vmatprep.subr.mxu0 0.0
    %2690 = vmatpush1.msra.mxu0 0.0
    %2691 = vmatprep.subr.mxu0 0.0
    %2692 = vmatpush1.msra.mxu0 0.0
    %2693 = vmatprep.subr.mxu0 0.0
    %2694 = vmatpush1.msra.mxu0 0.0
    %2695 = vmatprep.subr.mxu0 0.0
    %2696 = vmatpush1.msra.mxu0 0.0
    %2697 = vmatprep.mubr.f32.mxu0 0.0
    %2698 = vmatmul.mubr.f32.gmra.mrb[0].mxu0 %v2612
    %v2699 = vpop.f32.mrb[0].mxu0
    %v2700 = vadd.f32 0.0, %v2699
    %v2701 = vpop.f32.mrb[0].mxu0
    %2702 = vmatprep.mubr.f32.mxu0 0.0
    %2703 = vmatmul.mubr.f32.gmra.mrb[0].mxu0 %v2614
    %v2704 = vpop.f32.mrb[0].mxu0
    %v2705 = vadd.f32 0.0, %v2704
    %v2706 = vpop.f32.mrb[0].mxu0
    %2707 = vmatprep.mubr.f32.mxu0 0.0
    %2708 = vmatmul.mubr.f32.gmra.mrb[0].mxu0 %v2616
    %v2709 = vpop.f32.mrb[0].mxu0
    %v2710 = vadd.f32 0.0, %v2709
    %v2711 = vpop.f32.mrb[0].mxu0
    %2712 = vmatprep.mubr.f32.mxu0 0.0
    %2713 = vmatmul.mubr.f32.gmra.mrb[0].mxu0 %v2618
    %v2714 = vpop.f32.mrb[0].mxu0
    %v2715 = vadd.f32 0.0, %v2714
    %v2716 = vpop.f32.mrb[0].mxu0
    %2717 = vmatprep.mubr.f32.mxu0 0.0
    %2718 = vmatmul.mubr.f32.gmra.mrb[0].mxu0 %v2620
    %v2719 = vpop.f32.mrb[0].mxu0
    %v2720 = vadd.f32 0.0, %v2719
    %v2721 = vpop.f32.mrb[0].mxu0
    %2722 = vmatprep.mubr.f32.mxu0 0.0
    %2723 = vmatmul.mubr.f32.gmra.mrb[0].mxu0 %v2622
    %v2724 = vpop.f32.mrb[0].mxu0
    %v2725 = vadd.f32 0.0, %v2724
    %v2726 = vpop.f32.mrb[0].mxu0
    %2727 = vmatprep.mubr.f32.mxu0 0.0
    %2728 = vmatmul.mubr.f32.gmra.mrb[0].mxu0 %v2624
    %v2729 = vpop.f32.mrb[0].mxu0
    %v2730 = vadd.f32 0.0, %v2729
    %v2731 = vpop.f32.mrb[0].mxu0
    %2732 = vmatprep.mubr.f32.mxu0 0.0
    %2733 = vmatmul.mubr.f32.gmra.mrb[0].mxu0 %v2626
    %v2734 = vpop.f32.mrb[0].mxu0
    %v2735 = vadd.f32 0.0, %v2734
    %v2736 = vpop.f32.mrb[0].mxu0
    %2737 = vmatprep.mubr.f32.mxu0 0.0
    %2738 = vmatmul.mubr.f32.gmra.mrb[0].mxu0 %v2628
    %v2739 = vpop.f32.mrb[0].mxu0
    %v2740 = vadd.f32 0.0, %v2739
    %v2741 = vpop.f32.mrb[0].mxu0
    %2742 = vdwg.mxu0
    %v2743 = vadd.f32 %v2560, %v2700
    %v2744 = vadd.f32 %v2561, %v2705
    %v2745 = vadd.f32 %v2562, %v2710
    %v2746 = vadd.f32 %v2563, %v2715
    %v2747 = vadd.f32 %v2564, %v2720
    %v2748 = vadd.f32 %v2565, %v2725
    %v2749 = vadd.f32 %v2566, %v2730
    %v2750 = vadd.f32 %v2567, %v2735
    %v2751 = vadd.f32 %v2568, %v2740
    %v2752 = vld [vmem:[%s2] sm:$0x1]
    %v2754 = vlaneseq
    %v2755 = vshrl.u32 %v2754, 7
    %v2756 = vsub.s32 0, %v2755
    %v2757 = vrot.slane %v2752, %v2756
    %v2759 = vadd.f32 %v2743, %v2757
    %v2760 = vadd.f32 %v2744, %v2757
    %v2761 = vadd.f32 %v2745, %v2757
    %v2762 = vadd.f32 %v2746, %v2757
    %v2763 = vadd.f32 %v2747, %v2757
    %v2764 = vadd.f32 %v2748, %v2757
    %v2765 = vadd.f32 %v2749, %v2757
    %v2766 = vadd.f32 %v2750, %v2757
    %v2767 = vadd.f32 %v2751, %v2757
    %v2768 = vmax.f32 %v2759, 0.0
    %v2769 = vmax.f32 %v2760, 0.0
    %v2770 = vmax.f32 %v2761, 0.0
    %v2771 = vmax.f32 %v2762, 0.0
    %v2772 = vmax.f32 %v2763, 0.0
    %v2773 = vmax.f32 %v2764, 0.0
    %v2774 = vmax.f32 %v2765, 0.0
    %v2775 = vmax.f32 %v2766, 0.0
    %v2776 = vmax.f32 %v2767, 0.0
    %v2786 = vcombine.high %v2768, %v2768
    %v2788 = vunpack.c.l.s4 1983009808
    %v2789 = vunpack.c.0.s8 %v2788
    %v2790 = vlaneseq
    %v2791 = vshrl.u32 %v2790, 7
    %v2792 = vsub.s32 %v2789, %v2791
    %v2793 = vrot.slane %v2768, %v2792
    %v2795 = vunpack.c.l.s4 1983009808
    %v2796 = vunpack.c.0.s8 %v2795
    %v2797 = vlaneseq
    %v2798 = vshrl.u32 %v2797, 7
    %v2799 = vsub.s32 %v2796, %v2798
    %v2800 = vrot.slane %v2786, %v2799
    %v2801 = vcombine.high %v2793, %v2793
    %v2802 = vcombine.high %v2800, %v2800
    %v2803 = vcombine.high %v2769, %v2769
    %v2805 = vunpack.c.l.s4 1983009808
    %v2806 = vunpack.c.0.s8 %v2805
    %v2807 = vlaneseq
    %v2808 = vshrl.u32 %v2807, 7
    %v2809 = vsub.s32 %v2806, %v2808
    %v2810 = vrot.slane %v2769, %v2809
    %v2812 = vunpack.c.l.s4 1983009808
    %v2813 = vunpack.c.0.s8 %v2812
    %v2814 = vlaneseq
    %v2815 = vshrl.u32 %v2814, 7
    %v2816 = vsub.s32 %v2813, %v2815
    %v2817 = vrot.slane %v2803, %v2816
    %v2818 = vcombine.high %v2810, %v2810
    %v2819 = vcombine.high %v2817, %v2817
    %v2820 = vcombine.high %v2770, %v2770
    %v2822 = vunpack.c.l.s4 1983009808
    %v2823 = vunpack.c.0.s8 %v2822
    %v2824 = vlaneseq
    %v2825 = vshrl.u32 %v2824, 7
    %v2826 = vsub.s32 %v2823, %v2825
    %v2827 = vrot.slane %v2770, %v2826
    %v2829 = vunpack.c.l.s4 1983009808
    %v2830 = vunpack.c.0.s8 %v2829
    %v2831 = vlaneseq
    %v2832 = vshrl.u32 %v2831, 7
    %v2833 = vsub.s32 %v2830, %v2832
    %v2834 = vrot.slane %v2820, %v2833
    %v2835 = vcombine.high %v2827, %v2827
    %v2836 = vcombine.high %v2834, %v2834
    %v2837 = vcombine.high %v2771, %v2771
    %v2839 = vunpack.c.l.s4 1983009808
    %v2840 = vunpack.c.0.s8 %v2839
    %v2841 = vlaneseq
    %v2842 = vshrl.u32 %v2841, 7
    %v2843 = vsub.s32 %v2840, %v2842
    %v2844 = vrot.slane %v2771, %v2843
    %v2846 = vunpack.c.l.s4 1983009808
    %v2847 = vunpack.c.0.s8 %v2846
    %v2848 = vlaneseq
    %v2849 = vshrl.u32 %v2848, 7
    %v2850 = vsub.s32 %v2847, %v2849
    %v2851 = vrot.slane %v2837, %v2850
    %v2852 = vcombine.high %v2844, %v2844
    %v2853 = vcombine.high %v2851, %v2851
    %v2854 = vcombine.high %v2772, %v2772
    %v2856 = vunpack.c.l.s4 1983009808
    %v2857 = vunpack.c.0.s8 %v2856
    %v2858 = vlaneseq
    %v2859 = vshrl.u32 %v2858, 7
    %v2860 = vsub.s32 %v2857, %v2859
    %v2861 = vrot.slane %v2772, %v2860
    %v2863 = vunpack.c.l.s4 1983009808
    %v2864 = vunpack.c.0.s8 %v2863
    %v2865 = vlaneseq
    %v2866 = vshrl.u32 %v2865, 7
    %v2867 = vsub.s32 %v2864, %v2866
    %v2868 = vrot.slane %v2854, %v2867
    %v2869 = vcombine.high %v2861, %v2861
    %v2870 = vcombine.high %v2868, %v2868
    %v2871 = vcombine.high %v2773, %v2773
    %v2873 = vunpack.c.l.s4 1983009808
    %v2874 = vunpack.c.0.s8 %v2873
    %v2875 = vlaneseq
    %v2876 = vshrl.u32 %v2875, 7
    %v2877 = vsub.s32 %v2874, %v2876
    %v2878 = vrot.slane %v2773, %v2877
    %v2880 = vunpack.c.l.s4 1983009808
    %v2881 = vunpack.c.0.s8 %v2880
    %v2882 = vlaneseq
    %v2883 = vshrl.u32 %v2882, 7
    %v2884 = vsub.s32 %v2881, %v2883
    %v2885 = vrot.slane %v2871, %v2884
    %v2886 = vcombine.high %v2878, %v2878
    %v2887 = vcombine.high %v2885, %v2885
    %v2888 = vcombine.high %v2774, %v2774
    %v2890 = vunpack.c.l.s4 1983009808
    %v2891 = vunpack.c.0.s8 %v2890
    %v2892 = vlaneseq
    %v2893 = vshrl.u32 %v2892, 7
    %v2894 = vsub.s32 %v2891, %v2893
    %v2895 = vrot.slane %v2774, %v2894
    %v2897 = vunpack.c.l.s4 1983009808
    %v2898 = vunpack.c.0.s8 %v2897
    %v2899 = vlaneseq
    %v2900 = vshrl.u32 %v2899, 7
    %v2901 = vsub.s32 %v2898, %v2900
    %v2902 = vrot.slane %v2888, %v2901
    %v2903 = vcombine.high %v2895, %v2895
    %v2904 = vcombine.high %v2902, %v2902
    %v2905 = vcombine.high %v2775, %v2775
    %v2907 = vunpack.c.l.s4 1983009808
    %v2908 = vunpack.c.0.s8 %v2907
    %v2909 = vlaneseq
    %v2910 = vshrl.u32 %v2909, 7
    %v2911 = vsub.s32 %v2908, %v2910
    %v2912 = vrot.slane %v2775, %v2911
    %v2914 = vunpack.c.l.s4 1983009808
    %v2915 = vunpack.c.0.s8 %v2914
    %v2916 = vlaneseq
    %v2917 = vshrl.u32 %v2916, 7
    %v2918 = vsub.s32 %v2915, %v2917
    %v2919 = vrot.slane %v2905, %v2918
    %v2920 = vcombine.high %v2912, %v2912
    %v2921 = vcombine.high %v2919, %v2919
    %v2922 = vcombine.high %v2776, %v2776
    %v2924 = vunpack.c.l.s4 1983009808
    %v2925 = vunpack.c.0.s8 %v2924
    %v2926 = vlaneseq
    %v2927 = vshrl.u32 %v2926, 7
    %v2928 = vsub.s32 %v2925, %v2927
    %v2929 = vrot.slane %v2776, %v2928
    %v2931 = vunpack.c.l.s4 1983009808
    %v2932 = vunpack.c.0.s8 %v2931
    %v2933 = vlaneseq
    %v2934 = vshrl.u32 %v2933, 7
    %v2935 = vsub.s32 %v2932, %v2934
    %v2936 = vrot.slane %v2922, %v2935
    %v2937 = vcombine.high %v2929, %v2929
    %v2938 = vcombine.high %v2936, %v2936
    %v2939 = vld [vmem:[%s3] sm:$0xff]
    %v2940 = vrot.slane %v2793, 7
    %v2941 = vrot.slane %v2940, 2
    %v2942 = vrot.slane %v2801, 7
    %v2943 = vsel %vm266, %v2941, %v2942
    %v2944 = vrot.slane %v2942, 2
    %v2945 = vrot.slane %v2800, 7
    %v2946 = vsel %vm266, %v2944, %v2945
    %v2947 = vrot.slane %v2802, 7
    %v2948 = vrot.slane %v2947, 2
    %v2949 = vrot.slane %v2810, 7
    %v2950 = vsel %vm266, %v2948, %v2949
    %v2951 = vrot.slane %v2949, 2
    %v2952 = vrot.slane %v2818, 7
    %v2953 = vsel %vm266, %v2951, %v2952
    %v2954 = vrot.slane %v2817, 7
    %v2955 = vrot.slane %v2954, 2
    %v2956 = vrot.slane %v2819, 7
    %v2957 = vsel %vm266, %v2955, %v2956
    %v2958 = vrot.slane %v2956, 2
    %v2959 = vrot.slane %v2827, 7
    %v2960 = vsel %vm266, %v2958, %v2959
    %v2961 = vrot.slane %v2835, 7
    %v2962 = vrot.slane %v2961, 2
    %v2963 = vrot.slane %v2834, 7
    %v2964 = vsel %vm266, %v2962, %v2963
    %v2965 = vrot.slane %v2963, 2
    %v2966 = vrot.slane %v2836, 7
    %v2967 = vsel %vm266, %v2965, %v2966
    %v2968 = vrot.slane %v2868, 7
    %v2969 = vrot.slane %v2968, 2
    %v2970 = vrot.slane %v2870, 7
    %v2971 = vsel %vm266, %v2969, %v2970
    %v2972 = vrot.slane %v2970, 2
    %v2973 = vrot.slane %v2878, 7
    %v2974 = vsel %vm266, %v2972, %v2973
    %v2975 = vrot.slane %v2886, 7
    %v2976 = vrot.slane %v2975, 2
    %v2977 = vrot.slane %v2885, 7
    %v2978 = vsel %vm266, %v2976, %v2977
    %v2979 = vrot.slane %v2977, 2
    %v2980 = vrot.slane %v2887, 7
    %v2981 = vsel %vm266, %v2979, %v2980
    %v2982 = vrot.slane %v2895, 7
    %v2983 = vrot.slane %v2982, 2
    %v2984 = vrot.slane %v2903, 7
    %v2985 = vsel %vm266, %v2983, %v2984
    %v2986 = vrot.slane %v2984, 2
    %v2987 = vrot.slane %v2902, 7
    %v2988 = vsel %vm266, %v2986, %v2987
    %v2989 = vrot.slane %v2904, 7
    %v2990 = vrot.slane %v2989, 2
    %v2991 = vrot.slane %v2912, 7
    %v2992 = vsel %vm266, %v2990, %v2991
    %v2993 = vrot.slane %v2991, 2
    %v2994 = vrot.slane %v2920, 7
    %v2995 = vsel %vm266, %v2993, %v2994
    %s2996 = scalar_lea.vmem %s3, 8
    %v2997 = vld [vmem:[%s2996] sm:$0xff]
    %v2998 = vcombine.low %v2943, %v2946
    %v2999 = vcombine.low %v2950, %v2953
    %v3001 = vunpack.c.l.s4 1983009808
    %v3002 = vunpack.c.0.s8 %v3001
    %v3003 = vlaneseq
    %v3004 = vshrl.u32 %v3003, 7
    %v3005 = vsub.s32 %v3002, %v3004
    %v3006 = vrot.slane %v2998, %v3005
    %v3008 = vunpack.c.l.s4 1983009808
    %v3009 = vunpack.c.0.s8 %v3008
    %v3010 = vlaneseq
    %v3011 = vshrl.u32 %v3010, 7
    %v3012 = vsub.s32 %v3009, %v3011
    %v3013 = vrot.slane %v2999, %v3012
    %v3014 = vcombine.low %v3006, %v3013
    %v3015 = vcombine.low %v2957, %v2960
    %v3016 = vcombine.low %v2964, %v2967
    %v3018 = vunpack.c.l.s4 1983009808
    %v3019 = vunpack.c.0.s8 %v3018
    %v3020 = vlaneseq
    %v3021 = vshrl.u32 %v3020, 7
    %v3022 = vsub.s32 %v3019, %v3021
    %v3023 = vrot.slane %v3015, %v3022
    %v3025 = vunpack.c.l.s4 1983009808
    %v3026 = vunpack.c.0.s8 %v3025
    %v3027 = vlaneseq
    %v3028 = vshrl.u32 %v3027, 7
    %v3029 = vsub.s32 %v3026, %v3028
    %v3030 = vrot.slane %v3016, %v3029
    %v3031 = vcombine.low %v3023, %v3030
    %v3032 = vcombine.low %v2971, %v2974
    %v3033 = vcombine.low %v2978, %v2981
    %v3035 = vunpack.c.l.s4 1983009808
    %v3036 = vunpack.c.0.s8 %v3035
    %v3037 = vlaneseq
    %v3038 = vshrl.u32 %v3037, 7
    %v3039 = vsub.s32 %v3036, %v3038
    %v3040 = vrot.slane %v3032, %v3039
    %v3042 = vunpack.c.l.s4 1983009808
    %v3043 = vunpack.c.0.s8 %v3042
    %v3044 = vlaneseq
    %v3045 = vshrl.u32 %v3044, 7
    %v3046 = vsub.s32 %v3043, %v3045
    %v3047 = vrot.slane %v3033, %v3046
    %v3048 = vcombine.low %v3040, %v3047
    %v3049 = vcombine.low %v2985, %v2988
    %v3050 = vcombine.low %v2992, %v2995
    %v3052 = vunpack.c.l.s4 1983009808
    %v3053 = vunpack.c.0.s8 %v3052
    %v3054 = vlaneseq
    %v3055 = vshrl.u32 %v3054, 7
    %v3056 = vsub.s32 %v3053, %v3055
    %v3057 = vrot.slane %v3049, %v3056
    %v3059 = vunpack.c.l.s4 1983009808
    %v3060 = vunpack.c.0.s8 %v3059
    %v3061 = vlaneseq
    %v3062 = vshrl.u32 %v3061, 7
    %v3063 = vsub.s32 %v3060, %v3062
    %v3064 = vrot.slane %v3050, %v3063
    %v3065 = vcombine.low %v3057, %v3064
    %vm3066 = vcmask 64512
    %v3067 = vsel %vm3066, %v3014, 0
    %v3069 = vsel %vm3066, %v3031, 0
    %v3071 = vsel %vm3066, %v3048, 0
    %v3073 = vsel %vm3066, %v3065, 0
    %3075 = vmatprep.subr.mxu0 0.0
    %3076 = vmatpush1.msra.mxu0 %v2997
    %3077 = vmatprep.subr.mxu0 0.0
    %3078 = vmatpush1.msra.mxu0 0.0
    %3079 = vmatprep.subr.mxu0 0.0
    %3080 = vmatpush1.msra.mxu0 0.0
    %3081 = vmatprep.subr.mxu0 0.0
    %3082 = vmatpush1.msra.mxu0 0.0
    %3083 = vmatprep.subr.mxu0 0.0
    %3084 = vmatpush1.msra.mxu0 0.0
    %3085 = vmatprep.subr.mxu0 0.0
    %3086 = vmatpush1.msra.mxu0 0.0
    %3087 = vmatprep.subr.mxu0 0.0
    %3088 = vmatpush1.msra.mxu0 0.0
    %3089 = vmatprep.subr.mxu0 0.0
    %3090 = vmatpush1.msra.mxu0 0.0
    %3091 = vmatprep.subr.mxu0 0.0
    %3092 = vmatpush1.msra.mxu0 0.0
    %3093 = vmatprep.subr.mxu0 0.0
    %3094 = vmatpush1.msra.mxu0 0.0
    %3095 = vmatprep.subr.mxu0 0.0
    %3096 = vmatpush1.msra.mxu0 0.0
    %3097 = vmatprep.subr.mxu0 0.0
    %3098 = vmatpush1.msra.mxu0 0.0
    %3099 = vmatprep.subr.mxu0 0.0
    %3100 = vmatpush1.msra.mxu0 0.0
    %3101 = vmatprep.subr.mxu0 0.0
    %3102 = vmatpush1.msra.mxu0 0.0
    %3103 = vmatprep.subr.mxu0 0.0
    %3104 = vmatpush1.msra.mxu0 0.0
    %3105 = vmatprep.subr.mxu0 0.0
    %3106 = vmatpush1.msra.mxu0 0.0
    %3107 = vmatprep.subr.mxu0 0.0
    %3108 = vmatpush1.msra.mxu0 0.0
    %3109 = vmatprep.subr.mxu0 0.0
    %3110 = vmatpush1.msra.mxu0 0.0
    %3111 = vmatprep.subr.mxu0 0.0
    %3112 = vmatpush1.msra.mxu0 0.0
    %3113 = vmatprep.subr.mxu0 0.0
    %3114 = vmatpush1.msra.mxu0 0.0
    %3115 = vmatprep.subr.mxu0 0.0
    %3116 = vmatpush1.msra.mxu0 0.0
    %3117 = vmatprep.subr.mxu0 0.0
    %3118 = vmatpush1.msra.mxu0 0.0
    %3119 = vmatprep.subr.mxu0 0.0
    %3120 = vmatpush1.msra.mxu0 0.0
    %3121 = vmatprep.subr.mxu0 0.0
    %3122 = vmatpush1.msra.mxu0 0.0
    %3123 = vmatprep.subr.mxu0 0.0
    %3124 = vmatpush1.msra.mxu0 0.0
    %3125 = vmatprep.subr.mxu0 0.0
    %3126 = vmatpush1.msra.mxu0 0.0
    %3127 = vmatprep.subr.mxu0 0.0
    %3128 = vmatpush1.msra.mxu0 0.0
    %3129 = vmatprep.subr.mxu0 0.0
    %3130 = vmatpush1.msra.mxu0 0.0
    %3131 = vmatprep.subr.mxu0 0.0
    %3132 = vmatpush1.msra.mxu0 0.0
    %3133 = vmatprep.subr.mxu0 0.0
    %3134 = vmatpush1.msra.mxu0 0.0
    %3135 = vmatprep.subr.mxu0 0.0
    %3136 = vmatpush1.msra.mxu0 0.0
    %3137 = vmatprep.subr.mxu0 0.0
    %3138 = vmatpush1.msra.mxu0 0.0
    %3139 = vmatprep.mubr.f32.mxu0 0.0
    %3140 = vmatmul.mubr.f32.gmra.mrb[0].mxu0 %v3067
    %v3141 = vpop.f32.mrb[0].mxu0
    %v3142 = vadd.f32 0.0, %v3141
    %v3143 = vpop.f32.mrb[0].mxu0
    %3144 = vmatprep.mubr.f32.mxu0 0.0
    %3145 = vmatmul.mubr.f32.gmra.mrb[0].mxu0 %v3069
    %v3146 = vpop.f32.mrb[0].mxu0
    %v3147 = vadd.f32 0.0, %v3146
    %v3148 = vpop.f32.mrb[0].mxu0
    %3149 = vmatprep.mubr.f32.mxu0 0.0
    %3150 = vmatmul.mubr.f32.gmra.mrb[0].mxu0 %v3071
    %v3151 = vpop.f32.mrb[0].mxu0
    %v3152 = vadd.f32 0.0, %v3151
    %v3153 = vpop.f32.mrb[0].mxu0
    %3154 = vmatprep.mubr.f32.mxu0 0.0
    %3155 = vmatmul.mubr.f32.gmra.mrb[0].mxu0 %v3073
    %v3156 = vpop.f32.mrb[0].mxu0
    %v3157 = vadd.f32 0.0, %v3156
    %v3158 = vpop.f32.mrb[0].mxu0
    %3159 = vdwg.mxu0
    %v3160 = vcombine.low %v2793, %v2801
    %v3161 = vcombine.low %v2802, %v2810
    %v3163 = vunpack.c.l.s4 1983009808
    %v3164 = vunpack.c.0.s8 %v3163
    %v3165 = vlaneseq
    %v3166 = vshrl.u32 %v3165, 7
    %v3167 = vsub.s32 %v3164, %v3166
    %v3168 = vrot.slane %v3160, %v3167
    %v3170 = vunpack.c.l.s4 1983009808
    %v3171 = vunpack.c.0.s8 %v3170
    %v3172 = vlaneseq
    %v3173 = vshrl.u32 %v3172, 7
    %v3174 = vsub.s32 %v3171, %v3173
    %v3175 = vrot.slane %v3161, %v3174
    %v3176 = vcombine.low %v3168, %v3175
    %v3177 = vcombine.low %v2817, %v2819
    %v3178 = vcombine.low %v2835, %v2834
    %v3180 = vunpack.c.l.s4 1983009808
    %v3181 = vunpack.c.0.s8 %v3180
    %v3182 = vlaneseq
    %v3183 = vshrl.u32 %v3182, 7
    %v3184 = vsub.s32 %v3181, %v3183
    %v3185 = vrot.slane %v3177, %v3184
    %v3187 = vunpack.c.l.s4 1983009808
    %v3188 = vunpack.c.0.s8 %v3187
    %v3189 = vlaneseq
    %v3190 = vshrl.u32 %v3189, 7
    %v3191 = vsub.s32 %v3188, %v3190
    %v3192 = vrot.slane %v3178, %v3191
    %v3193 = vcombine.low %v3185, %v3192
    %v3194 = vcombine.low %v2868, %v2870
    %v3195 = vcombine.low %v2886, %v2885
    %v3197 = vunpack.c.l.s4 1983009808
    %v3198 = vunpack.c.0.s8 %v3197
    %v3199 = vlaneseq
    %v3200 = vshrl.u32 %v3199, 7
    %v3201 = vsub.s32 %v3198, %v3200
    %v3202 = vrot.slane %v3194, %v3201
    %v3204 = vunpack.c.l.s4 1983009808
    %v3205 = vunpack.c.0.s8 %v3204
    %v3206 = vlaneseq
    %v3207 = vshrl.u32 %v3206, 7
    %v3208 = vsub.s32 %v3205, %v3207
    %v3209 = vrot.slane %v3195, %v3208
    %v3210 = vcombine.low %v3202, %v3209
    %v3211 = vcombine.low %v2895, %v2903
    %v3212 = vcombine.low %v2904, %v2912
    %v3214 = vunpack.c.l.s4 1983009808
    %v3215 = vunpack.c.0.s8 %v3214
    %v3216 = vlaneseq
    %v3217 = vshrl.u32 %v3216, 7
    %v3218 = vsub.s32 %v3215, %v3217
    %v3219 = vrot.slane %v3211, %v3218
    %v3221 = vunpack.c.l.s4 1983009808
    %v3222 = vunpack.c.0.s8 %v3221
    %v3223 = vlaneseq
    %v3224 = vshrl.u32 %v3223, 7
    %v3225 = vsub.s32 %v3222, %v3224
    %v3226 = vrot.slane %v3212, %v3225
    %v3227 = vcombine.low %v3219, %v3226
    %v3228 = vsel %vm3066, %v3176, 0
    %v3230 = vsel %vm3066, %v3193, 0
    %v3232 = vsel %vm3066, %v3210, 0
    %v3234 = vsel %vm3066, %v3227, 0
    %3236 = vmatprep.subr.mxu0 0.0
    %3237 = vmatpush1.msra.mxu0 %v2939
    %3238 = vmatprep.subr.mxu0 0.0
    %3239 = vmatpush1.msra.mxu0 0.0
    %3240 = vmatprep.subr.mxu0 0.0
    %3241 = vmatpush1.msra.mxu0 0.0
    %3242 = vmatprep.subr.mxu0 0.0
    %3243 = vmatpush1.msra.mxu0 0.0
    %3244 = vmatprep.subr.mxu0 0.0
    %3245 = vmatpush1.msra.mxu0 0.0
    %3246 = vmatprep.subr.mxu0 0.0
    %3247 = vmatpush1.msra.mxu0 0.0
    %3248 = vmatprep.subr.mxu0 0.0
    %3249 = vmatpush1.msra.mxu0 0.0
    %3250 = vmatprep.subr.mxu0 0.0
    %3251 = vmatpush1.msra.mxu0 0.0
    %3252 = vmatprep.subr.mxu0 0.0
    %3253 = vmatpush1.msra.mxu0 0.0
    %3254 = vmatprep.subr.mxu0 0.0
    %3255 = vmatpush1.msra.mxu0 0.0
    %3256 = vmatprep.subr.mxu0 0.0
    %3257 = vmatpush1.msra.mxu0 0.0
    %3258 = vmatprep.subr.mxu0 0.0
    %3259 = vmatpush1.msra.mxu0 0.0
    %3260 = vmatprep.subr.mxu0 0.0
    %3261 = vmatpush1.msra.mxu0 0.0
    %3262 = vmatprep.subr.mxu0 0.0
    %3263 = vmatpush1.msra.mxu0 0.0
    %3264 = vmatprep.subr.mxu0 0.0
    %3265 = vmatpush1.msra.mxu0 0.0
    %3266 = vmatprep.subr.mxu0 0.0
    %3267 = vmatpush1.msra.mxu0 0.0
    %3268 = vmatprep.subr.mxu0 0.0
    %3269 = vmatpush1.msra.mxu0 0.0
    %3270 = vmatprep.subr.mxu0 0.0
    %3271 = vmatpush1.msra.mxu0 0.0
    %3272 = vmatprep.subr.mxu0 0.0
    %3273 = vmatpush1.msra.mxu0 0.0
    %3274 = vmatprep.subr.mxu0 0.0
    %3275 = vmatpush1.msra.mxu0 0.0
    %3276 = vmatprep.subr.mxu0 0.0
    %3277 = vmatpush1.msra.mxu0 0.0
    %3278 = vmatprep.subr.mxu0 0.0
    %3279 = vmatpush1.msra.mxu0 0.0
    %3280 = vmatprep.subr.mxu0 0.0
    %3281 = vmatpush1.msra.mxu0 0.0
    %3282 = vmatprep.subr.mxu0 0.0
    %3283 = vmatpush1.msra.mxu0 0.0
    %3284 = vmatprep.subr.mxu0 0.0
    %3285 = vmatpush1.msra.mxu0 0.0
    %3286 = vmatprep.subr.mxu0 0.0
    %3287 = vmatpush1.msra.mxu0 0.0
    %3288 = vmatprep.subr.mxu0 0.0
    %3289 = vmatpush1.msra.mxu0 0.0
    %3290 = vmatprep.subr.mxu0 0.0
    %3291 = vmatpush1.msra.mxu0 0.0
    %3292 = vmatprep.subr.mxu0 0.0
    %3293 = vmatpush1.msra.mxu0 0.0
    %3294 = vmatprep.subr.mxu0 0.0
    %3295 = vmatpush1.msra.mxu0 0.0
    %3296 = vmatprep.subr.mxu0 0.0
    %3297 = vmatpush1.msra.mxu0 0.0
    %3298 = vmatprep.subr.mxu0 0.0
    %3299 = vmatpush1.msra.mxu0 0.0
    %3300 = vmatprep.mubr.f32.mxu0 0.0
    %3301 = vmatmul.mubr.f32.gmra.mrb[0].mxu0 %v3228
    %v3302 = vpop.f32.mrb[0].mxu0
    %v3303 = vadd.f32 %v3142, %v3302
    %v3304 = vpop.f32.mrb[0].mxu0
    %3305 = vmatprep.mubr.f32.mxu0 0.0
    %3306 = vmatmul.mubr.f32.gmra.mrb[0].mxu0 %v3230
    %v3307 = vpop.f32.mrb[0].mxu0
    %v3308 = vadd.f32 %v3147, %v3307
    %v3309 = vpop.f32.mrb[0].mxu0
    %3310 = vmatprep.mubr.f32.mxu0 0.0
    %3311 = vmatmul.mubr.f32.gmra.mrb[0].mxu0 %v3232
    %v3312 = vpop.f32.mrb[0].mxu0
    %v3313 = vadd.f32 %v3152, %v3312
    %v3314 = vpop.f32.mrb[0].mxu0
    %3315 = vmatprep.mubr.f32.mxu0 0.0
    %3316 = vmatmul.mubr.f32.gmra.mrb[0].mxu0 %v3234
    %v3317 = vpop.f32.mrb[0].mxu0
    %v3318 = vadd.f32 %v3157, %v3317
    %v3319 = vpop.f32.mrb[0].mxu0
    %3320 = vdwg.mxu0
    %s3321 = scalar_lea.vmem %s3, 16
    %v3322 = vld [vmem:[%s3321] sm:$0xff]
    %v3323 = vcombine.low %v2801, %v2800
    %v3324 = vcombine.low %v2810, %v2818
    %v3326 = vunpack.c.l.s4 1983009808
    %v3327 = vunpack.c.0.s8 %v3326
    %v3328 = vlaneseq
    %v3329 = vshrl.u32 %v3328, 7
    %v3330 = vsub.s32 %v3327, %v3329
    %v3331 = vrot.slane %v3323, %v3330
    %v3333 = vunpack.c.l.s4 1983009808
    %v3334 = vunpack.c.0.s8 %v3333
    %v3335 = vlaneseq
    %v3336 = vshrl.u32 %v3335, 7
    %v3337 = vsub.s32 %v3334, %v3336
    %v3338 = vrot.slane %v3324, %v3337
    %v3339 = vcombine.low %v3331, %v3338
    %v3340 = vcombine.low %v2819, %v2827
    %v3341 = vcombine.low %v2834, %v2836
    %v3343 = vunpack.c.l.s4 1983009808
    %v3344 = vunpack.c.0.s8 %v3343
    %v3345 = vlaneseq
    %v3346 = vshrl.u32 %v3345, 7
    %v3347 = vsub.s32 %v3344, %v3346
    %v3348 = vrot.slane %v3340, %v3347
    %v3350 = vunpack.c.l.s4 1983009808
    %v3351 = vunpack.c.0.s8 %v3350
    %v3352 = vlaneseq
    %v3353 = vshrl.u32 %v3352, 7
    %v3354 = vsub.s32 %v3351, %v3353
    %v3355 = vrot.slane %v3341, %v3354
    %v3356 = vcombine.low %v3348, %v3355
    %v3357 = vcombine.low %v2870, %v2878
    %v3358 = vcombine.low %v2885, %v2887
    %v3360 = vunpack.c.l.s4 1983009808
    %v3361 = vunpack.c.0.s8 %v3360
    %v3362 = vlaneseq
    %v3363 = vshrl.u32 %v3362, 7
    %v3364 = vsub.s32 %v3361, %v3363
    %v3365 = vrot.slane %v3357, %v3364
    %v3367 = vunpack.c.l.s4 1983009808
    %v3368 = vunpack.c.0.s8 %v3367
    %v3369 = vlaneseq
    %v3370 = vshrl.u32 %v3369, 7
    %v3371 = vsub.s32 %v3368, %v3370
    %v3372 = vrot.slane %v3358, %v3371
    %v3373 = vcombine.low %v3365, %v3372
    %v3374 = vcombine.low %v2903, %v2902
    %v3375 = vcombine.low %v2912, %v2920
    %v3377 = vunpack.c.l.s4 1983009808
    %v3378 = vunpack.c.0.s8 %v3377
    %v3379 = vlaneseq
    %v3380 = vshrl.u32 %v3379, 7
    %v3381 = vsub.s32 %v3378, %v3380
    %v3382 = vrot.slane %v3374, %v3381
    %v3384 = vunpack.c.l.s4 1983009808
    %v3385 = vunpack.c.0.s8 %v3384
    %v3386 = vlaneseq
    %v3387 = vshrl.u32 %v3386, 7
    %v3388 = vsub.s32 %v3385, %v3387
    %v3389 = vrot.slane %v3375, %v3388
    %v3390 = vcombine.low %v3382, %v3389
    %v3391 = vsel %vm3066, %v3339, 0
    %v3393 = vsel %vm3066, %v3356, 0
    %v3395 = vsel %vm3066, %v3373, 0
    %v3397 = vsel %vm3066, %v3390, 0
    %3399 = vmatprep.subr.mxu0 0.0
    %3400 = vmatpush1.msra.mxu0 %v3322
    %3401 = vmatprep.subr.mxu0 0.0
    %3402 = vmatpush1.msra.mxu0 0.0
    %3403 = vmatprep.subr.mxu0 0.0
    %3404 = vmatpush1.msra.mxu0 0.0
    %3405 = vmatprep.subr.mxu0 0.0
    %3406 = vmatpush1.msra.mxu0 0.0
    %3407 = vmatprep.subr.mxu0 0.0
    %3408 = vmatpush1.msra.mxu0 0.0
    %3409 = vmatprep.subr.mxu0 0.0
    %3410 = vmatpush1.msra.mxu0 0.0
    %3411 = vmatprep.subr.mxu0 0.0
    %3412 = vmatpush1.msra.mxu0 0.0
    %3413 = vmatprep.subr.mxu0 0.0
    %3414 = vmatpush1.msra.mxu0 0.0
    %3415 = vmatprep.subr.mxu0 0.0
    %3416 = vmatpush1.msra.mxu0 0.0
    %3417 = vmatprep.subr.mxu0 0.0
    %3418 = vmatpush1.msra.mxu0 0.0
    %3419 = vmatprep.subr.mxu0 0.0
    %3420 = vmatpush1.msra.mxu0 0.0
    %3421 = vmatprep.subr.mxu0 0.0
    %3422 = vmatpush1.msra.mxu0 0.0
    %3423 = vmatprep.subr.mxu0 0.0
    %3424 = vmatpush1.msra.mxu0 0.0
    %3425 = vmatprep.subr.mxu0 0.0
    %3426 = vmatpush1.msra.mxu0 0.0
    %3427 = vmatprep.subr.mxu0 0.0
    %3428 = vmatpush1.msra.mxu0 0.0
    %3429 = vmatprep.subr.mxu0 0.0
    %3430 = vmatpush1.msra.mxu0 0.0
    %3431 = vmatprep.subr.mxu0 0.0
    %3432 = vmatpush1.msra.mxu0 0.0
    %3433 = vmatprep.subr.mxu0 0.0
    %3434 = vmatpush1.msra.mxu0 0.0
    %3435 = vmatprep.subr.mxu0 0.0
    %3436 = vmatpush1.msra.mxu0 0.0
    %3437 = vmatprep.subr.mxu0 0.0
    %3438 = vmatpush1.msra.mxu0 0.0
    %3439 = vmatprep.subr.mxu0 0.0
    %3440 = vmatpush1.msra.mxu0 0.0
    %3441 = vmatprep.subr.mxu0 0.0
    %3442 = vmatpush1.msra.mxu0 0.0
    %3443 = vmatprep.subr.mxu0 0.0
    %3444 = vmatpush1.msra.mxu0 0.0
    %3445 = vmatprep.subr.mxu0 0.0
    %3446 = vmatpush1.msra.mxu0 0.0
    %3447 = vmatprep.subr.mxu0 0.0
    %3448 = vmatpush1.msra.mxu0 0.0
    %3449 = vmatprep.subr.mxu0 0.0
    %3450 = vmatpush1.msra.mxu0 0.0
    %3451 = vmatprep.subr.mxu0 0.0
    %3452 = vmatpush1.msra.mxu0 0.0
    %3453 = vmatprep.subr.mxu0 0.0
    %3454 = vmatpush1.msra.mxu0 0.0
    %3455 = vmatprep.subr.mxu0 0.0
    %3456 = vmatpush1.msra.mxu0 0.0
    %3457 = vmatprep.subr.mxu0 0.0
    %3458 = vmatpush1.msra.mxu0 0.0
    %3459 = vmatprep.subr.mxu0 0.0
    %3460 = vmatpush1.msra.mxu0 0.0
    %3461 = vmatprep.subr.mxu0 0.0
    %3462 = vmatpush1.msra.mxu0 0.0
    %3463 = vmatprep.mubr.f32.mxu0 0.0
    %3464 = vmatmul.mubr.f32.gmra.mrb[0].mxu0 %v3391
    %v3465 = vpop.f32.mrb[0].mxu0
    %v3466 = vadd.f32 0.0, %v3465
    %v3467 = vpop.f32.mrb[0].mxu0
    %3468 = vmatprep.mubr.f32.mxu0 0.0
    %3469 = vmatmul.mubr.f32.gmra.mrb[0].mxu0 %v3393
    %v3470 = vpop.f32.mrb[0].mxu0
    %v3471 = vadd.f32 0.0, %v3470
    %v3472 = vpop.f32.mrb[0].mxu0
    %3473 = vmatprep.mubr.f32.mxu0 0.0
    %3474 = vmatmul.mubr.f32.gmra.mrb[0].mxu0 %v3395
    %v3475 = vpop.f32.mrb[0].mxu0
    %v3476 = vadd.f32 0.0, %v3475
    %v3477 = vpop.f32.mrb[0].mxu0
    %3478 = vmatprep.mubr.f32.mxu0 0.0
    %3479 = vmatmul.mubr.f32.gmra.mrb[0].mxu0 %v3397
    %v3480 = vpop.f32.mrb[0].mxu0
    %v3481 = vadd.f32 0.0, %v3480
    %v3482 = vpop.f32.mrb[0].mxu0
    %3483 = vdwg.mxu0
    %v3484 = vadd.f32 %v3303, %v3466
    %v3485 = vadd.f32 %v3308, %v3471
    %v3486 = vadd.f32 %v3313, %v3476
    %v3487 = vadd.f32 %v3318, %v3481
    %s3488 = scalar_lea.vmem %s3, 24
    %v3489 = vld [vmem:[%s3488] sm:$0xff]
    %v3490 = vcombine.low %v3175, %v3185
    %v3491 = vcombine.low %v2844, %v2852
    %v3493 = vunpack.c.l.s4 1983009808
    %v3494 = vunpack.c.0.s8 %v3493
    %v3495 = vlaneseq
    %v3496 = vshrl.u32 %v3495, 7
    %v3497 = vsub.s32 %v3494, %v3496
    %v3498 = vrot.slane %v3491, %v3497
    %v3499 = vcombine.low %v3192, %v3498
    %v3500 = vcombine.low %v3209, %v3219
    %v3501 = vcombine.low %v2919, %v2921
    %v3503 = vunpack.c.l.s4 1983009808
    %v3504 = vunpack.c.0.s8 %v3503
    %v3505 = vlaneseq
    %v3506 = vshrl.u32 %v3505, 7
    %v3507 = vsub.s32 %v3504, %v3506
    %v3508 = vrot.slane %v3501, %v3507
    %v3509 = vcombine.low %v3226, %v3508
    %v3510 = vsel %vm3066, %v3490, 0
    %v3512 = vsel %vm3066, %v3499, 0
    %v3514 = vsel %vm3066, %v3500, 0
    %v3516 = vsel %vm3066, %v3509, 0
    %3518 = vmatprep.subr.mxu0 0.0
    %3519 = vmatpush1.msra.mxu0 %v3489
    %3520 = vmatprep.subr.mxu0 0.0
    %3521 = vmatpush1.msra.mxu0 0.0
    %3522 = vmatprep.subr.mxu0 0.0
    %3523 = vmatpush1.msra.mxu0 0.0
    %3524 = vmatprep.subr.mxu0 0.0
    %3525 = vmatpush1.msra.mxu0 0.0
    %3526 = vmatprep.subr.mxu0 0.0
    %3527 = vmatpush1.msra.mxu0 0.0
    %3528 = vmatprep.subr.mxu0 0.0
    %3529 = vmatpush1.msra.mxu0 0.0
    %3530 = vmatprep.subr.mxu0 0.0
    %3531 = vmatpush1.msra.mxu0 0.0
    %3532 = vmatprep.subr.mxu0 0.0
    %3533 = vmatpush1.msra.mxu0 0.0
    %3534 = vmatprep.subr.mxu0 0.0
    %3535 = vmatpush1.msra.mxu0 0.0
    %3536 = vmatprep.subr.mxu0 0.0
    %3537 = vmatpush1.msra.mxu0 0.0
    %3538 = vmatprep.subr.mxu0 0.0
    %3539 = vmatpush1.msra.mxu0 0.0
    %3540 = vmatprep.subr.mxu0 0.0
    %3541 = vmatpush1.msra.mxu0 0.0
    %3542 = vmatprep.subr.mxu0 0.0
    %3543 = vmatpush1.msra.mxu0 0.0
    %3544 = vmatprep.subr.mxu0 0.0
    %3545 = vmatpush1.msra.mxu0 0.0
    %3546 = vmatprep.subr.mxu0 0.0
    %3547 = vmatpush1.msra.mxu0 0.0
    %3548 = vmatprep.subr.mxu0 0.0
    %3549 = vmatpush1.msra.mxu0 0.0
    %3550 = vmatprep.subr.mxu0 0.0
    %3551 = vmatpush1.msra.mxu0 0.0
    %3552 = vmatprep.subr.mxu0 0.0
    %3553 = vmatpush1.msra.mxu0 0.0
    %3554 = vmatprep.subr.mxu0 0.0
    %3555 = vmatpush1.msra.mxu0 0.0
    %3556 = vmatprep.subr.mxu0 0.0
    %3557 = vmatpush1.msra.mxu0 0.0
    %3558 = vmatprep.subr.mxu0 0.0
    %3559 = vmatpush1.msra.mxu0 0.0
    %3560 = vmatprep.subr.mxu0 0.0
    %3561 = vmatpush1.msra.mxu0 0.0
    %3562 = vmatprep.subr.mxu0 0.0
    %3563 = vmatpush1.msra.mxu0 0.0
    %3564 = vmatprep.subr.mxu0 0.0
    %3565 = vmatpush1.msra.mxu0 0.0
    %3566 = vmatprep.subr.mxu0 0.0
    %3567 = vmatpush1.msra.mxu0 0.0
    %3568 = vmatprep.subr.mxu0 0.0
    %3569 = vmatpush1.msra.mxu0 0.0
    %3570 = vmatprep.subr.mxu0 0.0
    %3571 = vmatpush1.msra.mxu0 0.0
    %3572 = vmatprep.subr.mxu0 0.0
    %3573 = vmatpush1.msra.mxu0 0.0
    %3574 = vmatprep.subr.mxu0 0.0
    %3575 = vmatpush1.msra.mxu0 0.0
    %3576 = vmatprep.subr.mxu0 0.0
    %3577 = vmatpush1.msra.mxu0 0.0
    %3578 = vmatprep.subr.mxu0 0.0
    %3579 = vmatpush1.msra.mxu0 0.0
    %3580 = vmatprep.subr.mxu0 0.0
    %3581 = vmatpush1.msra.mxu0 0.0
    %3582 = vmatprep.mubr.f32.mxu0 0.0
    %3583 = vmatmul.mubr.f32.gmra.mrb[0].mxu0 %v3510
    %v3584 = vpop.f32.mrb[0].mxu0
    %v3585 = vadd.f32 0.0, %v3584
    %v3586 = vpop.f32.mrb[0].mxu0
    %3587 = vmatprep.mubr.f32.mxu0 0.0
    %3588 = vmatmul.mubr.f32.gmra.mrb[0].mxu0 %v3512
    %v3589 = vpop.f32.mrb[0].mxu0
    %v3590 = vadd.f32 0.0, %v3589
    %v3591 = vpop.f32.mrb[0].mxu0
    %3592 = vmatprep.mubr.f32.mxu0 0.0
    %3593 = vmatmul.mubr.f32.gmra.mrb[0].mxu0 %v3514
    %v3594 = vpop.f32.mrb[0].mxu0
    %v3595 = vadd.f32 0.0, %v3594
    %v3596 = vpop.f32.mrb[0].mxu0
    %3597 = vmatprep.mubr.f32.mxu0 0.0
    %3598 = vmatmul.mubr.f32.gmra.mrb[0].mxu0 %v3516
    %v3599 = vpop.f32.mrb[0].mxu0
    %v3600 = vadd.f32 0.0, %v3599
    %v3601 = vpop.f32.mrb[0].mxu0
    %3602 = vdwg.mxu0
    %v3603 = vadd.f32 %v3484, %v3585
    %v3604 = vadd.f32 %v3485, %v3590
    %v3605 = vadd.f32 %v3486, %v3595
    %v3606 = vadd.f32 %v3487, %v3600
    %v3607 = vrot.slane %v2844, 7
    %v3608 = vrot.slane %v3607, 2
    %v3609 = vrot.slane %v2852, 7
    %v3610 = vsel %vm266, %v3608, %v3609
    %v3611 = vrot.slane %v3609, 2
    %v3612 = vrot.slane %v2851, 7
    %v3613 = vsel %vm266, %v3611, %v3612
    %v3614 = vrot.slane %v2919, 7
    %v3615 = vrot.slane %v3614, 2
    %v3616 = vrot.slane %v2921, 7
    %v3617 = vsel %vm266, %v3615, %v3616
    %v3618 = vrot.slane %v3616, 2
    %v3619 = vrot.slane %v2929, 7
    %v3620 = vsel %vm266, %v3618, %v3619
    %s3621 = scalar_lea.vmem %s3, 32
    %v3622 = vld [vmem:[%s3621] sm:$0xff]
    %v3623 = vcombine.low %v3013, %v3023
    %v3624 = vcombine.low %v3610, %v3613
    %v3626 = vunpack.c.l.s4 1983009808
    %v3627 = vunpack.c.0.s8 %v3626
    %v3628 = vlaneseq
    %v3629 = vshrl.u32 %v3628, 7
    %v3630 = vsub.s32 %v3627, %v3629
    %v3631 = vrot.slane %v3624, %v3630
    %v3632 = vcombine.low %v3030, %v3631
    %v3633 = vcombine.low %v3047, %v3057
    %v3634 = vcombine.low %v3617, %v3620
    %v3636 = vunpack.c.l.s4 1983009808
    %v3637 = vunpack.c.0.s8 %v3636
    %v3638 = vlaneseq
    %v3639 = vshrl.u32 %v3638, 7
    %v3640 = vsub.s32 %v3637, %v3639
    %v3641 = vrot.slane %v3634, %v3640
    %v3642 = vcombine.low %v3064, %v3641
    %v3643 = vsel %vm3066, %v3623, 0
    %v3645 = vsel %vm3066, %v3632, 0
    %v3647 = vsel %vm3066, %v3633, 0
    %v3649 = vsel %vm3066, %v3642, 0
    %3651 = vmatprep.subr.mxu0 0.0
    %3652 = vmatpush1.msra.mxu0 %v3622
    %3653 = vmatprep.subr.mxu0 0.0
    %3654 = vmatpush1.msra.mxu0 0.0
    %3655 = vmatprep.subr.mxu0 0.0
    %3656 = vmatpush1.msra.mxu0 0.0
    %3657 = vmatprep.subr.mxu0 0.0
    %3658 = vmatpush1.msra.mxu0 0.0
    %3659 = vmatprep.subr.mxu0 0.0
    %3660 = vmatpush1.msra.mxu0 0.0
    %3661 = vmatprep.subr.mxu0 0.0
    %3662 = vmatpush1.msra.mxu0 0.0
    %3663 = vmatprep.subr.mxu0 0.0
    %3664 = vmatpush1.msra.mxu0 0.0
    %3665 = vmatprep.subr.mxu0 0.0
    %3666 = vmatpush1.msra.mxu0 0.0
    %3667 = vmatprep.subr.mxu0 0.0
    %3668 = vmatpush1.msra.mxu0 0.0
    %3669 = vmatprep.subr.mxu0 0.0
    %3670 = vmatpush1.msra.mxu0 0.0
    %3671 = vmatprep.subr.mxu0 0.0
    %3672 = vmatpush1.msra.mxu0 0.0
    %3673 = vmatprep.subr.mxu0 0.0
    %3674 = vmatpush1.msra.mxu0 0.0
    %3675 = vmatprep.subr.mxu0 0.0
    %3676 = vmatpush1.msra.mxu0 0.0
    %3677 = vmatprep.subr.mxu0 0.0
    %3678 = vmatpush1.msra.mxu0 0.0
    %3679 = vmatprep.subr.mxu0 0.0
    %3680 = vmatpush1.msra.mxu0 0.0
    %3681 = vmatprep.subr.mxu0 0.0
    %3682 = vmatpush1.msra.mxu0 0.0
    %3683 = vmatprep.subr.mxu0 0.0
    %3684 = vmatpush1.msra.mxu0 0.0
    %3685 = vmatprep.subr.mxu0 0.0
    %3686 = vmatpush1.msra.mxu0 0.0
    %3687 = vmatprep.subr.mxu0 0.0
    %3688 = vmatpush1.msra.mxu0 0.0
    %3689 = vmatprep.subr.mxu0 0.0
    %3690 = vmatpush1.msra.mxu0 0.0
    %3691 = vmatprep.subr.mxu0 0.0
    %3692 = vmatpush1.msra.mxu0 0.0
    %3693 = vmatprep.subr.mxu0 0.0
    %3694 = vmatpush1.msra.mxu0 0.0
    %3695 = vmatprep.subr.mxu0 0.0
    %3696 = vmatpush1.msra.mxu0 0.0
    %3697 = vmatprep.subr.mxu0 0.0
    %3698 = vmatpush1.msra.mxu0 0.0
    %3699 = vmatprep.subr.mxu0 0.0
    %3700 = vmatpush1.msra.mxu0 0.0
    %3701 = vmatprep.subr.mxu0 0.0
    %3702 = vmatpush1.msra.mxu0 0.0
    %3703 = vmatprep.subr.mxu0 0.0
    %3704 = vmatpush1.msra.mxu0 0.0
    %3705 = vmatprep.subr.mxu0 0.0
    %3706 = vmatpush1.msra.mxu0 0.0
    %3707 = vmatprep.subr.mxu0 0.0
    %3708 = vmatpush1.msra.mxu0 0.0
    %3709 = vmatprep.subr.mxu0 0.0
    %3710 = vmatpush1.msra.mxu0 0.0
    %3711 = vmatprep.subr.mxu0 0.0
    %3712 = vmatpush1.msra.mxu0 0.0
    %3713 = vmatprep.subr.mxu0 0.0
    %3714 = vmatpush1.msra.mxu0 0.0
    %3715 = vmatprep.mubr.f32.mxu0 0.0
    %3716 = vmatmul.mubr.f32.gmra.mrb[0].mxu0 %v3643
    %v3717 = vpop.f32.mrb[0].mxu0
    %v3718 = vadd.f32 0.0, %v3717
    %v3719 = vpop.f32.mrb[0].mxu0
    %3720 = vmatprep.mubr.f32.mxu0 0.0
    %3721 = vmatmul.mubr.f32.gmra.mrb[0].mxu0 %v3645
    %v3722 = vpop.f32.mrb[0].mxu0
    %v3723 = vadd.f32 0.0, %v3722
    %v3724 = vpop.f32.mrb[0].mxu0
    %3725 = vmatprep.mubr.f32.mxu0 0.0
    %3726 = vmatmul.mubr.f32.gmra.mrb[0].mxu0 %v3647
    %v3727 = vpop.f32.mrb[0].mxu0
    %v3728 = vadd.f32 0.0, %v3727
    %v3729 = vpop.f32.mrb[0].mxu0
    %3730 = vmatprep.mubr.f32.mxu0 0.0
    %3731 = vmatmul.mubr.f32.gmra.mrb[0].mxu0 %v3649
    %v3732 = vpop.f32.mrb[0].mxu0
    %v3733 = vadd.f32 0.0, %v3732
    %v3734 = vpop.f32.mrb[0].mxu0
    %3735 = vdwg.mxu0
    %v3736 = vadd.f32 %v3603, %v3718
    %v3737 = vadd.f32 %v3604, %v3723
    %v3738 = vadd.f32 %v3605, %v3728
    %v3739 = vadd.f32 %v3606, %v3733
    %s3740 = scalar_lea.vmem %s3, 40
    %v3741 = vld [vmem:[%s3740] sm:$0xff]
    %v3742 = vcombine.low %v3338, %v3348
    %v3743 = vcombine.low %v2852, %v2851
    %v3745 = vunpack.c.l.s4 1983009808
    %v3746 = vunpack.c.0.s8 %v3745
    %v3747 = vlaneseq
    %v3748 = vshrl.u32 %v3747, 7
    %v3749 = vsub.s32 %v3746, %v3748
    %v3750 = vrot.slane %v3743, %v3749
    %v3751 = vcombine.low %v3355, %v3750
    %v3752 = vcombine.low %v3372, %v3382
    %v3753 = vcombine.low %v2921, %v2929
    %v3755 = vunpack.c.l.s4 1983009808
    %v3756 = vunpack.c.0.s8 %v3755
    %v3757 = vlaneseq
    %v3758 = vshrl.u32 %v3757, 7
    %v3759 = vsub.s32 %v3756, %v3758
    %v3760 = vrot.slane %v3753, %v3759
    %v3761 = vcombine.low %v3389, %v3760
    %v3762 = vsel %vm3066, %v3742, 0
    %v3764 = vsel %vm3066, %v3751, 0
    %v3766 = vsel %vm3066, %v3752, 0
    %v3768 = vsel %vm3066, %v3761, 0
    %3770 = vmatprep.subr.mxu0 0.0
    %3771 = vmatpush1.msra.mxu0 %v3741
    %3772 = vmatprep.subr.mxu0 0.0
    %3773 = vmatpush1.msra.mxu0 0.0
    %3774 = vmatprep.subr.mxu0 0.0
    %3775 = vmatpush1.msra.mxu0 0.0
    %3776 = vmatprep.subr.mxu0 0.0
    %3777 = vmatpush1.msra.mxu0 0.0
    %3778 = vmatprep.subr.mxu0 0.0
    %3779 = vmatpush1.msra.mxu0 0.0
    %3780 = vmatprep.subr.mxu0 0.0
    %3781 = vmatpush1.msra.mxu0 0.0
    %3782 = vmatprep.subr.mxu0 0.0
    %3783 = vmatpush1.msra.mxu0 0.0
    %3784 = vmatprep.subr.mxu0 0.0
    %3785 = vmatpush1.msra.mxu0 0.0
    %3786 = vmatprep.subr.mxu0 0.0
    %3787 = vmatpush1.msra.mxu0 0.0
    %3788 = vmatprep.subr.mxu0 0.0
    %3789 = vmatpush1.msra.mxu0 0.0
    %3790 = vmatprep.subr.mxu0 0.0
    %3791 = vmatpush1.msra.mxu0 0.0
    %3792 = vmatprep.subr.mxu0 0.0
    %3793 = vmatpush1.msra.mxu0 0.0
    %3794 = vmatprep.subr.mxu0 0.0
    %3795 = vmatpush1.msra.mxu0 0.0
    %3796 = vmatprep.subr.mxu0 0.0
    %3797 = vmatpush1.msra.mxu0 0.0
    %3798 = vmatprep.subr.mxu0 0.0
    %3799 = vmatpush1.msra.mxu0 0.0
    %3800 = vmatprep.subr.mxu0 0.0
    %3801 = vmatpush1.msra.mxu0 0.0
    %3802 = vmatprep.subr.mxu0 0.0
    %3803 = vmatpush1.msra.mxu0 0.0
    %3804 = vmatprep.subr.mxu0 0.0
    %3805 = vmatpush1.msra.mxu0 0.0
    %3806 = vmatprep.subr.mxu0 0.0
    %3807 = vmatpush1.msra.mxu0 0.0
    %3808 = vmatprep.subr.mxu0 0.0
    %3809 = vmatpush1.msra.mxu0 0.0
    %3810 = vmatprep.subr.mxu0 0.0
    %3811 = vmatpush1.msra.mxu0 0.0
    %3812 = vmatprep.subr.mxu0 0.0
    %3813 = vmatpush1.msra.mxu0 0.0
    %3814 = vmatprep.subr.mxu0 0.0
    %3815 = vmatpush1.msra.mxu0 0.0
    %3816 = vmatprep.subr.mxu0 0.0
    %3817 = vmatpush1.msra.mxu0 0.0
    %3818 = vmatprep.subr.mxu0 0.0
    %3819 = vmatpush1.msra.mxu0 0.0
    %3820 = vmatprep.subr.mxu0 0.0
    %3821 = vmatpush1.msra.mxu0 0.0
    %3822 = vmatprep.subr.mxu0 0.0
    %3823 = vmatpush1.msra.mxu0 0.0
    %3824 = vmatprep.subr.mxu0 0.0
    %3825 = vmatpush1.msra.mxu0 0.0
    %3826 = vmatprep.subr.mxu0 0.0
    %3827 = vmatpush1.msra.mxu0 0.0
    %3828 = vmatprep.subr.mxu0 0.0
    %3829 = vmatpush1.msra.mxu0 0.0
    %3830 = vmatprep.subr.mxu0 0.0
    %3831 = vmatpush1.msra.mxu0 0.0
    %3832 = vmatprep.subr.mxu0 0.0
    %3833 = vmatpush1.msra.mxu0 0.0
    %3834 = vmatprep.mubr.f32.mxu0 0.0
    %3835 = vmatmul.mubr.f32.gmra.mrb[0].mxu0 %v3762
    %v3836 = vpop.f32.mrb[0].mxu0
    %v3837 = vadd.f32 0.0, %v3836
    %v3838 = vpop.f32.mrb[0].mxu0
    %3839 = vmatprep.mubr.f32.mxu0 0.0
    %3840 = vmatmul.mubr.f32.gmra.mrb[0].mxu0 %v3764
    %v3841 = vpop.f32.mrb[0].mxu0
    %v3842 = vadd.f32 0.0, %v3841
    %v3843 = vpop.f32.mrb[0].mxu0
    %3844 = vmatprep.mubr.f32.mxu0 0.0
    %3845 = vmatmul.mubr.f32.gmra.mrb[0].mxu0 %v3766
    %v3846 = vpop.f32.mrb[0].mxu0
    %v3847 = vadd.f32 0.0, %v3846
    %v3848 = vpop.f32.mrb[0].mxu0
    %3849 = vmatprep.mubr.f32.mxu0 0.0
    %3850 = vmatmul.mubr.f32.gmra.mrb[0].mxu0 %v3768
    %v3851 = vpop.f32.mrb[0].mxu0
    %v3852 = vadd.f32 0.0, %v3851
    %v3853 = vpop.f32.mrb[0].mxu0
    %3854 = vdwg.mxu0
    %v3855 = vadd.f32 %v3736, %v3837
    %v3856 = vadd.f32 %v3737, %v3842
    %v3857 = vadd.f32 %v3738, %v3847
    %v3858 = vadd.f32 %v3739, %v3852
    %s3859 = scalar_lea.vmem %s3, 48
    %v3860 = vld [vmem:[%s3859] sm:$0xff]
    %v3861 = vcombine.low %v2853, %v2861
    %v3863 = vunpack.c.l.s4 1983009808
    %v3864 = vunpack.c.0.s8 %v3863
    %v3865 = vlaneseq
    %v3866 = vshrl.u32 %v3865, 7
    %v3867 = vsub.s32 %v3864, %v3866
    %v3868 = vrot.slane %v3861, %v3867
    %v3869 = vcombine.low %v3498, %v3868
    %v3870 = vcombine.low %v2937, %v2936
    %v3872 = vunpack.c.l.s4 1983009808
    %v3873 = vunpack.c.0.s8 %v3872
    %v3874 = vlaneseq
    %v3875 = vshrl.u32 %v3874, 7
    %v3876 = vsub.s32 %v3873, %v3875
    %v3877 = vrot.slane %v3870, %v3876
    %v3878 = vcombine.low %v3508, %v3877
    %v3879 = vsel %vm3066, %v3869, 0
    %v3881 = vsel %vm3066, %v3878, 0
    %3883 = vmatprep.subr.mxu0 0.0
    %3884 = vmatpush1.msra.mxu0 %v3860
    %3885 = vmatprep.subr.mxu0 0.0
    %3886 = vmatpush1.msra.mxu0 0.0
    %3887 = vmatprep.subr.mxu0 0.0
    %3888 = vmatpush1.msra.mxu0 0.0
    %3889 = vmatprep.subr.mxu0 0.0
    %3890 = vmatpush1.msra.mxu0 0.0
    %3891 = vmatprep.subr.mxu0 0.0
    %3892 = vmatpush1.msra.mxu0 0.0
    %3893 = vmatprep.subr.mxu0 0.0
    %3894 = vmatpush1.msra.mxu0 0.0
    %3895 = vmatprep.subr.mxu0 0.0
    %3896 = vmatpush1.msra.mxu0 0.0
    %3897 = vmatprep.subr.mxu0 0.0
    %3898 = vmatpush1.msra.mxu0 0.0
    %3899 = vmatprep.subr.mxu0 0.0
    %3900 = vmatpush1.msra.mxu0 0.0
    %3901 = vmatprep.subr.mxu0 0.0
    %3902 = vmatpush1.msra.mxu0 0.0
    %3903 = vmatprep.subr.mxu0 0.0
    %3904 = vmatpush1.msra.mxu0 0.0
    %3905 = vmatprep.subr.mxu0 0.0
    %3906 = vmatpush1.msra.mxu0 0.0
    %3907 = vmatprep.subr.mxu0 0.0
    %3908 = vmatpush1.msra.mxu0 0.0
    %3909 = vmatprep.subr.mxu0 0.0
    %3910 = vmatpush1.msra.mxu0 0.0
    %3911 = vmatprep.subr.mxu0 0.0
    %3912 = vmatpush1.msra.mxu0 0.0
    %3913 = vmatprep.subr.mxu0 0.0
    %3914 = vmatpush1.msra.mxu0 0.0
    %3915 = vmatprep.subr.mxu0 0.0
    %3916 = vmatpush1.msra.mxu0 0.0
    %3917 = vmatprep.subr.mxu0 0.0
    %3918 = vmatpush1.msra.mxu0 0.0
    %3919 = vmatprep.subr.mxu0 0.0
    %3920 = vmatpush1.msra.mxu0 0.0
    %3921 = vmatprep.subr.mxu0 0.0
    %3922 = vmatpush1.msra.mxu0 0.0
    %3923 = vmatprep.subr.mxu0 0.0
    %3924 = vmatpush1.msra.mxu0 0.0
    %3925 = vmatprep.subr.mxu0 0.0
    %3926 = vmatpush1.msra.mxu0 0.0
    %3927 = vmatprep.subr.mxu0 0.0
    %3928 = vmatpush1.msra.mxu0 0.0
    %3929 = vmatprep.subr.mxu0 0.0
    %3930 = vmatpush1.msra.mxu0 0.0
    %3931 = vmatprep.subr.mxu0 0.0
    %3932 = vmatpush1.msra.mxu0 0.0
    %3933 = vmatprep.subr.mxu0 0.0
    %3934 = vmatpush1.msra.mxu0 0.0
    %3935 = vmatprep.subr.mxu0 0.0
    %3936 = vmatpush1.msra.mxu0 0.0
    %3937 = vmatprep.subr.mxu0 0.0
    %3938 = vmatpush1.msra.mxu0 0.0
    %3939 = vmatprep.subr.mxu0 0.0
    %3940 = vmatpush1.msra.mxu0 0.0
    %3941 = vmatprep.subr.mxu0 0.0
    %3942 = vmatpush1.msra.mxu0 0.0
    %3943 = vmatprep.subr.mxu0 0.0
    %3944 = vmatpush1.msra.mxu0 0.0
    %3945 = vmatprep.subr.mxu0 0.0
    %3946 = vmatpush1.msra.mxu0 0.0
    %3947 = vmatprep.mubr.f32.mxu0 0.0
    %3948 = vmatmul.mubr.f32.gmra.mrb[0].mxu0 %v3230
    %v3949 = vpop.f32.mrb[0].mxu0
    %v3950 = vadd.f32 0.0, %v3949
    %v3951 = vpop.f32.mrb[0].mxu0
    %3952 = vmatprep.mubr.f32.mxu0 0.0
    %3953 = vmatmul.mubr.f32.gmra.mrb[0].mxu0 %v3879
    %v3954 = vpop.f32.mrb[0].mxu0
    %v3955 = vadd.f32 0.0, %v3954
    %v3956 = vpop.f32.mrb[0].mxu0
    %3957 = vmatprep.mubr.f32.mxu0 0.0
    %3958 = vmatmul.mubr.f32.gmra.mrb[0].mxu0 %v3234
    %v3959 = vpop.f32.mrb[0].mxu0
    %v3960 = vadd.f32 0.0, %v3959
    %v3961 = vpop.f32.mrb[0].mxu0
    %3962 = vmatprep.mubr.f32.mxu0 0.0
    %3963 = vmatmul.mubr.f32.gmra.mrb[0].mxu0 %v3881
    %v3964 = vpop.f32.mrb[0].mxu0
    %v3965 = vadd.f32 0.0, %v3964
    %v3966 = vpop.f32.mrb[0].mxu0
    %3967 = vdwg.mxu0
    %v3968 = vadd.f32 %v3855, %v3950
    %v3969 = vadd.f32 %v3856, %v3955
    %v3970 = vadd.f32 %v3857, %v3960
    %v3971 = vadd.f32 %v3858, %v3965
    %v3972 = vrot.slane %v2853, 7
    %v3973 = vrot.slane %v3972, 2
    %v3974 = vrot.slane %v2861, 7
    %v3975 = vsel %vm266, %v3973, %v3974
    %v3976 = vrot.slane %v3974, 2
    %v3977 = vrot.slane %v2869, 7
    %v3978 = vsel %vm266, %v3976, %v3977
    %v3979 = vrot.slane %v2937, 7
    %v3980 = vrot.slane %v3979, 2
    %v3981 = vrot.slane %v2936, 7
    %v3982 = vsel %vm266, %v3980, %v3981
    %v3983 = vrot.slane %v3981, 2
    %v3984 = vrot.slane %v2938, 7
    %v3985 = vsel %vm266, %v3983, %v3984
    %s3986 = scalar_lea.vmem %s3, 56
    %v3987 = vld [vmem:[%s3986] sm:$0xff]
    %v3988 = vcombine.low %v3975, %v3978
    %v3990 = vunpack.c.l.s4 1983009808
    %v3991 = vunpack.c.0.s8 %v3990
    %v3992 = vlaneseq
    %v3993 = vshrl.u32 %v3992, 7
    %v3994 = vsub.s32 %v3991, %v3993
    %v3995 = vrot.slane %v3988, %v3994
    %v3996 = vcombine.low %v3631, %v3995
    %v3997 = vcombine.low %v3982, %v3985
    %v3999 = vunpack.c.l.s4 1983009808
    %v4000 = vunpack.c.0.s8 %v3999
    %v4001 = vlaneseq
    %v4002 = vshrl.u32 %v4001, 7
    %v4003 = vsub.s32 %v4000, %v4002
    %v4004 = vrot.slane %v3997, %v4003
    %v4005 = vcombine.low %v3641, %v4004
    %v4006 = vsel %vm3066, %v3996, 0
    %v4008 = vsel %vm3066, %v4005, 0
    %4010 = vmatprep.subr.mxu0 0.0
    %4011 = vmatpush1.msra.mxu0 %v3987
    %4012 = vmatprep.subr.mxu0 0.0
    %4013 = vmatpush1.msra.mxu0 0.0
    %4014 = vmatprep.subr.mxu0 0.0
    %4015 = vmatpush1.msra.mxu0 0.0
    %4016 = vmatprep.subr.mxu0 0.0
    %4017 = vmatpush1.msra.mxu0 0.0
    %4018 = vmatprep.subr.mxu0 0.0
    %4019 = vmatpush1.msra.mxu0 0.0
    %4020 = vmatprep.subr.mxu0 0.0
    %4021 = vmatpush1.msra.mxu0 0.0
    %4022 = vmatprep.subr.mxu0 0.0
    %4023 = vmatpush1.msra.mxu0 0.0
    %4024 = vmatprep.subr.mxu0 0.0
    %4025 = vmatpush1.msra.mxu0 0.0
    %4026 = vmatprep.subr.mxu0 0.0
    %4027 = vmatpush1.msra.mxu0 0.0
    %4028 = vmatprep.subr.mxu0 0.0
    %4029 = vmatpush1.msra.mxu0 0.0
    %4030 = vmatprep.subr.mxu0 0.0
    %4031 = vmatpush1.msra.mxu0 0.0
    %4032 = vmatprep.subr.mxu0 0.0
    %4033 = vmatpush1.msra.mxu0 0.0
    %4034 = vmatprep.subr.mxu0 0.0
    %4035 = vmatpush1.msra.mxu0 0.0
    %4036 = vmatprep.subr.mxu0 0.0
    %4037 = vmatpush1.msra.mxu0 0.0
    %4038 = vmatprep.subr.mxu0 0.0
    %4039 = vmatpush1.msra.mxu0 0.0
    %4040 = vmatprep.subr.mxu0 0.0
    %4041 = vmatpush1.msra.mxu0 0.0
    %4042 = vmatprep.subr.mxu0 0.0
    %4043 = vmatpush1.msra.mxu0 0.0
    %4044 = vmatprep.subr.mxu0 0.0
    %4045 = vmatpush1.msra.mxu0 0.0
    %4046 = vmatprep.subr.mxu0 0.0
    %4047 = vmatpush1.msra.mxu0 0.0
    %4048 = vmatprep.subr.mxu0 0.0
    %4049 = vmatpush1.msra.mxu0 0.0
    %4050 = vmatprep.subr.mxu0 0.0
    %4051 = vmatpush1.msra.mxu0 0.0
    %4052 = vmatprep.subr.mxu0 0.0
    %4053 = vmatpush1.msra.mxu0 0.0
    %4054 = vmatprep.subr.mxu0 0.0
    %4055 = vmatpush1.msra.mxu0 0.0
    %4056 = vmatprep.subr.mxu0 0.0
    %4057 = vmatpush1.msra.mxu0 0.0
    %4058 = vmatprep.subr.mxu0 0.0
    %4059 = vmatpush1.msra.mxu0 0.0
    %4060 = vmatprep.subr.mxu0 0.0
    %4061 = vmatpush1.msra.mxu0 0.0
    %4062 = vmatprep.subr.mxu0 0.0
    %4063 = vmatpush1.msra.mxu0 0.0
    %4064 = vmatprep.subr.mxu0 0.0
    %4065 = vmatpush1.msra.mxu0 0.0
    %4066 = vmatprep.subr.mxu0 0.0
    %4067 = vmatpush1.msra.mxu0 0.0
    %4068 = vmatprep.subr.mxu0 0.0
    %4069 = vmatpush1.msra.mxu0 0.0
    %4070 = vmatprep.subr.mxu0 0.0
    %4071 = vmatpush1.msra.mxu0 0.0
    %4072 = vmatprep.subr.mxu0 0.0
    %4073 = vmatpush1.msra.mxu0 0.0
    %4074 = vmatprep.mubr.f32.mxu0 0.0
    %4075 = vmatmul.mubr.f32.gmra.mrb[0].mxu0 %v3069
    %v4076 = vpop.f32.mrb[0].mxu0
    %v4077 = vadd.f32 0.0, %v4076
    %v4078 = vpop.f32.mrb[0].mxu0
    %4079 = vmatprep.mubr.f32.mxu0 0.0
    %4080 = vmatmul.mubr.f32.gmra.mrb[0].mxu0 %v4006
    %v4081 = vpop.f32.mrb[0].mxu0
    %v4082 = vadd.f32 0.0, %v4081
    %v4083 = vpop.f32.mrb[0].mxu0
    %4084 = vmatprep.mubr.f32.mxu0 0.0
    %4085 = vmatmul.mubr.f32.gmra.mrb[0].mxu0 %v3073
    %v4086 = vpop.f32.mrb[0].mxu0
    %v4087 = vadd.f32 0.0, %v4086
    %v4088 = vpop.f32.mrb[0].mxu0
    %4089 = vmatprep.mubr.f32.mxu0 0.0
    %4090 = vmatmul.mubr.f32.gmra.mrb[0].mxu0 %v4008
    %v4091 = vpop.f32.mrb[0].mxu0
    %v4092 = vadd.f32 0.0, %v4091
    %v4093 = vpop.f32.mrb[0].mxu0
    %4094 = vdwg.mxu0
    %v4095 = vadd.f32 %v3968, %v4077
    %v4096 = vadd.f32 %v3969, %v4082
    %v4097 = vadd.f32 %v3970, %v4087
    %v4098 = vadd.f32 %v3971, %v4092
    %s4099 = scalar_lea.vmem %s3, 64
    %v4100 = vld [vmem:[%s4099] sm:$0xff]
    %v4101 = vcombine.low %v2861, %v2869
    %v4103 = vunpack.c.l.s4 1983009808
    %v4104 = vunpack.c.0.s8 %v4103
    %v4105 = vlaneseq
    %v4106 = vshrl.u32 %v4105, 7
    %v4107 = vsub.s32 %v4104, %v4106
    %v4108 = vrot.slane %v4101, %v4107
    %v4109 = vcombine.low %v3750, %v4108
    %v4110 = vcombine.low %v2936, %v2938
    %v4112 = vunpack.c.l.s4 1983009808
    %v4113 = vunpack.c.0.s8 %v4112
    %v4114 = vlaneseq
    %v4115 = vshrl.u32 %v4114, 7
    %v4116 = vsub.s32 %v4113, %v4115
    %v4117 = vrot.slane %v4110, %v4116
    %v4118 = vcombine.low %v3760, %v4117
    %v4119 = vsel %vm3066, %v4109, 0
    %v4121 = vsel %vm3066, %v4118, 0
    %4123 = vmatprep.subr.mxu0 0.0
    %4124 = vmatpush1.msra.mxu0 %v4100
    %4125 = vmatprep.subr.mxu0 0.0
    %4126 = vmatpush1.msra.mxu0 0.0
    %4127 = vmatprep.subr.mxu0 0.0
    %4128 = vmatpush1.msra.mxu0 0.0
    %4129 = vmatprep.subr.mxu0 0.0
    %4130 = vmatpush1.msra.mxu0 0.0
    %4131 = vmatprep.subr.mxu0 0.0
    %4132 = vmatpush1.msra.mxu0 0.0
    %4133 = vmatprep.subr.mxu0 0.0
    %4134 = vmatpush1.msra.mxu0 0.0
    %4135 = vmatprep.subr.mxu0 0.0
    %4136 = vmatpush1.msra.mxu0 0.0
    %4137 = vmatprep.subr.mxu0 0.0
    %4138 = vmatpush1.msra.mxu0 0.0
    %4139 = vmatprep.subr.mxu0 0.0
    %4140 = vmatpush1.msra.mxu0 0.0
    %4141 = vmatprep.subr.mxu0 0.0
    %4142 = vmatpush1.msra.mxu0 0.0
    %4143 = vmatprep.subr.mxu0 0.0
    %4144 = vmatpush1.msra.mxu0 0.0
    %4145 = vmatprep.subr.mxu0 0.0
    %4146 = vmatpush1.msra.mxu0 0.0
    %4147 = vmatprep.subr.mxu0 0.0
    %4148 = vmatpush1.msra.mxu0 0.0
    %4149 = vmatprep.subr.mxu0 0.0
    %4150 = vmatpush1.msra.mxu0 0.0
    %4151 = vmatprep.subr.mxu0 0.0
    %4152 = vmatpush1.msra.mxu0 0.0
    %4153 = vmatprep.subr.mxu0 0.0
    %4154 = vmatpush1.msra.mxu0 0.0
    %4155 = vmatprep.subr.mxu0 0.0
    %4156 = vmatpush1.msra.mxu0 0.0
    %4157 = vmatprep.subr.mxu0 0.0
    %4158 = vmatpush1.msra.mxu0 0.0
    %4159 = vmatprep.subr.mxu0 0.0
    %4160 = vmatpush1.msra.mxu0 0.0
    %4161 = vmatprep.subr.mxu0 0.0
    %4162 = vmatpush1.msra.mxu0 0.0
    %4163 = vmatprep.subr.mxu0 0.0
    %4164 = vmatpush1.msra.mxu0 0.0
    %4165 = vmatprep.subr.mxu0 0.0
    %4166 = vmatpush1.msra.mxu0 0.0
    %4167 = vmatprep.subr.mxu0 0.0
    %4168 = vmatpush1.msra.mxu0 0.0
    %4169 = vmatprep.subr.mxu0 0.0
    %4170 = vmatpush1.msra.mxu0 0.0
    %4171 = vmatprep.subr.mxu0 0.0
    %4172 = vmatpush1.msra.mxu0 0.0
    %4173 = vmatprep.subr.mxu0 0.0
    %4174 = vmatpush1.msra.mxu0 0.0
    %4175 = vmatprep.subr.mxu0 0.0
    %4176 = vmatpush1.msra.mxu0 0.0
    %4177 = vmatprep.subr.mxu0 0.0
    %4178 = vmatpush1.msra.mxu0 0.0
    %4179 = vmatprep.subr.mxu0 0.0
    %4180 = vmatpush1.msra.mxu0 0.0
    %4181 = vmatprep.subr.mxu0 0.0
    %4182 = vmatpush1.msra.mxu0 0.0
    %4183 = vmatprep.subr.mxu0 0.0
    %4184 = vmatpush1.msra.mxu0 0.0
    %4185 = vmatprep.subr.mxu0 0.0
    %4186 = vmatpush1.msra.mxu0 0.0
    %4187 = vmatprep.mubr.f32.mxu0 0.0
    %4188 = vmatmul.mubr.f32.gmra.mrb[0].mxu0 %v3393
    %v4189 = vpop.f32.mrb[0].mxu0
    %v4190 = vadd.f32 0.0, %v4189
    %v4191 = vpop.f32.mrb[0].mxu0
    %4192 = vmatprep.mubr.f32.mxu0 0.0
    %4193 = vmatmul.mubr.f32.gmra.mrb[0].mxu0 %v4119
    %v4194 = vpop.f32.mrb[0].mxu0
    %v4195 = vadd.f32 0.0, %v4194
    %v4196 = vpop.f32.mrb[0].mxu0
    %4197 = vmatprep.mubr.f32.mxu0 0.0
    %4198 = vmatmul.mubr.f32.gmra.mrb[0].mxu0 %v3397
    %v4199 = vpop.f32.mrb[0].mxu0
    %v4200 = vadd.f32 0.0, %v4199
    %v4201 = vpop.f32.mrb[0].mxu0
    %4202 = vmatprep.mubr.f32.mxu0 0.0
    %4203 = vmatmul.mubr.f32.gmra.mrb[0].mxu0 %v4121
    %v4204 = vpop.f32.mrb[0].mxu0
    %v4205 = vadd.f32 0.0, %v4204
    %v4206 = vpop.f32.mrb[0].mxu0
    %4207 = vdwg.mxu0
    %v4208 = vadd.f32 %v4095, %v4190
    %v4209 = vadd.f32 %v4096, %v4195
    %v4210 = vadd.f32 %v4097, %v4200
    %v4211 = vadd.f32 %v4098, %v4205
    %v4212 = vld [vmem:[%s4] sm:$0x1]
    %v4214 = vlaneseq
    %v4215 = vshrl.u32 %v4214, 7
    %v4216 = vsub.s32 0, %v4215
    %v4217 = vrot.slane %v4212, %v4216
    %v4219 = vadd.f32 %v4208, %v4217
    %v4220 = vadd.f32 %v4209, %v4217
    %v4221 = vadd.f32 %v4210, %v4217
    %v4222 = vadd.f32 %v4211, %v4217
    %v4223 = vmax.f32 %v4219, 0.0
    %v4224 = vmax.f32 %v4220, 0.0
    %v4225 = vmax.f32 %v4221, 0.0
    %v4226 = vmax.f32 %v4222, 0.0
    %v4227 = vld [vmem:[%s5] sm:$0xff]
    %v4228 = vld [vmem:[%s5 + $0x8] sm:$0xff]
    %v4229 = vld [vmem:[%s6] sm:$0x1]
    %v4231 = vlaneseq
    %v4232 = vshrl.u32 %v4231, 7
    %v4233 = vsub.s32 0, %v4232
    %v4234 = vrot.slane %v4229, %v4233
    %vm4236 = vcmask 130048
    %v4238 = vsel %vm4236, %v4223, 0
    %v4241 = vsel %vm4236, %v4224, 0
    %v4244 = vsel %vm4236, %v4225, 0
    %v4247 = vsel %vm4236, %v4226, 0
    %4249 = vmatprep.subr.mxu0 0.0
    %4250 = vmatpush1.msra.mxu0 %v4227
    %4251 = vmatprep.subr.mxu0 0.0
    %4252 = vmatpush1.msra.mxu0 %v4228
    %4253 = vmatprep.subr.mxu0 0.0
    %4254 = vmatpush1.msra.mxu0 0.0
    %4255 = vmatprep.subr.mxu0 0.0
    %4256 = vmatpush1.msra.mxu0 0.0
    %4257 = vmatprep.subr.mxu0 0.0
    %4258 = vmatpush1.msra.mxu0 0.0
    %4259 = vmatprep.subr.mxu0 0.0
    %4260 = vmatpush1.msra.mxu0 0.0
    %4261 = vmatprep.subr.mxu0 0.0
    %4262 = vmatpush1.msra.mxu0 0.0
    %4263 = vmatprep.subr.mxu0 0.0
    %4264 = vmatpush1.msra.mxu0 0.0
    %4265 = vmatprep.subr.mxu0 0.0
    %4266 = vmatpush1.msra.mxu0 0.0
    %4267 = vmatprep.subr.mxu0 0.0
    %4268 = vmatpush1.msra.mxu0 0.0
    %4269 = vmatprep.subr.mxu0 0.0
    %4270 = vmatpush1.msra.mxu0 0.0
    %4271 = vmatprep.subr.mxu0 0.0
    %4272 = vmatpush1.msra.mxu0 0.0
    %4273 = vmatprep.subr.mxu0 0.0
    %4274 = vmatpush1.msra.mxu0 0.0
    %4275 = vmatprep.subr.mxu0 0.0
    %4276 = vmatpush1.msra.mxu0 0.0
    %4277 = vmatprep.subr.mxu0 0.0
    %4278 = vmatpush1.msra.mxu0 0.0
    %4279 = vmatprep.subr.mxu0 0.0
    %4280 = vmatpush1.msra.mxu0 0.0
    %4281 = vmatprep.subr.mxu0 0.0
    %4282 = vmatpush1.msra.mxu0 0.0
    %4283 = vmatprep.subr.mxu0 0.0
    %4284 = vmatpush1.msra.mxu0 0.0
    %4285 = vmatprep.subr.mxu0 0.0
    %4286 = vmatpush1.msra.mxu0 0.0
    %4287 = vmatprep.subr.mxu0 0.0
    %4288 = vmatpush1.msra.mxu0 0.0
    %4289 = vmatprep.subr.mxu0 0.0
    %4290 = vmatpush1.msra.mxu0 0.0
    %4291 = vmatprep.subr.mxu0 0.0
    %4292 = vmatpush1.msra.mxu0 0.0
    %4293 = vmatprep.subr.mxu0 0.0
    %4294 = vmatpush1.msra.mxu0 0.0
    %4295 = vmatprep.subr.mxu0 0.0
    %4296 = vmatpush1.msra.mxu0 0.0
    %4297 = vmatprep.subr.mxu0 0.0
    %4298 = vmatpush1.msra.mxu0 0.0
    %4299 = vmatprep.subr.mxu0 0.0
    %4300 = vmatpush1.msra.mxu0 0.0
    %4301 = vmatprep.subr.mxu0 0.0
    %4302 = vmatpush1.msra.mxu0 0.0
    %4303 = vmatprep.subr.mxu0 0.0
    %4304 = vmatpush1.msra.mxu0 0.0
    %4305 = vmatprep.subr.mxu0 0.0
    %4306 = vmatpush1.msra.mxu0 0.0
    %4307 = vmatprep.subr.mxu0 0.0
    %4308 = vmatpush1.msra.mxu0 0.0
    %4309 = vmatprep.subr.mxu0 0.0
    %4310 = vmatpush1.msra.mxu0 0.0
    %4311 = vmatprep.subr.mxu0 0.0
    %4312 = vmatpush1.msra.mxu0 0.0
    %4313 = vmatprep.mubr.f32.mxu0 0.0
    %4314 = vmatmul.mubr.f32.gmra.mrb[0].mxu0 %v4238
    %v4315 = vpop.f32.mrb[0].mxu0
    %v4316 = vadd.f32 %v4234, %v4315
    %v4317 = vpop.f32.mrb[0].mxu0
    %4318 = vmatprep.mubr.f32.mxu0 0.0
    %4319 = vmatmul.mubr.f32.gmra.mrb[0].mxu0 %v4241
    %v4320 = vpop.f32.mrb[0].mxu0
    %v4321 = vadd.f32 %v4234, %v4320
    %v4322 = vpop.f32.mrb[0].mxu0
    %4323 = vmatprep.mubr.f32.mxu0 0.0
    %4324 = vmatmul.mubr.f32.gmra.mrb[0].mxu0 %v4244
    %v4325 = vpop.f32.mrb[0].mxu0
    %v4326 = vadd.f32 %v4234, %v4325
    %v4327 = vpop.f32.mrb[0].mxu0
    %4328 = vmatprep.mubr.f32.mxu0 0.0
    %4329 = vmatmul.mubr.f32.gmra.mrb[0].mxu0 %v4247
    %v4330 = vpop.f32.mrb[0].mxu0
    %v4331 = vadd.f32 %v4234, %v4330
    %v4332 = vpop.f32.mrb[0].mxu0
    %4333 = vdwg.mxu0
    %v4338 = vcombine.high %v4316, %v4316
    %v4339 = vcombine.high %v4321, %v4321
    %v4340 = vcombine.high %v4326, %v4326
    %v4341 = vcombine.high %v4331, %v4331
    %vm4346 = vcmask 125952
    %4347 = vst.msk [vmem:[#allocation2] sm:$0xf] %vm4346, %v4316
    %4348 = vst.msk [vmem:[#allocation2 + $0x4] sm:$0xf] %vm4346, %v4338
    %4349 = vst.msk [vmem:[#allocation2 + $0x8] sm:$0xf] %vm4346, %v4321
    %4350 = vst.msk [vmem:[#allocation2 + $0xc] sm:$0xf] %vm4346, %v4339
    %4351 = vst.msk [vmem:[#allocation2 + $0x10] sm:$0xf] %vm4346, %v4326
    %4352 = vst.msk [vmem:[#allocation2 + $0x14] sm:$0xf] %vm4346, %v4340
    %4353 = vst.msk [vmem:[#allocation2 + $0x18] sm:$0xf] %vm4346, %v4331
    %4354 = vst.msk [vmem:[#allocation2 + $0x1c] sm:$0xf] %vm4346, %v4341
    // Predicated region
    $region30: #{temple.1} parent=1 // pred_check
      _
    $region31: #{temple.1} parent=1 // pred_check_branch
      %4356 = sbr.rel (0) target = $region33
    $region32: #{temple.1} parent=1 // pred_region
      %s4358 = ssub.s32 512, 512
      %4359 = vsyncadd [#allocation3], %s4358
      %s4360 = sshll.u32 [#allocation2], 4
      %s4361 = int_to_ptr.vmem [resolvable:$true] %s4360
      %4366 = dma.vmem_to_hbm [thread:$0]  %s4361, 512, %s7, [#allocation3], 64, 64, 4
    $region33: #{temple.1} parent=1 // pred_fallthru
      _
    // Predicated region
    $region34: #{temple.1} parent=1 // pred_check
      _
    $region35: #{temple.1} parent=1 // pred_check_branch
      %4368 = sbr.rel (0) target = $region37
    $region36: #{temple.1} parent=1 // pred_region
      %4369 = dma.done [#allocation3], 512
    $region37: #{temple.1} parent=1 // pred_fallthru
      _
    %4370 = vsyncpa [#allocation3], 1

</llo_original>
